<compile_context>
chip_gen: v7x
topology: tpu7x:2x2x1
jax: 0.10.0
libtpu: 0.0.40
codegen_flags: <defaults>
</compile_context>

<pallas_src>
import functools

import jax
import jax.numpy as jnp
import numpy as np
from jax import lax
from jax.experimental import pallas as pl
from jax.experimental.pallas import tpu as pltpu


def _fp_kernel(tpos_ref, tbatch_ref, spos_ref, sbatch_ref, xw_ref, xskip_ref,
               w1b_ref, b1_ref, w2_ref, b2_ref, o_ref, *, k, mlp_dt, approx):
    # tile of target (skip) points
    q = tpos_ref[...].astype(jnp.float32)             # [TM, 3]
    sd = spos_ref[...].astype(jnp.float32)            # [3, N]  (source positions, transposed)
    TM = q.shape[0]
    N = sd.shape[1]

    # pairwise squared distances on the VPU: 3 unrolled (q_d - s_d)^2 terms -> [TM, N]
    d2 = jnp.zeros((TM, N), jnp.float32)
    for d in range(3):
        diff = q[:, d:d + 1] - sd[d:d + 1, :]
        d2 = d2 + diff * diff

    # mask out cross-batch pairs with +inf (invalid neighbors end up with weight 0)
    same_batch = tbatch_ref[...] == sbatch_ref[...]   # [TM,1] == [1,N] -> [TM,N]
    d2 = jnp.where(same_batch, d2, jnp.inf)

    wsel = jnp.zeros((TM, N), jnp.float32)            # per-source selection weights
    den = jnp.zeros((TM, 1), jnp.float32)

    # iterative k-NN selection: one XLU min-reduction + 3 VPU [TM,N] passes per round,
    # no MXU work inside the loop. onehot==(d2==dmin) picks all elements attaining the
    # minimum; for continuous coordinates exact duplicate squared distances do not
    # occur, so exactly one element is selected per round (matches the reference).
    for _ in range(k):
        dmin = jnp.min(d2, axis=1, keepdims=True)                     # [TM, 1] (XLU)
        onehot = d2 == dmin                                           # [TM, N]
        dcl = jnp.maximum(dmin, jnp.float32(1e-16))
        w = pl.reciprocal(dcl, approx=True) if approx else 1.0 / dcl  # [TM, 1] (0 if inf)
        wsel = jnp.where(onehot, w, wsel)        # disjoint across rounds -> where, not +=
        den = den + w
        d2 = jnp.where(onehot, jnp.inf, d2)      # knock the selected neighbor out

    # single fused gather + first-MLP-half matmul on the MXU: [TM,N] @ [N,dim].
    # wsel / xw stay f32: no [TM,N] cast and no precision loss on the 1/d2 weights.
    gath = jnp.dot(wsel, xw_ref[...], preferred_element_type=jnp.float32)
    inv_den = pl.reciprocal(den, approx=True) if approx else 1.0 / den

    # NOTE: rows with zero valid same-batch sources (incl. padded rows, batch=-1)
    # have den==0 and produce NaN here — identical to the reference's 0/0; padded
    # rows are sliced off in the wrapper.
    xs = xskip_ref[...]                                               # [TM, C_skip] (mlp_dt)
    h = (gath * inv_den                                               # interp @ W1a
         + jnp.dot(xs, w1b_ref[...], preferred_element_type=jnp.float32)
         + b1_ref[...])
    h = jnp.maximum(h, 0.0)                                           # ReLU
    out = (jnp.dot(h.astype(mlp_dt), w2_ref[...], preferred_element_type=jnp.float32)
           + b2_ref[...])
    o_ref[...] = jnp.maximum(out, 0.0).astype(o_ref.dtype)            # ReLU, lane-dense store


def _bytes(shape, dtype):
    return int(np.prod(shape)) * jnp.dtype(dtype).itemsize


def fp_module_forward(x, pos, batch, x_skip, pos_skip, batch_skip, params, *,
                      k=3, tm=None, mxu_dtype=jnp.bfloat16, approx_recip=None):
    """Pallas implementation of FPModule.forward. Returns (out, pos_skip, batch_skip).

    mxu_dtype: dtype for the MLP operands (bf16 recommended on v6e/v7x; f32 for
    bit-accuracy and on v5e). Distance / selection / gather math is always f32.
    approx_recip: None -> EUP approx reciprocals on the bf16 path, exact division on f32.
    """
    N, n_in = x.shape
    M, n_skip = x_skip.shape
    w1, b1, w2, b2 = params["w1"], params["b1"], params["w2"], params["b2"]
    dim = n_in + n_skip
    n_out = w2.shape[1]
    assert w1.shape == (dim, dim)

    cdt = jnp.dtype(mxu_dtype)
    approx = (cdt != jnp.float32) if approx_recip is None else bool(approx_recip)
    out_store_dtype = jnp.bfloat16 if cdt == jnp.bfloat16 else jnp.float32

    # ----- generation-aware defaults (VMEM capacity drives tm and the vmem cap) -----
    try:
        info = pltpu.get_tpu_info()
        vmem_cap = int(getattr(info, "vmem_capacity_bytes", 128 << 20))
    except Exception:
        vmem_cap = 128 << 20
    small_vmem = vmem_cap < (96 << 20)                 # v7x: 64 MiB; v5e/v6e: 128 MiB
    vmem_cap_limit = (48 << 20) if small_vmem else (100 << 20)

    if tm is None:
        if small_vmem and N > 4096:
            tm = 64          # v7x: halve the [TM,N] temporaries, double grid steps
        elif (not small_vmem) and N <= 2048 and M >= 512:
            tm = 256         # v6e: fewer grid steps, full-height MXU LHS
        else:
            tm = 128

    # ----- tiling: lane-dense padded output, target count padded to a tile multiple -----
    tm = max(8, min(int(tm), ((M + 7) // 8) * 8))
    tm = (tm // 8) * 8
    M_p = -(-M // tm) * tm
    n_out_p = max(128, ((n_out + 127) // 128) * 128)   # lane-dense output width
    pad = M_p - M
    grid_m = M_p // tm

    # ----- operand prep (wrapper-side, cheap XLA ops) -----
    pos_t = pos.T.astype(jnp.float32)                              # [3, N]
    sbatch = batch.astype(jnp.int32).reshape(1, N)

    # fused gather+MLP half: xw = x @ W1a, computed once (grid-invariant), full f32.
    w1a = w1[:n_in].astype(jnp.float32)                            # [n_in,  dim]
    xw = jnp.dot(x.astype(jnp.float32), w1a,
                 precision=lax.Precision.HIGHEST)                  # [N, dim] f32

    pos_skip_p = jnp.pad(pos_skip.astype(jnp.float32), ((0, pad), (0, 0)))
    x_skip_p = jnp.pad(x_skip, ((0, pad), (0, 0))).astype(cdt)
    tbatch = jnp.pad(batch_skip.astype(jnp.int32), (0, pad),
                     constant_values=-1).reshape(M_p, 1)           # -1 never matches

    w1b = w1[n_in:].astype(cdt)                                    # [n_skip, dim]
    b1_2d = b1.reshape(1, dim).astype(jnp.float32)
    w2_p = (jnp.zeros((dim, n_out_p), jnp.float32)
            .at[:, :n_out].set(w2.astype(jnp.float32)).astype(cdt))
    b2_p = jnp.zeros((1, n_out_p), jnp.float32).at[:, :n_out].set(
        b2.reshape(1, n_out).astype(jnp.float32))

    # ----- VMEM budget pieces -----
    tile_bytes = (_bytes((tm, 3), jnp.float32) + _bytes((tm, 1), jnp.int32)
                  + _bytes((tm, n_skip), cdt) + _bytes((tm, n_out_p), out_store_dtype))
    inv_bytes = (_bytes((3, N), jnp.float32) + _bytes((1, N), jnp.int32)
                 + _bytes((N, dim), jnp.float32) + _bytes((n_skip, dim), cdt)
                 + _bytes((1, dim), jnp.float32) + _bytes((dim, n_out_p), cdt)
                 + _bytes((1, n_out_p), jnp.float32))

    # ----- advisory cost estimate (grid-invariant inputs fetched once) -----
    flops = int(M_p * N * (9 + 5 * k)             # distances + k selection rounds
                + 2 * M_p * N * dim               # fused gather matmul
                + 2 * M_p * n_skip * dim          # MLP layer-1 skip half
                + 2 * M_p * dim * n_out_p)        # MLP layer 2
    transcendentals = int(M_p * (k + 1)) if approx else 0
    bytes_accessed = int(
        inv_bytes
        + _bytes((M_p, 3), jnp.float32) + _bytes((M_p, 1), jnp.int32)
        + _bytes((M_p, n_skip), cdt)
        + _bytes((M_p, n_out_p), out_store_dtype))

    kernel = functools.partial(_fp_kernel, k=k, mlp_dt=cdt, approx=approx)

    def _run(single_buffer):
        def inv(shape):
            imap = lambda *_: (0,) * len(shape)
            if single_buffer:
                return pl.BlockSpec(shape, imap, pipeline_mode=pl.Buffered(1))
            return pl.BlockSpec(shape, imap)

        in_specs = [
            pl.BlockSpec((tm, 3), lambda i: (i, 0)),      # pos_skip tile
            pl.BlockSpec((tm, 1), lambda i: (i, 0)),      # batch_skip tile
            inv((3, N)),                                  # pos^T (all sources)
            inv((1, N)),                                  # batch (all sources)
            inv((N, dim)),                                # xw = x @ W1a (all sources)
            pl.BlockSpec((tm, n_skip), lambda i: (i, 0)), # x_skip tile
            inv((n_skip, dim)),                           # W1b
            inv((1, dim)),                                # b1
            inv((dim, n_out_p)),                          # W2 (lane-padded)
            inv((1, n_out_p)),                            # b2 (lane-padded)
        ]

        inv_factor = 1 if single_buffer else 2
        # 2x double-buffered tile blocks + grid-invariant blocks + ~6 live [tm, N] f32
        # temporaries (d2 / mask / wsel / onehot / intermediates) + headroom.
        vmem_limit = (2 * tile_bytes + inv_factor * inv_bytes
                      + 6 * tm * N * 4 + (4 << 20))
        vmem_limit = int(min(max(vmem_limit, 16 << 20), vmem_cap_limit))

        return pl.pallas_call(
            kernel,
            out_shape=jax.ShapeDtypeStruct((M_p, n_out_p), out_store_dtype),
            grid_spec=pltpu.PrefetchScalarGridSpec(
                num_scalar_prefetch=0,
                grid=(grid_m,),
                in_specs=in_specs,
                out_specs=pl.BlockSpec((tm, n_out_p), lambda i: (i, 0)),
            ),
            compiler_params=pltpu.CompilerParams(
                dimension_semantics=("parallel",),
                vmem_limit_bytes=vmem_limit),
            cost_estimate=pl.CostEstimate(
                flops=flops, transcendentals=transcendentals,
                bytes_accessed=bytes_accessed),
        )(pos_skip_p, tbatch, pos_t, sbatch, xw, x_skip_p, w1b, b1_2d, w2_p, b2_p)

    try:
        # single-buffer the grid-invariant operands (halves their VMEM footprint)
        out_p = _run(True)
    except Exception:
        # fallback if pl.Buffered(1) / pipeline_mode isn't supported in this JAX build
        out_p = _run(False)

    out = out_p[:M, :n_out].astype(x.dtype)
    return out, pos_skip, batch_skip


def _reference_forward(x, pos, batch, x_skip, pos_skip, batch_skip, params, k=3):
    """Pure-JAX reference mirroring torch_geometric knn_interpolate + MLP (no BN)."""
    d2 = jnp.sum((pos_skip[:, None, :] - pos[None, :, :]) ** 2, axis=-1)
    d2 = jnp.where(batch_skip[:, None] == batch[None, :], d2, jnp.inf)
    neg_vals, idxs = lax.top_k(-d2, k)
    dk = -neg_vals                                      # [M, k]
    w = 1.0 / jnp.maximum(dk, 1e-16)
    feats = x[idxs]                                     # [M, k, C]
    interp = jnp.sum(w[..., None] * feats, axis=1) / jnp.sum(w, axis=1, keepdims=True)
    h = jnp.concatenate([interp, x_skip], axis=1)
    h = jnp.maximum(h @ params["w1"] + params["b1"], 0.0)
    out = jnp.maximum(h @ params["w2"] + params["b2"], 0.0)
    return out


if __name__ == "__main__":
    # Small shapes: 2 batch elements, 32 source points + 128 target (skip) points each.
    n_in, n_skip, n_out, k = 32, 32, 16, 3
    dim = n_in + n_skip
    N_src, M_tgt = 64, 256   # grid of 2 target tiles at tm=128

    key = jax.random.PRNGKey(0)
    k0, k1, k2, k3, k4, k5, k6, k7 = jax.random.split(key, 8)

    x = jax.random.normal(k0, (N_src, n_in), jnp.float32)
    pos = jax.random.normal(k1, (N_src, 3), jnp.float32)
    x_skip = jax.random.normal(k2, (M_tgt, n_skip), jnp.float32)
    pos_skip = jax.random.normal(k3, (M_tgt, 3), jnp.float32)
    batch = jnp.concatenate([jnp.zeros(N_src // 2, jnp.int32),
                             jnp.ones(N_src // 2, jnp.int32)])
    batch_skip = jnp.concatenate([jnp.zeros(M_tgt // 2, jnp.int32),
                                  jnp.ones(M_tgt // 2, jnp.int32)])

    # Deterministic parameter init (MLP([dim, dim, n_out]), batch_norm=False).
    params = {
        "w1": jax.random.normal(k4, (dim, dim), jnp.float32) * (1.0 / np.sqrt(dim)),
        "b1": jax.random.normal(k5, (dim,), jnp.float32) * 0.01,
        "w2": jax.random.normal(k6, (dim, n_out), jnp.float32) * (1.0 / np.sqrt(dim)),
        "b2": jax.random.normal(k7, (n_out,), jnp.float32) * 0.01,
    }

    with jax.default_matmul_precision("float32"):
        ref = _reference_forward(x, pos, batch, x_skip, pos_skip, batch_skip, params, k=k)
    ref = jax.block_until_ready(ref)

    # f32 path (accuracy check: exact division, f32 matmuls, f32 writeback)
    out_f32, pos_out, batch_out = fp_module_forward(
        x, pos, batch, x_skip, pos_skip, batch_skip, params,
        k=k, tm=128, mxu_dtype=jnp.float32)
    out_f32 = jax.block_until_ready(out_f32)
    if not jnp.allclose(out_f32, ref, atol=1e-3, rtol=1e-3):
        raise AssertionError(
            f"f32 mismatch, max abs err = {jnp.max(jnp.abs(out_f32 - ref))}")

    # bf16 MLP path (recommended perf config on v6e/v7x: EUP reciprocals, bf16 writeback)
    out_bf16, _, _ = fp_module_forward(
        x, pos, batch, x_skip, pos_skip, batch_skip, params,
        k=k, tm=128, mxu_dtype=jnp.bfloat16)
    out_bf16 = jax.block_until_ready(out_bf16)
    if not jnp.allclose(out_bf16, ref, atol=1e-1, rtol=5e-2):
        raise AssertionError(
            f"bf16 mismatch, max abs err = {jnp.max(jnp.abs(out_bf16 - ref))}")

    print("KERNEL_OK")
</pallas_src>

<mosaic_0001>
module attributes {stable_mosaic.version = 11 : i64} {
  func.func @_fp_kernel(%arg0: i32, %arg1: memref<128x3xf32, #tpu.memory_space<vmem>>, %arg2: memref<128x1xi32, #tpu.memory_space<vmem>>, %arg3: memref<3x64xf32, #tpu.memory_space<vmem>>, %arg4: memref<1x64xi32, #tpu.memory_space<vmem>>, %arg5: memref<64x64xf32, #tpu.memory_space<vmem>>, %arg6: memref<128x32xf32, #tpu.memory_space<vmem>>, %arg7: memref<32x64xf32, #tpu.memory_space<vmem>>, %arg8: memref<1x64xf32, #tpu.memory_space<vmem>>, %arg9: memref<64x128xf32, #tpu.memory_space<vmem>>, %arg10: memref<1x128xf32, #tpu.memory_space<vmem>>, %arg11: memref<128x128xf32, #tpu.memory_space<vmem>>) attributes {dimension_semantics = [#tpu.dimension_semantics<parallel>], iteration_bounds = array<i64: 2>, scalar_prefetch = 0 : i64, scratch_operands = 0 : i64, tpu.core_type = #tpu.core_type<tc>, window_params = [{transform_indices = @transform_0, window_bounds = array<i64: 128, 3>}, {transform_indices = @transform_1, window_bounds = array<i64: 128, 1>}, {pipeline_mode = #tpu.pipeline_mode<synchronous>, transform_indices = @transform_2, window_bounds = array<i64: 3, 64>}, {pipeline_mode = #tpu.pipeline_mode<synchronous>, transform_indices = @transform_3, window_bounds = array<i64: 1, 64>}, {pipeline_mode = #tpu.pipeline_mode<synchronous>, transform_indices = @transform_4, window_bounds = array<i64: 64, 64>}, {transform_indices = @transform_5, window_bounds = array<i64: 128, 32>}, {pipeline_mode = #tpu.pipeline_mode<synchronous>, transform_indices = @transform_6, window_bounds = array<i64: 32, 64>}, {pipeline_mode = #tpu.pipeline_mode<synchronous>, transform_indices = @transform_7, window_bounds = array<i64: 1, 64>}, {pipeline_mode = #tpu.pipeline_mode<synchronous>, transform_indices = @transform_8, window_bounds = array<i64: 64, 128>}, {pipeline_mode = #tpu.pipeline_mode<synchronous>, transform_indices = @transform_9, window_bounds = array<i64: 1, 128>}, {transform_indices = @transform_10, window_bounds = array<i64: 128, 128>}]} {
    %c0 = arith.constant 0 : index
    %c0_0 = arith.constant 0 : index
    %0 = vector.load %arg1[%c0, %c0_0] : memref<128x3xf32, #tpu.memory_space<vmem>>, vector<128x3xf32>
    %c0_1 = arith.constant 0 : index
    %c0_2 = arith.constant 0 : index
    %1 = vector.load %arg3[%c0_1, %c0_2] : memref<3x64xf32, #tpu.memory_space<vmem>>, vector<3x64xf32>
    %cst = arith.constant 0.000000e+00 : f32
    %2 = vector.broadcast %cst : f32 to vector<128x64xf32>
    %3 = vector.extract_strided_slice %0 {offsets = [0, 0], sizes = [128, 1], strides = [1, 1]} : vector<128x3xf32> to vector<128x1xf32>
    %4 = vector.extract_strided_slice %1 {offsets = [0, 0], sizes = [1, 64], strides = [1, 1]} : vector<3x64xf32> to vector<1x64xf32>
    %5 = vector.broadcast %3 : vector<128x1xf32> to vector<128x64xf32>
    %6 = vector.broadcast %4 : vector<1x64xf32> to vector<128x64xf32>
    %7 = arith.subf %5, %6 : vector<128x64xf32>
    %8 = arith.mulf %7, %7 : vector<128x64xf32>
    %9 = arith.addf %2, %8 : vector<128x64xf32>
    %10 = vector.extract_strided_slice %0 {offsets = [0, 1], sizes = [128, 1], strides = [1, 1]} : vector<128x3xf32> to vector<128x1xf32>
    %11 = vector.extract_strided_slice %1 {offsets = [1, 0], sizes = [1, 64], strides = [1, 1]} : vector<3x64xf32> to vector<1x64xf32>
    %12 = vector.broadcast %10 : vector<128x1xf32> to vector<128x64xf32>
    %13 = vector.broadcast %11 : vector<1x64xf32> to vector<128x64xf32>
    %14 = arith.subf %12, %13 : vector<128x64xf32>
    %15 = arith.mulf %14, %14 : vector<128x64xf32>
    %16 = arith.addf %9, %15 : vector<128x64xf32>
    %17 = vector.extract_strided_slice %0 {offsets = [0, 2], sizes = [128, 1], strides = [1, 1]} : vector<128x3xf32> to vector<128x1xf32>
    %18 = vector.extract_strided_slice %1 {offsets = [2, 0], sizes = [1, 64], strides = [1, 1]} : vector<3x64xf32> to vector<1x64xf32>
    %19 = vector.broadcast %17 : vector<128x1xf32> to vector<128x64xf32>
    %20 = vector.broadcast %18 : vector<1x64xf32> to vector<128x64xf32>
    %21 = arith.subf %19, %20 : vector<128x64xf32>
    %22 = arith.mulf %21, %21 : vector<128x64xf32>
    %23 = arith.addf %16, %22 : vector<128x64xf32>
    %c0_3 = arith.constant 0 : index
    %c0_4 = arith.constant 0 : index
    %24 = vector.load %arg2[%c0_3, %c0_4] : memref<128x1xi32, #tpu.memory_space<vmem>>, vector<128x1xi32>
    %c0_5 = arith.constant 0 : index
    %c0_6 = arith.constant 0 : index
    %25 = vector.load %arg4[%c0_5, %c0_6] : memref<1x64xi32, #tpu.memory_space<vmem>>, vector<1x64xi32>
    %26 = vector.broadcast %24 : vector<128x1xi32> to vector<128x64xi32>
    %27 = vector.broadcast %25 : vector<1x64xi32> to vector<128x64xi32>
    %28 = arith.cmpi eq, %26, %27 : vector<128x64xi32>
    %cst_7 = arith.constant 0x7F800000 : f32
    %29 = vector.broadcast %cst_7 : f32 to vector<128x64xf32>
    %30 = arith.select %28, %23, %29 : vector<128x64xi1>, vector<128x64xf32>
    %cst_8 = arith.constant 0.000000e+00 : f32
    %31 = vector.broadcast %cst_8 : f32 to vector<128x64xf32>
    %cst_9 = arith.constant 0.000000e+00 : f32
    %32 = vector.broadcast %cst_9 : f32 to vector<128x1xf32>
    %cst_10 = arith.constant dense<0x7F800000> : vector<128xf32>
    %33 = vector.multi_reduction <minimumf>, %30, %cst_10 [1] : vector<128x64xf32> to vector<128xf32>
    %34 = vector.shape_cast %33 : vector<128xf32> to vector<128x1xf32>
    %35 = vector.broadcast %34 : vector<128x1xf32> to vector<128x64xf32>
    %36 = arith.cmpf oeq, %30, %35 : vector<128x64xf32>
    %cst_11 = arith.constant 1.000000e-16 : f32
    %37 = vector.broadcast %cst_11 : f32 to vector<128x1xf32>
    %38 = arith.maximumf %34, %37 : vector<128x1xf32>
    %cst_12 = arith.constant 1.000000e+00 : f32
    %39 = vector.broadcast %cst_12 : f32 to vector<128x1xf32>
    %40 = arith.divf %39, %38 : vector<128x1xf32>
    %41 = vector.shape_cast %40 : vector<128x1xf32> to vector<128x1xf32>
    %42 = vector.broadcast %41 : vector<128x1xf32> to vector<128x64xf32>
    %43 = arith.select %36, %42, %31 : vector<128x64xi1>, vector<128x64xf32>
    %44 = arith.addf %32, %40 : vector<128x1xf32>
    %cst_13 = arith.constant 0x7F800000 : f32
    %45 = vector.broadcast %cst_13 : f32 to vector<128x64xf32>
    %46 = arith.select %36, %45, %30 : vector<128x64xi1>, vector<128x64xf32>
    %cst_14 = arith.constant dense<0x7F800000> : vector<128xf32>
    %47 = vector.multi_reduction <minimumf>, %46, %cst_14 [1] : vector<128x64xf32> to vector<128xf32>
    %48 = vector.shape_cast %47 : vector<128xf32> to vector<128x1xf32>
    %49 = vector.broadcast %48 : vector<128x1xf32> to vector<128x64xf32>
    %50 = arith.cmpf oeq, %46, %49 : vector<128x64xf32>
    %cst_15 = arith.constant 1.000000e-16 : f32
    %51 = vector.broadcast %cst_15 : f32 to vector<128x1xf32>
    %52 = arith.maximumf %48, %51 : vector<128x1xf32>
    %cst_16 = arith.constant 1.000000e+00 : f32
    %53 = vector.broadcast %cst_16 : f32 to vector<128x1xf32>
    %54 = arith.divf %53, %52 : vector<128x1xf32>
    %55 = vector.shape_cast %54 : vector<128x1xf32> to vector<128x1xf32>
    %56 = vector.broadcast %55 : vector<128x1xf32> to vector<128x64xf32>
    %57 = arith.select %50, %56, %43 : vector<128x64xi1>, vector<128x64xf32>
    %58 = arith.addf %44, %54 : vector<128x1xf32>
    %cst_17 = arith.constant 0x7F800000 : f32
    %59 = vector.broadcast %cst_17 : f32 to vector<128x64xf32>
    %60 = arith.select %50, %59, %46 : vector<128x64xi1>, vector<128x64xf32>
    %cst_18 = arith.constant dense<0x7F800000> : vector<128xf32>
    %61 = vector.multi_reduction <minimumf>, %60, %cst_18 [1] : vector<128x64xf32> to vector<128xf32>
    %62 = vector.shape_cast %61 : vector<128xf32> to vector<128x1xf32>
    %63 = vector.broadcast %62 : vector<128x1xf32> to vector<128x64xf32>
    %64 = arith.cmpf oeq, %60, %63 : vector<128x64xf32>
    %cst_19 = arith.constant 1.000000e-16 : f32
    %65 = vector.broadcast %cst_19 : f32 to vector<128x1xf32>
    %66 = arith.maximumf %62, %65 : vector<128x1xf32>
    %cst_20 = arith.constant 1.000000e+00 : f32
    %67 = vector.broadcast %cst_20 : f32 to vector<128x1xf32>
    %68 = arith.divf %67, %66 : vector<128x1xf32>
    %69 = vector.shape_cast %68 : vector<128x1xf32> to vector<128x1xf32>
    %70 = vector.broadcast %69 : vector<128x1xf32> to vector<128x64xf32>
    %71 = arith.select %64, %70, %57 : vector<128x64xi1>, vector<128x64xf32>
    %72 = arith.addf %58, %68 : vector<128x1xf32>
    %c0_21 = arith.constant 0 : index
    %c0_22 = arith.constant 0 : index
    %73 = vector.load %arg5[%c0_21, %c0_22] : memref<64x64xf32, #tpu.memory_space<vmem>>, vector<64x64xf32>
    %cst_23 = arith.constant dense<0.000000e+00> : vector<128x64xf32>
    %74 = tpu.matmul %71, %73, %cst_23 {dimension_numbers = #tpu.dot_dimension_numbers<[1], [0], [0], [1], [0, 0, 1, 1], [], []>} : vector<128x64xf32>, vector<64x64xf32>, vector<128x64xf32> -> vector<128x64xf32>
    %cst_24 = arith.constant 1.000000e+00 : f32
    %75 = vector.broadcast %cst_24 : f32 to vector<128x1xf32>
    %76 = arith.divf %75, %72 : vector<128x1xf32>
    %c0_25 = arith.constant 0 : index
    %c0_26 = arith.constant 0 : index
    %77 = vector.load %arg6[%c0_25, %c0_26] : memref<128x32xf32, #tpu.memory_space<vmem>>, vector<128x32xf32>
    %78 = vector.broadcast %76 : vector<128x1xf32> to vector<128x64xf32>
    %79 = arith.mulf %74, %78 : vector<128x64xf32>
    %c0_27 = arith.constant 0 : index
    %c0_28 = arith.constant 0 : index
    %80 = vector.load %arg7[%c0_27, %c0_28] : memref<32x64xf32, #tpu.memory_space<vmem>>, vector<32x64xf32>
    %cst_29 = arith.constant dense<0.000000e+00> : vector<128x64xf32>
    %81 = tpu.matmul %77, %80, %cst_29 {dimension_numbers = #tpu.dot_dimension_numbers<[1], [0], [0], [1], [0, 0, 1, 1], [], []>} : vector<128x32xf32>, vector<32x64xf32>, vector<128x64xf32> -> vector<128x64xf32>
    %82 = arith.addf %79, %81 : vector<128x64xf32>
    %c0_30 = arith.constant 0 : index
    %c0_31 = arith.constant 0 : index
    %83 = vector.load %arg8[%c0_30, %c0_31] : memref<1x64xf32, #tpu.memory_space<vmem>>, vector<1x64xf32>
    %84 = vector.broadcast %83 : vector<1x64xf32> to vector<128x64xf32>
    %85 = arith.addf %82, %84 : vector<128x64xf32>
    %cst_32 = arith.constant 0.000000e+00 : f32
    %86 = vector.broadcast %cst_32 : f32 to vector<128x64xf32>
    %87 = arith.maximumf %85, %86 : vector<128x64xf32>
    %c0_33 = arith.constant 0 : index
    %c0_34 = arith.constant 0 : index
    %88 = vector.load %arg9[%c0_33, %c0_34] : memref<64x128xf32, #tpu.memory_space<vmem>>, vector<64x128xf32>
    %cst_35 = arith.constant dense<0.000000e+00> : vector<128x128xf32>
    %89 = tpu.matmul %87, %88, %cst_35 {dimension_numbers = #tpu.dot_dimension_numbers<[1], [0], [0], [1], [0, 0, 1, 1], [], []>} : vector<128x64xf32>, vector<64x128xf32>, vector<128x128xf32> -> vector<128x128xf32>
    %c0_36 = arith.constant 0 : index
    %c0_37 = arith.constant 0 : index
    %90 = vector.load %arg10[%c0_36, %c0_37] : memref<1x128xf32, #tpu.memory_space<vmem>>, vector<1x128xf32>
    %91 = vector.broadcast %90 : vector<1x128xf32> to vector<128x128xf32>
    %92 = arith.addf %89, %91 : vector<128x128xf32>
    %cst_38 = arith.constant 0.000000e+00 : f32
    %93 = vector.broadcast %cst_38 : f32 to vector<128x128xf32>
    %94 = arith.maximumf %92, %93 : vector<128x128xf32>
    %c0_39 = arith.constant 0 : index
    %c0_40 = arith.constant 0 : index
    %95 = vector.load %arg11[%c0_39, %c0_40] : memref<128x128xf32, #tpu.memory_space<vmem>>, vector<128x128xf32>
    tpu.vector_store %arg11[%c0_39, %c0_40], %94 {strides = array<i32>} : memref<128x128xf32, #tpu.memory_space<vmem>>, vector<128x128xf32>,
    return
  }
  func.func @transform_0(%arg0: i32) -> (i32, i32) {
    %c0_i32 = arith.constant 0 : i32
    %c0_i32_0 = arith.constant 0 : i32
    return %arg0, %c0_i32 : i32, i32
  }
  func.func @transform_1(%arg0: i32) -> (i32, i32) {
    %c0_i32 = arith.constant 0 : i32
    %c0_i32_0 = arith.constant 0 : i32
    return %arg0, %c0_i32 : i32, i32
  }
  func.func @transform_2(%arg0: i32) -> (i32, i32) {
    %c0_i32 = arith.constant 0 : i32
    %c0_i32_0 = arith.constant 0 : i32
    %c0_i32_1 = arith.constant 0 : i32
    return %c0_i32, %c0_i32_0 : i32, i32
  }
  func.func @transform_3(%arg0: i32) -> (i32, i32) {
    %c0_i32 = arith.constant 0 : i32
    %c0_i32_0 = arith.constant 0 : i32
    %c0_i32_1 = arith.constant 0 : i32
    return %c0_i32, %c0_i32_0 : i32, i32
  }
  func.func @transform_4(%arg0: i32) -> (i32, i32) {
    %c0_i32 = arith.constant 0 : i32
    %c0_i32_0 = arith.constant 0 : i32
    %c0_i32_1 = arith.constant 0 : i32
    return %c0_i32, %c0_i32_0 : i32, i32
  }
  func.func @transform_5(%arg0: i32) -> (i32, i32) {
    %c0_i32 = arith.constant 0 : i32
    %c0_i32_0 = arith.constant 0 : i32
    return %arg0, %c0_i32 : i32, i32
  }
  func.func @transform_6(%arg0: i32) -> (i32, i32) {
    %c0_i32 = arith.constant 0 : i32
    %c0_i32_0 = arith.constant 0 : i32
    %c0_i32_1 = arith.constant 0 : i32
    return %c0_i32, %c0_i32_0 : i32, i32
  }
  func.func @transform_7(%arg0: i32) -> (i32, i32) {
    %c0_i32 = arith.constant 0 : i32
    %c0_i32_0 = arith.constant 0 : i32
    %c0_i32_1 = arith.constant 0 : i32
    return %c0_i32, %c0_i32_0 : i32, i32
  }
  func.func @transform_8(%arg0: i32) -> (i32, i32) {
    %c0_i32 = arith.constant 0 : i32
    %c0_i32_0 = arith.constant 0 : i32
    %c0_i32_1 = arith.constant 0 : i32
    return %c0_i32, %c0_i32_0 : i32, i32
  }
  func.func @transform_9(%arg0: i32) -> (i32, i32) {
    %c0_i32 = arith.constant 0 : i32
    %c0_i32_0 = arith.constant 0 : i32
    %c0_i32_1 = arith.constant 0 : i32
    return %c0_i32, %c0_i32_0 : i32, i32
  }
  func.func @transform_10(%arg0: i32) -> (i32, i32) {
    %c0_i32 = arith.constant 0 : i32
    %c0_i32_0 = arith.constant 0 : i32
    return %arg0, %c0_i32 : i32, i32
  }
}

module attributes {stable_mosaic.version = 11 : i64} {
  func.func @_fp_kernel(%arg0: i32, %arg1: memref<128x3xf32, #tpu.memory_space<vmem>>, %arg2: memref<128x1xi32, #tpu.memory_space<vmem>>, %arg3: memref<3x64xf32, #tpu.memory_space<vmem>>, %arg4: memref<1x64xi32, #tpu.memory_space<vmem>>, %arg5: memref<64x64xf32, #tpu.memory_space<vmem>>, %arg6: memref<128x32xf32, #tpu.memory_space<vmem>>, %arg7: memref<32x64xf32, #tpu.memory_space<vmem>>, %arg8: memref<1x64xf32, #tpu.memory_space<vmem>>, %arg9: memref<64x128xf32, #tpu.memory_space<vmem>>, %arg10: memref<1x128xf32, #tpu.memory_space<vmem>>, %arg11: memref<128x128xf32, #tpu.memory_space<vmem>>) attributes {dimension_semantics = [#tpu.dimension_semantics<parallel>], iteration_bounds = array<i64: 2>, scalar_prefetch = 0 : i64, scratch_operands = 0 : i64, tpu.core_type = #tpu.core_type<tc>, window_params = [{transform_indices = @transform_0, window_bounds = array<i64: 128, 3>}, {transform_indices = @transform_1, window_bounds = array<i64: 128, 1>}, {pipeline_mode = #tpu.pipeline_mode<synchronous>, transform_indices = @transform_2, window_bounds = array<i64: 3, 64>}, {pipeline_mode = #tpu.pipeline_mode<synchronous>, transform_indices = @transform_3, window_bounds = array<i64: 1, 64>}, {pipeline_mode = #tpu.pipeline_mode<synchronous>, transform_indices = @transform_4, window_bounds = array<i64: 64, 64>}, {transform_indices = @transform_5, window_bounds = array<i64: 128, 32>}, {pipeline_mode = #tpu.pipeline_mode<synchronous>, transform_indices = @transform_6, window_bounds = array<i64: 32, 64>}, {pipeline_mode = #tpu.pipeline_mode<synchronous>, transform_indices = @transform_7, window_bounds = array<i64: 1, 64>}, {pipeline_mode = #tpu.pipeline_mode<synchronous>, transform_indices = @transform_8, window_bounds = array<i64: 64, 128>}, {pipeline_mode = #tpu.pipeline_mode<synchronous>, transform_indices = @transform_9, window_bounds = array<i64: 1, 128>}, {transform_indices = @transform_10, window_bounds = array<i64: 128, 128>}]} {
    %c0 = arith.constant 0 : index
    %c0_0 = arith.constant 0 : index
    %0 = vector.load %arg1[%c0, %c0_0] : memref<128x3xf32, #tpu.memory_space<vmem>>, vector<128x3xf32>
    %c0_1 = arith.constant 0 : index
    %c0_2 = arith.constant 0 : index
    %1 = vector.load %arg3[%c0_1, %c0_2] : memref<3x64xf32, #tpu.memory_space<vmem>>, vector<3x64xf32>
    %cst = arith.constant 0.000000e+00 : f32
    %2 = vector.broadcast %cst : f32 to vector<128x64xf32>
    %3 = vector.extract_strided_slice %0 {offsets = [0, 0], sizes = [128, 1], strides = [1, 1]} : vector<128x3xf32> to vector<128x1xf32>
    %4 = vector.extract_strided_slice %1 {offsets = [0, 0], sizes = [1, 64], strides = [1, 1]} : vector<3x64xf32> to vector<1x64xf32>
    %5 = vector.broadcast %3 : vector<128x1xf32> to vector<128x64xf32>
    %6 = vector.broadcast %4 : vector<1x64xf32> to vector<128x64xf32>
    %7 = arith.subf %5, %6 : vector<128x64xf32>
    %8 = arith.mulf %7, %7 : vector<128x64xf32>
    %9 = arith.addf %2, %8 : vector<128x64xf32>
    %10 = vector.extract_strided_slice %0 {offsets = [0, 1], sizes = [128, 1], strides = [1, 1]} : vector<128x3xf32> to vector<128x1xf32>
    %11 = vector.extract_strided_slice %1 {offsets = [1, 0], sizes = [1, 64], strides = [1, 1]} : vector<3x64xf32> to vector<1x64xf32>
    %12 = vector.broadcast %10 : vector<128x1xf32> to vector<128x64xf32>
    %13 = vector.broadcast %11 : vector<1x64xf32> to vector<128x64xf32>
    %14 = arith.subf %12, %13 : vector<128x64xf32>
    %15 = arith.mulf %14, %14 : vector<128x64xf32>
    %16 = arith.addf %9, %15 : vector<128x64xf32>
    %17 = vector.extract_strided_slice %0 {offsets = [0, 2], sizes = [128, 1], strides = [1, 1]} : vector<128x3xf32> to vector<128x1xf32>
    %18 = vector.extract_strided_slice %1 {offsets = [2, 0], sizes = [1, 64], strides = [1, 1]} : vector<3x64xf32> to vector<1x64xf32>
    %19 = vector.broadcast %17 : vector<128x1xf32> to vector<128x64xf32>
    %20 = vector.broadcast %18 : vector<1x64xf32> to vector<128x64xf32>
    %21 = arith.subf %19, %20 : vector<128x64xf32>
    %22 = arith.mulf %21, %21 : vector<128x64xf32>
    %23 = arith.addf %16, %22 : vector<128x64xf32>
    %c0_3 = arith.constant 0 : index
    %c0_4 = arith.constant 0 : index
    %24 = vector.load %arg2[%c0_3, %c0_4] : memref<128x1xi32, #tpu.memory_space<vmem>>, vector<128x1xi32>
    %c0_5 = arith.constant 0 : index
    %c0_6 = arith.constant 0 : index
    %25 = vector.load %arg4[%c0_5, %c0_6] : memref<1x64xi32, #tpu.memory_space<vmem>>, vector<1x64xi32>
    %26 = vector.broadcast %24 : vector<128x1xi32> to vector<128x64xi32>
    %27 = vector.broadcast %25 : vector<1x64xi32> to vector<128x64xi32>
    %28 = arith.cmpi eq, %26, %27 : vector<128x64xi32>
    %cst_7 = arith.constant 0x7F800000 : f32
    %29 = vector.broadcast %cst_7 : f32 to vector<128x64xf32>
    %30 = arith.select %28, %23, %29 : vector<128x64xi1>, vector<128x64xf32>
    %cst_8 = arith.constant 0.000000e+00 : f32
    %31 = vector.broadcast %cst_8 : f32 to vector<128x64xf32>
    %cst_9 = arith.constant 0.000000e+00 : f32
    %32 = vector.broadcast %cst_9 : f32 to vector<128x1xf32>
    %cst_10 = arith.constant dense<0x7F800000> : vector<128xf32>
    %33 = vector.multi_reduction <minimumf>, %30, %cst_10 [1] : vector<128x64xf32> to vector<128xf32>
    %34 = vector.shape_cast %33 : vector<128xf32> to vector<128x1xf32>
    %35 = vector.broadcast %34 : vector<128x1xf32> to vector<128x64xf32>
    %36 = arith.cmpf oeq, %30, %35 : vector<128x64xf32>
    %cst_11 = arith.constant 1.000000e-16 : f32
    %37 = vector.broadcast %cst_11 : f32 to vector<128x1xf32>
    %38 = arith.maximumf %34, %37 : vector<128x1xf32>
    %cst_12 = arith.constant 1.000000e+00 : f32
    %39 = vector.broadcast %cst_12 : f32 to vector<128x1xf32>
    %40 = arith.divf %39, %38 : vector<128x1xf32>
    %41 = vector.shape_cast %40 : vector<128x1xf32> to vector<128x1xf32>
    %42 = vector.broadcast %41 : vector<128x1xf32> to vector<128x64xf32>
    %43 = arith.select %36, %42, %31 : vector<128x64xi1>, vector<128x64xf32>
    %44 = arith.addf %32, %40 : vector<128x1xf32>
    %cst_13 = arith.constant 0x7F800000 : f32
    %45 = vector.broadcast %cst_13 : f32 to vector<128x64xf32>
    %46 = arith.select %36, %45, %30 : vector<128x64xi1>, vector<128x64xf32>
    %cst_14 = arith.constant dense<0x7F800000> : vector<128xf32>
    %47 = vector.multi_reduction <minimumf>, %46, %cst_14 [1] : vector<128x64xf32> to vector<128xf32>
    %48 = vector.shape_cast %47 : vector<128xf32> to vector<128x1xf32>
    %49 = vector.broadcast %48 : vector<128x1xf32> to vector<128x64xf32>
    %50 = arith.cmpf oeq, %46, %49 : vector<128x64xf32>
    %cst_15 = arith.constant 1.000000e-16 : f32
    %51 = vector.broadcast %cst_15 : f32 to vector<128x1xf32>
    %52 = arith.maximumf %48, %51 : vector<128x1xf32>
    %cst_16 = arith.constant 1.000000e+00 : f32
    %53 = vector.broadcast %cst_16 : f32 to vector<128x1xf32>
    %54 = arith.divf %53, %52 : vector<128x1xf32>
    %55 = vector.shape_cast %54 : vector<128x1xf32> to vector<128x1xf32>
    %56 = vector.broadcast %55 : vector<128x1xf32> to vector<128x64xf32>
    %57 = arith.select %50, %56, %43 : vector<128x64xi1>, vector<128x64xf32>
    %58 = arith.addf %44, %54 : vector<128x1xf32>
    %cst_17 = arith.constant 0x7F800000 : f32
    %59 = vector.broadcast %cst_17 : f32 to vector<128x64xf32>
    %60 = arith.select %50, %59, %46 : vector<128x64xi1>, vector<128x64xf32>
    %cst_18 = arith.constant dense<0x7F800000> : vector<128xf32>
    %61 = vector.multi_reduction <minimumf>, %60, %cst_18 [1] : vector<128x64xf32> to vector<128xf32>
    %62 = vector.shape_cast %61 : vector<128xf32> to vector<128x1xf32>
    %63 = vector.broadcast %62 : vector<128x1xf32> to vector<128x64xf32>
    %64 = arith.cmpf oeq, %60, %63 : vector<128x64xf32>
    %cst_19 = arith.constant 1.000000e-16 : f32
    %65 = vector.broadcast %cst_19 : f32 to vector<128x1xf32>
    %66 = arith.maximumf %62, %65 : vector<128x1xf32>
    %cst_20 = arith.constant 1.000000e+00 : f32
    %67 = vector.broadcast %cst_20 : f32 to vector<128x1xf32>
    %68 = arith.divf %67, %66 : vector<128x1xf32>
    %69 = vector.shape_cast %68 : vector<128x1xf32> to vector<128x1xf32>
    %70 = vector.broadcast %69 : vector<128x1xf32> to vector<128x64xf32>
    %71 = arith.select %64, %70, %57 : vector<128x64xi1>, vector<128x64xf32>
    %72 = arith.addf %58, %68 : vector<128x1xf32>
    %c0_21 = arith.constant 0 : index
    %c0_22 = arith.constant 0 : index
    %73 = vector.load %arg5[%c0_21, %c0_22] : memref<64x64xf32, #tpu.memory_space<vmem>>, vector<64x64xf32>
    %cst_23 = arith.constant dense<0.000000e+00> : vector<128x64xf32>
    %74 = tpu.matmul %71, %73, %cst_23 {dimension_numbers = #tpu.dot_dimension_numbers<[1], [0], [0], [1], [0, 0, 1, 1], [], []>} : vector<128x64xf32>, vector<64x64xf32>, vector<128x64xf32> -> vector<128x64xf32>
    %cst_24 = arith.constant 1.000000e+00 : f32
    %75 = vector.broadcast %cst_24 : f32 to vector<128x1xf32>
    %76 = arith.divf %75, %72 : vector<128x1xf32>
    %c0_25 = arith.constant 0 : index
    %c0_26 = arith.constant 0 : index
    %77 = vector.load %arg6[%c0_25, %c0_26] : memref<128x32xf32, #tpu.memory_space<vmem>>, vector<128x32xf32>
    %78 = vector.broadcast %76 : vector<128x1xf32> to vector<128x64xf32>
    %79 = arith.mulf %74, %78 : vector<128x64xf32>
    %c0_27 = arith.constant 0 : index
    %c0_28 = arith.constant 0 : index
    %80 = vector.load %arg7[%c0_27, %c0_28] : memref<32x64xf32, #tpu.memory_space<vmem>>, vector<32x64xf32>
    %cst_29 = arith.constant dense<0.000000e+00> : vector<128x64xf32>
    %81 = tpu.matmul %77, %80, %cst_29 {dimension_numbers = #tpu.dot_dimension_numbers<[1], [0], [0], [1], [0, 0, 1, 1], [], []>} : vector<128x32xf32>, vector<32x64xf32>, vector<128x64xf32> -> vector<128x64xf32>
    %82 = arith.addf %79, %81 : vector<128x64xf32>
    %c0_30 = arith.constant 0 : index
    %c0_31 = arith.constant 0 : index
    %83 = vector.load %arg8[%c0_30, %c0_31] : memref<1x64xf32, #tpu.memory_space<vmem>>, vector<1x64xf32>
    %84 = vector.broadcast %83 : vector<1x64xf32> to vector<128x64xf32>
    %85 = arith.addf %82, %84 : vector<128x64xf32>
    %cst_32 = arith.constant 0.000000e+00 : f32
    %86 = vector.broadcast %cst_32 : f32 to vector<128x64xf32>
    %87 = arith.maximumf %85, %86 : vector<128x64xf32>
    %c0_33 = arith.constant 0 : index
    %c0_34 = arith.constant 0 : index
    %88 = vector.load %arg9[%c0_33, %c0_34] : memref<64x128xf32, #tpu.memory_space<vmem>>, vector<64x128xf32>
    %cst_35 = arith.constant dense<0.000000e+00> : vector<128x128xf32>
    %89 = tpu.matmul %87, %88, %cst_35 {dimension_numbers = #tpu.dot_dimension_numbers<[1], [0], [0], [1], [0, 0, 1, 1], [], []>} : vector<128x64xf32>, vector<64x128xf32>, vector<128x128xf32> -> vector<128x128xf32>
    %c0_36 = arith.constant 0 : index
    %c0_37 = arith.constant 0 : index
    %90 = vector.load %arg10[%c0_36, %c0_37] : memref<1x128xf32, #tpu.memory_space<vmem>>, vector<1x128xf32>
    %91 = vector.broadcast %90 : vector<1x128xf32> to vector<128x128xf32>
    %92 = arith.addf %89, %91 : vector<128x128xf32>
    %cst_38 = arith.constant 0.000000e+00 : f32
    %93 = vector.broadcast %cst_38 : f32 to vector<128x128xf32>
    %94 = arith.maximumf %92, %93 : vector<128x128xf32>
    %c0_39 = arith.constant 0 : index
    %c0_40 = arith.constant 0 : index
    %95 = vector.load %arg11[%c0_39, %c0_40] : memref<128x128xf32, #tpu.memory_space<vmem>>, vector<128x128xf32>
    tpu.vector_store %arg11[%c0_39, %c0_40], %94 {strides = array<i32>} : memref<128x128xf32, #tpu.memory_space<vmem>>, vector<128x128xf32>,
    return
  }
  func.func @transform_0(%arg0: i32) -> (i32, i32) {
    %c0_i32 = arith.constant 0 : i32
    %c0_i32_0 = arith.constant 0 : i32
    return %arg0, %c0_i32 : i32, i32
  }
  func.func @transform_1(%arg0: i32) -> (i32, i32) {
    %c0_i32 = arith.constant 0 : i32
    %c0_i32_0 = arith.constant 0 : i32
    return %arg0, %c0_i32 : i32, i32
  }
  func.func @transform_2(%arg0: i32) -> (i32, i32) {
    %c0_i32 = arith.constant 0 : i32
    %c0_i32_0 = arith.constant 0 : i32
    %c0_i32_1 = arith.constant 0 : i32
    return %c0_i32, %c0_i32_0 : i32, i32
  }
  func.func @transform_3(%arg0: i32) -> (i32, i32) {
    %c0_i32 = arith.constant 0 : i32
    %c0_i32_0 = arith.constant 0 : i32
    %c0_i32_1 = arith.constant 0 : i32
    return %c0_i32, %c0_i32_0 : i32, i32
  }
  func.func @transform_4(%arg0: i32) -> (i32, i32) {
    %c0_i32 = arith.constant 0 : i32
    %c0_i32_0 = arith.constant 0 : i32
    %c0_i32_1 = arith.constant 0 : i32
    return %c0_i32, %c0_i32_0 : i32, i32
  }
  func.func @transform_5(%arg0: i32) -> (i32, i32) {
    %c0_i32 = arith.constant 0 : i32
    %c0_i32_0 = arith.constant 0 : i32
    return %arg0, %c0_i32 : i32, i32
  }
  func.func @transform_6(%arg0: i32) -> (i32, i32) {
    %c0_i32 = arith.constant 0 : i32
    %c0_i32_0 = arith.constant 0 : i32
    %c0_i32_1 = arith.constant 0 : i32
    return %c0_i32, %c0_i32_0 : i32, i32
  }
  func.func @transform_7(%arg0: i32) -> (i32, i32) {
    %c0_i32 = arith.constant 0 : i32
    %c0_i32_0 = arith.constant 0 : i32
    %c0_i32_1 = arith.constant 0 : i32
    return %c0_i32, %c0_i32_0 : i32, i32
  }
  func.func @transform_8(%arg0: i32) -> (i32, i32) {
    %c0_i32 = arith.constant 0 : i32
    %c0_i32_0 = arith.constant 0 : i32
    %c0_i32_1 = arith.constant 0 : i32
    return %c0_i32, %c0_i32_0 : i32, i32
  }
  func.func @transform_9(%arg0: i32) -> (i32, i32) {
    %c0_i32 = arith.constant 0 : i32
    %c0_i32_0 = arith.constant 0 : i32
    %c0_i32_1 = arith.constant 0 : i32
    return %c0_i32, %c0_i32_0 : i32, i32
  }
  func.func @transform_10(%arg0: i32) -> (i32, i32) {
    %c0_i32 = arith.constant 0 : i32
    %c0_i32_0 = arith.constant 0 : i32
    return %arg0, %c0_i32 : i32, i32
  }
}

</mosaic_0001>

<llo_original>
// kernel: tpu_custom_call.1
$region0: #{tpu_custom_call.1}
  #allocation0 [shape = 'u32[]', space=smem, size = 0x4, offset = 0x4, fixed_abs, tag = 'smem constant byte address 0x4 - core index']
  #allocation1 [shape = 'u32[144,128]{1,0:T(1,128)}', space=vmem, size = 0x12000, scoped, tag = 'internal scratch']
  %s0 = inlined_call_operand.vmem [shape: f32[256,3], index: 0, kind: input, shape index: {}]
  %s1 = inlined_call_operand.vmem [shape: s32[256,1], index: 1, kind: input, shape index: {}]
  %s2 = inlined_call_operand.vmem [shape: f32[3,64], index: 2, kind: input, shape index: {}]
  %s3 = inlined_call_operand.vmem [shape: s32[1,64], index: 3, kind: input, shape index: {}]
  %s4 = inlined_call_operand.vmem [shape: f32[64,64], index: 4, kind: input, shape index: {}]
  %s5 = inlined_call_operand.vmem [shape: f32[256,32], index: 5, kind: input, shape index: {}]
  %s6 = inlined_call_operand.vmem [shape: f32[32,64], index: 6, kind: input, shape index: {}]
  %s7 = inlined_call_operand.vmem [shape: f32[1,64], index: 7, kind: input, shape index: {}]
  %s8 = inlined_call_operand.vmem [shape: f32[64,128], index: 8, kind: input, shape index: {}]
  %s9 = inlined_call_operand.vmem [shape: f32[1,128], index: 9, kind: input, shape index: {}]
  %s10 = inlined_call_operand.hbm [shape: f32[256,128], index: 10, kind: output, shape index: {}]
  %s11 = sld [smem:[#allocation0]]
  $region73: #{tpu_custom_call.1} parent=0
    _
  %s13 = ssub.s32 1, %s11
  %s14 = scalar_select 0, %s13, %s11
  $region1: #{tpu_custom_call.1} parent=0
    #allocation2 [shape = 'u8[131072]{0}', space=vmem, size = 0x20000, scoped, tag = 'output window, operand 0']
    #allocation3 [shape = 's32[2]{0}', space=sflag, size = 0x8, scoped, tag = 'scoped memory for tpu_custom_call.1']
    %15 = vsyncpa [#allocation3], 0
    %s16 = scalar_lea.sflag [#allocation3], 1
    %17 = vsyncpa %s16, 0
    loop: start=0, step=1, limit=4
    $region2: #{tpu_custom_call.1} parent=1 // loop_pre_header
      _
    $region3: #{tpu_custom_call.1} parent=1 // loop_header
      %s19 = sphi 0, %s23
      %p20 = scmp.ge.s32.totalorder %s19, 4
      %s29 = sphi 0, %s31
      %s32 = sphi 0, %s29
      %s33 = sphi 0, %s32
      %s49 = sphi 0, %s33
      %s55 = sphi 0, %s57
      %s58 = sphi 0, %s55
      %s59 = sphi 0, %s58
      %s75 = sphi 0, %s59
      %s79 = sphi 0, %s79
      %s81 = sphi 0, %s79
      %s82 = sphi 0, %s81
      %s96 = sphi 0, %s82
      %s100 = sphi 0, %s100
      %s102 = sphi 0, %s100
      %s103 = sphi 0, %s102
      %s117 = sphi 0, %s103
      %s121 = sphi 0, %s121
      %s123 = sphi 0, %s121
      %s124 = sphi 0, %s123
      %s138 = sphi 0, %s124
      %s144 = sphi 0, %s146
      %s147 = sphi 0, %s144
      %s148 = sphi 0, %s147
      %s164 = sphi 0, %s148
      %s168 = sphi 0, %s168
      %s170 = sphi 0, %s168
      %s171 = sphi 0, %s170
      %s185 = sphi 0, %s171
      %s189 = sphi 0, %s189
      %s191 = sphi 0, %s189
      %s192 = sphi 0, %s191
      %s206 = sphi 0, %s192
      %s210 = sphi 0, %s210
      %s212 = sphi 0, %s210
      %s213 = sphi 0, %s212
      %s227 = sphi 0, %s213
      %s231 = sphi 0, %s231
      %s233 = sphi 0, %s231
      %s234 = sphi 0, %s233
      %s248 = sphi 0, %s234
      %s254 = sphi 0, %s256
      %s257 = sphi 0, %s254
      %s258 = sphi 0, %s257
      %s274 = sphi 0, %s258
    $region4: #{tpu_custom_call.1} parent=1 // loop_header_branch
      %22 = sbr.rel (%p20) target = $region8
    $region5: #{tpu_custom_call.1} parent=1 // loop_body
      %s24 = ssub.s32 %s19, 1
      %s25 = ssub.s32 %s19, 2
      %s26 = sadd.s32 %s19, 1
      %s27 = ssub.s32 %s19, %s26
      %p28 = scmp.eq.s32.totalorder %s27, 0
      %s30 = sadd.s32 %s29, 1
      %s31 = scalar_select %p28, %s29, %s30
      %p34 = pneg %p28
      %p35 = scmp.eq.s32.totalorder %s19, 1
      %p36 = por %p34, %p35
      %p37 = scmp.ne.s32.totalorder %s29, %s32
      %p38 = scmp.eq.s32.totalorder %s19, 0
      %p39 = por %p37, %p38
      %p40 = scmp.ne.s32.totalorder %s29, %s32
      %p41 = scmp.eq.s32.totalorder %s24, 1
      %p42 = por %p40, %p41
      %p43 = scmp.ne.s32.totalorder %s32, %s33
      %p44 = scmp.eq.s32.totalorder %s24, 0
      %p45 = por %p43, %p44
      %p46 = scmp.ne.s32.totalorder %s32, %s33
      %p47 = scmp.eq.s32.totalorder %s25, 1
      %p48 = por %p46, %p47
      %p50 = scmp.ne.s32.totalorder %s33, %s49
      %p51 = scmp.eq.s32.totalorder %s25, 0
      %p52 = por %p50, %p51
      %s53 = ssub.s32 %s19, %s26
      %p54 = scmp.eq.s32.totalorder %s53, 0
      %s56 = sadd.s32 %s55, 1
      %s57 = scalar_select %p54, %s55, %s56
      %p60 = pneg %p54
      %p61 = scmp.eq.s32.totalorder %s19, 1
      %p62 = por %p60, %p61
      %p63 = scmp.ne.s32.totalorder %s55, %s58
      %p64 = scmp.eq.s32.totalorder %s19, 0
      %p65 = por %p63, %p64
      %p66 = scmp.ne.s32.totalorder %s55, %s58
      %p67 = scmp.eq.s32.totalorder %s24, 1
      %p68 = por %p66, %p67
      %p69 = scmp.ne.s32.totalorder %s58, %s59
      %p70 = scmp.eq.s32.totalorder %s24, 0
      %p71 = por %p69, %p70
      %p72 = scmp.ne.s32.totalorder %s58, %s59
      %p73 = scmp.eq.s32.totalorder %s25, 1
      %p74 = por %p72, %p73
      %p76 = scmp.ne.s32.totalorder %s59, %s75
      %p77 = scmp.eq.s32.totalorder %s25, 0
      %p78 = por %p76, %p77
      %s80 = sadd.s32 %s79, 1
      %p83 = scmp.eq.s32.totalorder %s19, 1
      %p84 = scmp.ne.s32.totalorder %s79, %s81
      %p85 = scmp.eq.s32.totalorder %s19, 0
      %p86 = por %p84, %p85
      %p87 = scmp.ne.s32.totalorder %s79, %s81
      %p88 = scmp.eq.s32.totalorder %s24, 1
      %p89 = por %p87, %p88
      %p90 = scmp.ne.s32.totalorder %s81, %s82
      %p91 = scmp.eq.s32.totalorder %s24, 0
      %p92 = por %p90, %p91
      %p93 = scmp.ne.s32.totalorder %s81, %s82
      %p94 = scmp.eq.s32.totalorder %s25, 1
      %p95 = por %p93, %p94
      %p97 = scmp.ne.s32.totalorder %s82, %s96
      %p98 = scmp.eq.s32.totalorder %s25, 0
      %p99 = por %p97, %p98
      %s101 = sadd.s32 %s100, 1
      %p104 = scmp.eq.s32.totalorder %s19, 1
      %p105 = scmp.ne.s32.totalorder %s100, %s102
      %p106 = scmp.eq.s32.totalorder %s19, 0
      %p107 = por %p105, %p106
      %p108 = scmp.ne.s32.totalorder %s100, %s102
      %p109 = scmp.eq.s32.totalorder %s24, 1
      %p110 = por %p108, %p109
      %p111 = scmp.ne.s32.totalorder %s102, %s103
      %p112 = scmp.eq.s32.totalorder %s24, 0
      %p113 = por %p111, %p112
      %p114 = scmp.ne.s32.totalorder %s102, %s103
      %p115 = scmp.eq.s32.totalorder %s25, 1
      %p116 = por %p114, %p115
      %p118 = scmp.ne.s32.totalorder %s103, %s117
      %p119 = scmp.eq.s32.totalorder %s25, 0
      %p120 = por %p118, %p119
      %s122 = sadd.s32 %s121, 1
      %p125 = scmp.eq.s32.totalorder %s19, 1
      %p126 = scmp.ne.s32.totalorder %s121, %s123
      %p127 = scmp.eq.s32.totalorder %s19, 0
      %p128 = por %p126, %p127
      %p129 = scmp.ne.s32.totalorder %s121, %s123
      %p130 = scmp.eq.s32.totalorder %s24, 1
      %p131 = por %p129, %p130
      %p132 = scmp.ne.s32.totalorder %s123, %s124
      %p133 = scmp.eq.s32.totalorder %s24, 0
      %p134 = por %p132, %p133
      %p135 = scmp.ne.s32.totalorder %s123, %s124
      %p136 = scmp.eq.s32.totalorder %s25, 1
      %p137 = por %p135, %p136
      %p139 = scmp.ne.s32.totalorder %s124, %s138
      %p140 = scmp.eq.s32.totalorder %s25, 0
      %p141 = por %p139, %p140
      %s142 = ssub.s32 %s19, %s26
      %p143 = scmp.eq.s32.totalorder %s142, 0
      %s145 = sadd.s32 %s144, 1
      %s146 = scalar_select %p143, %s144, %s145
      %p149 = pneg %p143
      %p150 = scmp.eq.s32.totalorder %s19, 1
      %p151 = por %p149, %p150
      %p152 = scmp.ne.s32.totalorder %s144, %s147
      %p153 = scmp.eq.s32.totalorder %s19, 0
      %p154 = por %p152, %p153
      %p155 = scmp.ne.s32.totalorder %s144, %s147
      %p156 = scmp.eq.s32.totalorder %s24, 1
      %p157 = por %p155, %p156
      %p158 = scmp.ne.s32.totalorder %s147, %s148
      %p159 = scmp.eq.s32.totalorder %s24, 0
      %p160 = por %p158, %p159
      %p161 = scmp.ne.s32.totalorder %s147, %s148
      %p162 = scmp.eq.s32.totalorder %s25, 1
      %p163 = por %p161, %p162
      %p165 = scmp.ne.s32.totalorder %s148, %s164
      %p166 = scmp.eq.s32.totalorder %s25, 0
      %p167 = por %p165, %p166
      %s169 = sadd.s32 %s168, 1
      %p172 = scmp.eq.s32.totalorder %s19, 1
      %p173 = scmp.ne.s32.totalorder %s168, %s170
      %p174 = scmp.eq.s32.totalorder %s19, 0
      %p175 = por %p173, %p174
      %p176 = scmp.ne.s32.totalorder %s168, %s170
      %p177 = scmp.eq.s32.totalorder %s24, 1
      %p178 = por %p176, %p177
      %p179 = scmp.ne.s32.totalorder %s170, %s171
      %p180 = scmp.eq.s32.totalorder %s24, 0
      %p181 = por %p179, %p180
      %p182 = scmp.ne.s32.totalorder %s170, %s171
      %p183 = scmp.eq.s32.totalorder %s25, 1
      %p184 = por %p182, %p183
      %p186 = scmp.ne.s32.totalorder %s171, %s185
      %p187 = scmp.eq.s32.totalorder %s25, 0
      %p188 = por %p186, %p187
      %s190 = sadd.s32 %s189, 1
      %p193 = scmp.eq.s32.totalorder %s19, 1
      %p194 = scmp.ne.s32.totalorder %s189, %s191
      %p195 = scmp.eq.s32.totalorder %s19, 0
      %p196 = por %p194, %p195
      %p197 = scmp.ne.s32.totalorder %s189, %s191
      %p198 = scmp.eq.s32.totalorder %s24, 1
      %p199 = por %p197, %p198
      %p200 = scmp.ne.s32.totalorder %s191, %s192
      %p201 = scmp.eq.s32.totalorder %s24, 0
      %p202 = por %p200, %p201
      %p203 = scmp.ne.s32.totalorder %s191, %s192
      %p204 = scmp.eq.s32.totalorder %s25, 1
      %p205 = por %p203, %p204
      %p207 = scmp.ne.s32.totalorder %s192, %s206
      %p208 = scmp.eq.s32.totalorder %s25, 0
      %p209 = por %p207, %p208
      %s211 = sadd.s32 %s210, 1
      %p214 = scmp.eq.s32.totalorder %s19, 1
      %p215 = scmp.ne.s32.totalorder %s210, %s212
      %p216 = scmp.eq.s32.totalorder %s19, 0
      %p217 = por %p215, %p216
      %p218 = scmp.ne.s32.totalorder %s210, %s212
      %p219 = scmp.eq.s32.totalorder %s24, 1
      %p220 = por %p218, %p219
      %p221 = scmp.ne.s32.totalorder %s212, %s213
      %p222 = scmp.eq.s32.totalorder %s24, 0
      %p223 = por %p221, %p222
      %p224 = scmp.ne.s32.totalorder %s212, %s213
      %p225 = scmp.eq.s32.totalorder %s25, 1
      %p226 = por %p224, %p225
      %p228 = scmp.ne.s32.totalorder %s213, %s227
      %p229 = scmp.eq.s32.totalorder %s25, 0
      %p230 = por %p228, %p229
      %s232 = sadd.s32 %s231, 1
      %p235 = scmp.eq.s32.totalorder %s19, 1
      %p236 = scmp.ne.s32.totalorder %s231, %s233
      %p237 = scmp.eq.s32.totalorder %s19, 0
      %p238 = por %p236, %p237
      %p239 = scmp.ne.s32.totalorder %s231, %s233
      %p240 = scmp.eq.s32.totalorder %s24, 1
      %p241 = por %p239, %p240
      %p242 = scmp.ne.s32.totalorder %s233, %s234
      %p243 = scmp.eq.s32.totalorder %s24, 0
      %p244 = por %p242, %p243
      %p245 = scmp.ne.s32.totalorder %s233, %s234
      %p246 = scmp.eq.s32.totalorder %s25, 1
      %p247 = por %p245, %p246
      %p249 = scmp.ne.s32.totalorder %s234, %s248
      %p250 = scmp.eq.s32.totalorder %s25, 0
      %p251 = por %p249, %p250
      %s252 = ssub.s32 %s19, %s26
      %p253 = scmp.eq.s32.totalorder %s252, 0
      %s255 = sadd.s32 %s254, 1
      %s256 = scalar_select %p253, %s254, %s255
      %p259 = pneg %p253
      %p260 = scmp.eq.s32.totalorder %s19, 1
      %p261 = por %p259, %p260
      %p262 = scmp.ne.s32.totalorder %s254, %s257
      %p263 = scmp.eq.s32.totalorder %s19, 0
      %p264 = por %p262, %p263
      %p265 = scmp.ne.s32.totalorder %s254, %s257
      %p266 = scmp.eq.s32.totalorder %s24, 1
      %p267 = por %p265, %p266
      %p268 = scmp.ne.s32.totalorder %s257, %s258
      %p269 = scmp.eq.s32.totalorder %s24, 0
      %p270 = por %p268, %p269
      %p271 = scmp.ne.s32.totalorder %s257, %s258
      %p272 = scmp.eq.s32.totalorder %s25, 1
      %p273 = por %p271, %p272
      %p275 = scmp.ne.s32.totalorder %s258, %s274
      %p276 = scmp.eq.s32.totalorder %s25, 0
      %p277 = por %p275, %p276
      %p278 = scmp.le.s32.totalorder 1, %s19
      %p279 = scmp.lt.s32.totalorder %s19, 3
      %p280 = pnand %p278, %p279
      %p281 = pneg %p280
      // Predicated region
      $region9: #{tpu_custom_call.1} parent=5 // pred_check
        _
      $region10: #{tpu_custom_call.1} parent=5 // pred_check_branch
        %283 = sbr.rel (%p280) target = $region12
      $region11: #{tpu_custom_call.1} parent=5 // pred_region
        %s284 = ssub.s32 %s19, 1
        // Predicated region
        $region13: #{tpu_custom_call.1} parent=11 // pred_check
          %p285 = pneg %p92
        $region14: #{tpu_custom_call.1} parent=11 // pred_check_branch
          %287 = sbr.rel (%p285) target = $region16
        $region15: #{tpu_custom_call.1} parent=11 // pred_region
          _
        $region16: #{tpu_custom_call.1} parent=11 // pred_fallthru
          _
        // Predicated region
        $region17: #{tpu_custom_call.1} parent=11 // pred_check
          %p288 = pneg %p113
        $region18: #{tpu_custom_call.1} parent=11 // pred_check_branch
          %290 = sbr.rel (%p288) target = $region20
        $region19: #{tpu_custom_call.1} parent=11 // pred_region
          _
        $region20: #{tpu_custom_call.1} parent=11 // pred_fallthru
          _
        // Predicated region
        $region21: #{tpu_custom_call.1} parent=11 // pred_check
          %p291 = pneg %p134
        $region22: #{tpu_custom_call.1} parent=11 // pred_check_branch
          %293 = sbr.rel (%p291) target = $region24
        $region23: #{tpu_custom_call.1} parent=11 // pred_region
          _
        $region24: #{tpu_custom_call.1} parent=11 // pred_fallthru
          _
        // Predicated region
        $region25: #{tpu_custom_call.1} parent=11 // pred_check
          %p294 = pneg %p181
        $region26: #{tpu_custom_call.1} parent=11 // pred_check_branch
          %296 = sbr.rel (%p294) target = $region28
        $region27: #{tpu_custom_call.1} parent=11 // pred_region
          _
        $region28: #{tpu_custom_call.1} parent=11 // pred_fallthru
          _
        // Predicated region
        $region29: #{tpu_custom_call.1} parent=11 // pred_check
          %p297 = pneg %p202
        $region30: #{tpu_custom_call.1} parent=11 // pred_check_branch
          %299 = sbr.rel (%p297) target = $region32
        $region31: #{tpu_custom_call.1} parent=11 // pred_region
          _
        $region32: #{tpu_custom_call.1} parent=11 // pred_fallthru
          _
        // Predicated region
        $region33: #{tpu_custom_call.1} parent=11 // pred_check
          %p300 = pneg %p223
        $region34: #{tpu_custom_call.1} parent=11 // pred_check_branch
          %302 = sbr.rel (%p300) target = $region36
        $region35: #{tpu_custom_call.1} parent=11 // pred_region
          _
        $region36: #{tpu_custom_call.1} parent=11 // pred_fallthru
          _
        // Predicated region
        $region37: #{tpu_custom_call.1} parent=11 // pred_check
          %p303 = pneg %p244
        $region38: #{tpu_custom_call.1} parent=11 // pred_check_branch
          %305 = sbr.rel (%p303) target = $region40
        $region39: #{tpu_custom_call.1} parent=11 // pred_region
          _
        $region40: #{tpu_custom_call.1} parent=11 // pred_fallthru
          _
      $region12: #{tpu_custom_call.1} parent=5 // pred_fallthru
        _
      %p306 = scmp.lt.s32.totalorder %s19, 2
      // Predicated region
      $region41: #{tpu_custom_call.1} parent=5 // pred_check
        %p307 = pneg %p306
      $region42: #{tpu_custom_call.1} parent=5 // pred_check_branch
        %309 = sbr.rel (%p307) target = $region44
      $region43: #{tpu_custom_call.1} parent=5 // pred_region
        // Predicated region
        $region45: #{tpu_custom_call.1} parent=43 // pred_check
          %p310 = pneg %p39
        $region46: #{tpu_custom_call.1} parent=43 // pred_check_branch
          %312 = sbr.rel (%p310) target = $region48
        $region47: #{tpu_custom_call.1} parent=43 // pred_region
          %s313 = smul.u32 16, %s19
          %p314 = scmp.lt.s32.totalorder %s313, 31
          %s315 = scalar_select %p314, %s313, 31
          %s316 = smul.addr %s315, 8
          %s317 = scalar_lea.vmem %s0, %s316
          %s318 = smul.u32 16, %s19
        $region48: #{tpu_custom_call.1} parent=43 // pred_fallthru
          _
        // Predicated region
        $region49: #{tpu_custom_call.1} parent=43 // pred_check
          %p319 = pneg %p65
        $region50: #{tpu_custom_call.1} parent=43 // pred_check_branch
          %321 = sbr.rel (%p319) target = $region52
        $region51: #{tpu_custom_call.1} parent=43 // pred_region
          %s322 = smul.u32 16, %s19
          %p323 = scmp.lt.s32.totalorder %s322, 31
          %s324 = scalar_select %p323, %s322, 31
          %s325 = smul.addr %s324, 8
          %s326 = scalar_lea.vmem %s1, %s325
          %s327 = smul.u32 16, %s19
        $region52: #{tpu_custom_call.1} parent=43 // pred_fallthru
          _
        // Predicated region
        $region53: #{tpu_custom_call.1} parent=43 // pred_check
          %p328 = pneg %p154
        $region54: #{tpu_custom_call.1} parent=43 // pred_check_branch
          %330 = sbr.rel (%p328) target = $region56
        $region55: #{tpu_custom_call.1} parent=43 // pred_region
          %s331 = smul.u32 16, %s19
          %p332 = scmp.lt.s32.totalorder %s331, 31
          %s333 = scalar_select %p332, %s331, 31
          %s334 = smul.addr %s333, 8
          %s335 = scalar_lea.vmem %s5, %s334
          %s336 = smul.u32 16, %s19
        $region56: #{tpu_custom_call.1} parent=43 // pred_fallthru
          _
      $region44: #{tpu_custom_call.1} parent=5 // pred_fallthru
        _
      %p337 = scmp.le.s32.totalorder 1, %s19
      %p338 = scmp.lt.s32.totalorder %s19, 3
      %p339 = pnand %p337, %p338
      %p340 = pneg %p339
      // Predicated region
      $region57: #{tpu_custom_call.1} parent=5 // pred_check
        _
      $region58: #{tpu_custom_call.1} parent=5 // pred_check_branch
        %342 = sbr.rel (%p339) target = $region60
      $region59: #{tpu_custom_call.1} parent=5 // pred_region
        %s343 = ssub.s32 %s19, 1
        %s344 = smul.u32 16, %s24
        %p345 = scmp.lt.s32.totalorder %s344, 31
        %s346 = scalar_select %p345, %s344, 31
        %s347 = smul.addr %s346, 8
        %s348 = scalar_lea.vmem %s0, %s347
        %p349 = pneg %p45
        %p350 = pneg %p42
        %s351 = smul.u32 16, %s24
        %p352 = scmp.lt.s32.totalorder %s351, 31
        %s353 = scalar_select %p352, %s351, 31
        %s354 = smul.addr %s353, 8
        %s355 = scalar_lea.vmem %s1, %s354
        %p356 = pneg %p71
        %p357 = pneg %p68
        %p358 = pneg %p92
        %p359 = pneg %p89
        %p360 = pneg %p113
        %p361 = pneg %p110
        %p362 = pneg %p134
        %p363 = pneg %p131
        %s364 = smul.u32 16, %s24
        %p365 = scmp.lt.s32.totalorder %s364, 31
        %s366 = scalar_select %p365, %s364, 31
        %s367 = smul.addr %s366, 8
        %s368 = scalar_lea.vmem %s5, %s367
        %p369 = pneg %p160
        %p370 = pneg %p157
        %p371 = pneg %p181
        %p372 = pneg %p178
        %p373 = pneg %p202
        %p374 = pneg %p199
        %p375 = pneg %p223
        %p376 = pneg %p220
        %p377 = pneg %p244
        %p378 = pneg %p241
        %p379 = pneg %p270
        %p380 = pneg %p267
        %s381 = sand.u32 %s257, 1
        %s382 = scalar_lea.sflag [#allocation3], %s381
        %s383 = sand.u32 %s257, 1
        %s384 = smul.addr %s383, 128
        %s385 = scalar_lea.vmem [#allocation2], %s384
        %s386 = smul.u32 16, %s24
        %p387 = scmp.lt.s32.totalorder %s386, 31
        %s388 = scalar_select %p387, %s386, 31
        %s389 = smul.addr %s388, 8
        %s390 = scalar_lea.vmem %s0, %s389
        %s391 = smul.u32 16, %s24
        %s392 = smul.u32 16, %s24
        %p393 = scmp.lt.s32.totalorder %s392, 31
        %s394 = scalar_select %p393, %s392, 31
        %s395 = smul.addr %s394, 8
        %s396 = scalar_lea.vmem %s1, %s395
        %s397 = smul.u32 16, %s24
        %s398 = smul.u32 16, %s24
        %p399 = scmp.lt.s32.totalorder %s398, 31
        %s400 = scalar_select %p399, %s398, 31
        %s401 = smul.addr %s400, 8
        %s402 = scalar_lea.vmem %s5, %s401
        %s403 = smul.u32 16, %s24
        %s404 = smul.u32 16, %s24
        %v405 = vld [vmem:[%s390] sm:$0xff]
        %v406 = vld [vmem:[%s390 + $0x8] sm:$0xff]
        %v407 = vld [vmem:[%s390 + $0x10] sm:$0xff]
        %v408 = vld [vmem:[%s390 + $0x18] sm:$0xff]
        %v409 = vld [vmem:[%s390 + $0x20] sm:$0xff]
        %v410 = vld [vmem:[%s390 + $0x28] sm:$0xff]
        %v411 = vld [vmem:[%s390 + $0x30] sm:$0xff]
        %v412 = vld [vmem:[%s390 + $0x38] sm:$0xff]
        %v413 = vld [vmem:[%s390 + $0x40] sm:$0xff]
        %v414 = vld [vmem:[%s390 + $0x48] sm:$0xff]
        %v415 = vld [vmem:[%s390 + $0x50] sm:$0xff]
        %v416 = vld [vmem:[%s390 + $0x58] sm:$0xff]
        %v417 = vld [vmem:[%s390 + $0x60] sm:$0xff]
        %v418 = vld [vmem:[%s390 + $0x68] sm:$0xff]
        %v419 = vld [vmem:[%s390 + $0x70] sm:$0xff]
        %v420 = vld [vmem:[%s390 + $0x78] sm:$0xff]
        %v421 = vld [vmem:[%s2] sm:$0x7]
        %423 = vset.pattern.permute.xlu0 0
        %424 = vperm.xlu0 %423, %v405
        %v425 = vpop.permute.xlu0 %424
        %428 = vset.pattern.permute.xlu0 0
        %429 = vperm.xlu0 %428, %v406
        %v430 = vpop.permute.xlu0 %429
        %433 = vset.pattern.permute.xlu0 0
        %434 = vperm.xlu0 %433, %v407
        %v435 = vpop.permute.xlu0 %434
        %438 = vset.pattern.permute.xlu0 0
        %439 = vperm.xlu0 %438, %v408
        %v440 = vpop.permute.xlu0 %439
        %443 = vset.pattern.permute.xlu0 0
        %444 = vperm.xlu0 %443, %v409
        %v445 = vpop.permute.xlu0 %444
        %448 = vset.pattern.permute.xlu0 0
        %449 = vperm.xlu0 %448, %v410
        %v450 = vpop.permute.xlu0 %449
        %453 = vset.pattern.permute.xlu0 0
        %454 = vperm.xlu0 %453, %v411
        %v455 = vpop.permute.xlu0 %454
        %458 = vset.pattern.permute.xlu0 0
        %459 = vperm.xlu0 %458, %v412
        %v460 = vpop.permute.xlu0 %459
        %463 = vset.pattern.permute.xlu0 0
        %464 = vperm.xlu0 %463, %v413
        %v465 = vpop.permute.xlu0 %464
        %468 = vset.pattern.permute.xlu0 0
        %469 = vperm.xlu0 %468, %v414
        %v470 = vpop.permute.xlu0 %469
        %473 = vset.pattern.permute.xlu0 0
        %474 = vperm.xlu0 %473, %v415
        %v475 = vpop.permute.xlu0 %474
        %478 = vset.pattern.permute.xlu0 0
        %479 = vperm.xlu0 %478, %v416
        %v480 = vpop.permute.xlu0 %479
        %483 = vset.pattern.permute.xlu0 0
        %484 = vperm.xlu0 %483, %v417
        %v485 = vpop.permute.xlu0 %484
        %488 = vset.pattern.permute.xlu0 0
        %489 = vperm.xlu0 %488, %v418
        %v490 = vpop.permute.xlu0 %489
        %493 = vset.pattern.permute.xlu0 0
        %494 = vperm.xlu0 %493, %v419
        %v495 = vpop.permute.xlu0 %494
        %498 = vset.pattern.permute.xlu0 0
        %499 = vperm.xlu0 %498, %v420
        %v500 = vpop.permute.xlu0 %499
        %v502 = vlaneseq
        %v503 = vshrl.u32 %v502, 7
        %v504 = vsub.s32 0, %v503
        %v505 = vrot.slane %v421, %v504
        %v506 = vsub.f32 %v425, %v505
        %v507 = vsub.f32 %v430, %v505
        %v508 = vsub.f32 %v435, %v505
        %v509 = vsub.f32 %v440, %v505
        %v510 = vsub.f32 %v445, %v505
        %v511 = vsub.f32 %v450, %v505
        %v512 = vsub.f32 %v455, %v505
        %v513 = vsub.f32 %v460, %v505
        %v514 = vsub.f32 %v465, %v505
        %v515 = vsub.f32 %v470, %v505
        %v516 = vsub.f32 %v475, %v505
        %v517 = vsub.f32 %v480, %v505
        %v518 = vsub.f32 %v485, %v505
        %v519 = vsub.f32 %v490, %v505
        %v520 = vsub.f32 %v495, %v505
        %v521 = vsub.f32 %v500, %v505
        %v522 = vmul.f32 %v506, %v506
        %v523 = vmul.f32 %v507, %v507
        %v524 = vmul.f32 %v508, %v508
        %v525 = vmul.f32 %v509, %v509
        %v526 = vmul.f32 %v510, %v510
        %v527 = vmul.f32 %v511, %v511
        %v528 = vmul.f32 %v512, %v512
        %v529 = vmul.f32 %v513, %v513
        %v530 = vmul.f32 %v514, %v514
        %v531 = vmul.f32 %v515, %v515
        %v532 = vmul.f32 %v516, %v516
        %v533 = vmul.f32 %v517, %v517
        %v534 = vmul.f32 %v518, %v518
        %v535 = vmul.f32 %v519, %v519
        %v536 = vmul.f32 %v520, %v520
        %v537 = vmul.f32 %v521, %v521
        %v538 = vadd.f32 %v522, 0.0
        %v539 = vadd.f32 %v523, 0.0
        %v540 = vadd.f32 %v524, 0.0
        %v541 = vadd.f32 %v525, 0.0
        %v542 = vadd.f32 %v526, 0.0
        %v543 = vadd.f32 %v527, 0.0
        %v544 = vadd.f32 %v528, 0.0
        %v545 = vadd.f32 %v529, 0.0
        %v546 = vadd.f32 %v530, 0.0
        %v547 = vadd.f32 %v531, 0.0
        %v548 = vadd.f32 %v532, 0.0
        %v549 = vadd.f32 %v533, 0.0
        %v550 = vadd.f32 %v534, 0.0
        %v551 = vadd.f32 %v535, 0.0
        %v552 = vadd.f32 %v536, 0.0
        %v553 = vadd.f32 %v537, 0.0
        %554 = vset.pattern.permute.xlu0 1
        %555 = vperm.xlu0 %554, %v405
        %v556 = vpop.permute.xlu0 %555
        %558 = vset.pattern.permute.xlu0 1
        %559 = vperm.xlu0 %558, %v406
        %v560 = vpop.permute.xlu0 %559
        %562 = vset.pattern.permute.xlu0 1
        %563 = vperm.xlu0 %562, %v407
        %v564 = vpop.permute.xlu0 %563
        %566 = vset.pattern.permute.xlu0 1
        %567 = vperm.xlu0 %566, %v408
        %v568 = vpop.permute.xlu0 %567
        %570 = vset.pattern.permute.xlu0 1
        %571 = vperm.xlu0 %570, %v409
        %v572 = vpop.permute.xlu0 %571
        %574 = vset.pattern.permute.xlu0 1
        %575 = vperm.xlu0 %574, %v410
        %v576 = vpop.permute.xlu0 %575
        %578 = vset.pattern.permute.xlu0 1
        %579 = vperm.xlu0 %578, %v411
        %v580 = vpop.permute.xlu0 %579
        %582 = vset.pattern.permute.xlu0 1
        %583 = vperm.xlu0 %582, %v412
        %v584 = vpop.permute.xlu0 %583
        %586 = vset.pattern.permute.xlu0 1
        %587 = vperm.xlu0 %586, %v413
        %v588 = vpop.permute.xlu0 %587
        %590 = vset.pattern.permute.xlu0 1
        %591 = vperm.xlu0 %590, %v414
        %v592 = vpop.permute.xlu0 %591
        %594 = vset.pattern.permute.xlu0 1
        %595 = vperm.xlu0 %594, %v415
        %v596 = vpop.permute.xlu0 %595
        %598 = vset.pattern.permute.xlu0 1
        %599 = vperm.xlu0 %598, %v416
        %v600 = vpop.permute.xlu0 %599
        %602 = vset.pattern.permute.xlu0 1
        %603 = vperm.xlu0 %602, %v417
        %v604 = vpop.permute.xlu0 %603
        %606 = vset.pattern.permute.xlu0 1
        %607 = vperm.xlu0 %606, %v418
        %v608 = vpop.permute.xlu0 %607
        %610 = vset.pattern.permute.xlu0 1
        %611 = vperm.xlu0 %610, %v419
        %v612 = vpop.permute.xlu0 %611
        %614 = vset.pattern.permute.xlu0 1
        %615 = vperm.xlu0 %614, %v420
        %v616 = vpop.permute.xlu0 %615
        %v618 = vlaneseq
        %v619 = vshrl.u32 %v618, 7
        %v620 = vsub.s32 1, %v619
        %v621 = vrot.slane %v421, %v620
        %v622 = vsub.f32 %v556, %v621
        %v623 = vsub.f32 %v560, %v621
        %v624 = vsub.f32 %v564, %v621
        %v625 = vsub.f32 %v568, %v621
        %v626 = vsub.f32 %v572, %v621
        %v627 = vsub.f32 %v576, %v621
        %v628 = vsub.f32 %v580, %v621
        %v629 = vsub.f32 %v584, %v621
        %v630 = vsub.f32 %v588, %v621
        %v631 = vsub.f32 %v592, %v621
        %v632 = vsub.f32 %v596, %v621
        %v633 = vsub.f32 %v600, %v621
        %v634 = vsub.f32 %v604, %v621
        %v635 = vsub.f32 %v608, %v621
        %v636 = vsub.f32 %v612, %v621
        %v637 = vsub.f32 %v616, %v621
        %v638 = vmul.f32 %v622, %v622
        %v639 = vmul.f32 %v623, %v623
        %v640 = vmul.f32 %v624, %v624
        %v641 = vmul.f32 %v625, %v625
        %v642 = vmul.f32 %v626, %v626
        %v643 = vmul.f32 %v627, %v627
        %v644 = vmul.f32 %v628, %v628
        %v645 = vmul.f32 %v629, %v629
        %v646 = vmul.f32 %v630, %v630
        %v647 = vmul.f32 %v631, %v631
        %v648 = vmul.f32 %v632, %v632
        %v649 = vmul.f32 %v633, %v633
        %v650 = vmul.f32 %v634, %v634
        %v651 = vmul.f32 %v635, %v635
        %v652 = vmul.f32 %v636, %v636
        %v653 = vmul.f32 %v637, %v637
        %v654 = vadd.f32 %v538, %v638
        %v655 = vadd.f32 %v539, %v639
        %v656 = vadd.f32 %v540, %v640
        %v657 = vadd.f32 %v541, %v641
        %v658 = vadd.f32 %v542, %v642
        %v659 = vadd.f32 %v543, %v643
        %v660 = vadd.f32 %v544, %v644
        %v661 = vadd.f32 %v545, %v645
        %v662 = vadd.f32 %v546, %v646
        %v663 = vadd.f32 %v547, %v647
        %v664 = vadd.f32 %v548, %v648
        %v665 = vadd.f32 %v549, %v649
        %v666 = vadd.f32 %v550, %v650
        %v667 = vadd.f32 %v551, %v651
        %v668 = vadd.f32 %v552, %v652
        %v669 = vadd.f32 %v553, %v653
        %670 = vset.pattern.permute.xlu0 2
        %671 = vperm.xlu0 %670, %v405
        %v672 = vpop.permute.xlu0 %671
        %674 = vset.pattern.permute.xlu0 2
        %675 = vperm.xlu0 %674, %v406
        %v676 = vpop.permute.xlu0 %675
        %678 = vset.pattern.permute.xlu0 2
        %679 = vperm.xlu0 %678, %v407
        %v680 = vpop.permute.xlu0 %679
        %682 = vset.pattern.permute.xlu0 2
        %683 = vperm.xlu0 %682, %v408
        %v684 = vpop.permute.xlu0 %683
        %686 = vset.pattern.permute.xlu0 2
        %687 = vperm.xlu0 %686, %v409
        %v688 = vpop.permute.xlu0 %687
        %690 = vset.pattern.permute.xlu0 2
        %691 = vperm.xlu0 %690, %v410
        %v692 = vpop.permute.xlu0 %691
        %694 = vset.pattern.permute.xlu0 2
        %695 = vperm.xlu0 %694, %v411
        %v696 = vpop.permute.xlu0 %695
        %698 = vset.pattern.permute.xlu0 2
        %699 = vperm.xlu0 %698, %v412
        %v700 = vpop.permute.xlu0 %699
        %702 = vset.pattern.permute.xlu0 2
        %703 = vperm.xlu0 %702, %v413
        %v704 = vpop.permute.xlu0 %703
        %706 = vset.pattern.permute.xlu0 2
        %707 = vperm.xlu0 %706, %v414
        %v708 = vpop.permute.xlu0 %707
        %710 = vset.pattern.permute.xlu0 2
        %711 = vperm.xlu0 %710, %v415
        %v712 = vpop.permute.xlu0 %711
        %714 = vset.pattern.permute.xlu0 2
        %715 = vperm.xlu0 %714, %v416
        %v716 = vpop.permute.xlu0 %715
        %718 = vset.pattern.permute.xlu0 2
        %719 = vperm.xlu0 %718, %v417
        %v720 = vpop.permute.xlu0 %719
        %722 = vset.pattern.permute.xlu0 2
        %723 = vperm.xlu0 %722, %v418
        %v724 = vpop.permute.xlu0 %723
        %726 = vset.pattern.permute.xlu0 2
        %727 = vperm.xlu0 %726, %v419
        %v728 = vpop.permute.xlu0 %727
        %730 = vset.pattern.permute.xlu0 2
        %731 = vperm.xlu0 %730, %v420
        %v732 = vpop.permute.xlu0 %731
        %v734 = vlaneseq
        %v735 = vshrl.u32 %v734, 7
        %v736 = vsub.s32 2, %v735
        %v737 = vrot.slane %v421, %v736
        %v738 = vsub.f32 %v672, %v737
        %v739 = vsub.f32 %v676, %v737
        %v740 = vsub.f32 %v680, %v737
        %v741 = vsub.f32 %v684, %v737
        %v742 = vsub.f32 %v688, %v737
        %v743 = vsub.f32 %v692, %v737
        %v744 = vsub.f32 %v696, %v737
        %v745 = vsub.f32 %v700, %v737
        %v746 = vsub.f32 %v704, %v737
        %v747 = vsub.f32 %v708, %v737
        %v748 = vsub.f32 %v712, %v737
        %v749 = vsub.f32 %v716, %v737
        %v750 = vsub.f32 %v720, %v737
        %v751 = vsub.f32 %v724, %v737
        %v752 = vsub.f32 %v728, %v737
        %v753 = vsub.f32 %v732, %v737
        %v754 = vmul.f32 %v738, %v738
        %v755 = vmul.f32 %v739, %v739
        %v756 = vmul.f32 %v740, %v740
        %v757 = vmul.f32 %v741, %v741
        %v758 = vmul.f32 %v742, %v742
        %v759 = vmul.f32 %v743, %v743
        %v760 = vmul.f32 %v744, %v744
        %v761 = vmul.f32 %v745, %v745
        %v762 = vmul.f32 %v746, %v746
        %v763 = vmul.f32 %v747, %v747
        %v764 = vmul.f32 %v748, %v748
        %v765 = vmul.f32 %v749, %v749
        %v766 = vmul.f32 %v750, %v750
        %v767 = vmul.f32 %v751, %v751
        %v768 = vmul.f32 %v752, %v752
        %v769 = vmul.f32 %v753, %v753
        %v770 = vadd.f32 %v654, %v754
        %v771 = vadd.f32 %v655, %v755
        %v772 = vadd.f32 %v656, %v756
        %v773 = vadd.f32 %v657, %v757
        %v774 = vadd.f32 %v658, %v758
        %v775 = vadd.f32 %v659, %v759
        %v776 = vadd.f32 %v660, %v760
        %v777 = vadd.f32 %v661, %v761
        %v778 = vadd.f32 %v662, %v762
        %v779 = vadd.f32 %v663, %v763
        %v780 = vadd.f32 %v664, %v764
        %v781 = vadd.f32 %v665, %v765
        %v782 = vadd.f32 %v666, %v766
        %v783 = vadd.f32 %v667, %v767
        %v784 = vadd.f32 %v668, %v768
        %v785 = vadd.f32 %v669, %v769
        %v786 = vld [vmem:[%s396] sm:$0xff]
        %v787 = vld [vmem:[%s396 + $0x8] sm:$0xff]
        %v788 = vld [vmem:[%s396 + $0x10] sm:$0xff]
        %v789 = vld [vmem:[%s396 + $0x18] sm:$0xff]
        %v790 = vld [vmem:[%s396 + $0x20] sm:$0xff]
        %v791 = vld [vmem:[%s396 + $0x28] sm:$0xff]
        %v792 = vld [vmem:[%s396 + $0x30] sm:$0xff]
        %v793 = vld [vmem:[%s396 + $0x38] sm:$0xff]
        %v794 = vld [vmem:[%s396 + $0x40] sm:$0xff]
        %v795 = vld [vmem:[%s396 + $0x48] sm:$0xff]
        %v796 = vld [vmem:[%s396 + $0x50] sm:$0xff]
        %v797 = vld [vmem:[%s396 + $0x58] sm:$0xff]
        %v798 = vld [vmem:[%s396 + $0x60] sm:$0xff]
        %v799 = vld [vmem:[%s396 + $0x68] sm:$0xff]
        %v800 = vld [vmem:[%s396 + $0x70] sm:$0xff]
        %v801 = vld [vmem:[%s396 + $0x78] sm:$0xff]
        %v802 = vld [vmem:[%s3] sm:$0x1]
        %803 = vset.pattern.permute.xlu0 0
        %804 = vperm.xlu0 %803, %v786
        %v805 = vpop.permute.xlu0 %804
        %806 = vset.pattern.permute.xlu0 0
        %807 = vperm.xlu0 %806, %v787
        %v808 = vpop.permute.xlu0 %807
        %809 = vset.pattern.permute.xlu0 0
        %810 = vperm.xlu0 %809, %v788
        %v811 = vpop.permute.xlu0 %810
        %812 = vset.pattern.permute.xlu0 0
        %813 = vperm.xlu0 %812, %v789
        %v814 = vpop.permute.xlu0 %813
        %815 = vset.pattern.permute.xlu0 0
        %816 = vperm.xlu0 %815, %v790
        %v817 = vpop.permute.xlu0 %816
        %818 = vset.pattern.permute.xlu0 0
        %819 = vperm.xlu0 %818, %v791
        %v820 = vpop.permute.xlu0 %819
        %821 = vset.pattern.permute.xlu0 0
        %822 = vperm.xlu0 %821, %v792
        %v823 = vpop.permute.xlu0 %822
        %824 = vset.pattern.permute.xlu0 0
        %825 = vperm.xlu0 %824, %v793
        %v826 = vpop.permute.xlu0 %825
        %827 = vset.pattern.permute.xlu0 0
        %828 = vperm.xlu0 %827, %v794
        %v829 = vpop.permute.xlu0 %828
        %830 = vset.pattern.permute.xlu0 0
        %831 = vperm.xlu0 %830, %v795
        %v832 = vpop.permute.xlu0 %831
        %833 = vset.pattern.permute.xlu0 0
        %834 = vperm.xlu0 %833, %v796
        %v835 = vpop.permute.xlu0 %834
        %836 = vset.pattern.permute.xlu0 0
        %837 = vperm.xlu0 %836, %v797
        %v838 = vpop.permute.xlu0 %837
        %839 = vset.pattern.permute.xlu0 0
        %840 = vperm.xlu0 %839, %v798
        %v841 = vpop.permute.xlu0 %840
        %842 = vset.pattern.permute.xlu0 0
        %843 = vperm.xlu0 %842, %v799
        %v844 = vpop.permute.xlu0 %843
        %845 = vset.pattern.permute.xlu0 0
        %846 = vperm.xlu0 %845, %v800
        %v847 = vpop.permute.xlu0 %846
        %848 = vset.pattern.permute.xlu0 0
        %849 = vperm.xlu0 %848, %v801
        %v850 = vpop.permute.xlu0 %849
        %v851 = vlaneseq
        %v852 = vshrl.u32 %v851, 7
        %v853 = vsub.s32 0, %v852
        %v854 = vrot.slane %v802, %v853
        %vm855 = vcmp.eq.s32.totalorder %v805, %v854
        %vm856 = vcmp.eq.s32.totalorder %v808, %v854
        %vm857 = vcmp.eq.s32.totalorder %v811, %v854
        %vm858 = vcmp.eq.s32.totalorder %v814, %v854
        %vm859 = vcmp.eq.s32.totalorder %v817, %v854
        %vm860 = vcmp.eq.s32.totalorder %v820, %v854
        %vm861 = vcmp.eq.s32.totalorder %v823, %v854
        %vm862 = vcmp.eq.s32.totalorder %v826, %v854
        %vm863 = vcmp.eq.s32.totalorder %v829, %v854
        %vm864 = vcmp.eq.s32.totalorder %v832, %v854
        %vm865 = vcmp.eq.s32.totalorder %v835, %v854
        %vm866 = vcmp.eq.s32.totalorder %v838, %v854
        %vm867 = vcmp.eq.s32.totalorder %v841, %v854
        %vm868 = vcmp.eq.s32.totalorder %v844, %v854
        %vm869 = vcmp.eq.s32.totalorder %v847, %v854
        %vm870 = vcmp.eq.s32.totalorder %v850, %v854
        %v871 = vsel %vm855, %v770, inf
        %v872 = vsel %vm856, %v771, inf
        %v873 = vsel %vm857, %v772, inf
        %v874 = vsel %vm858, %v773, inf
        %v875 = vsel %vm859, %v774, inf
        %v876 = vsel %vm860, %v775, inf
        %v877 = vsel %vm861, %v776, inf
        %v878 = vsel %vm862, %v777, inf
        %v879 = vsel %vm863, %v778, inf
        %v880 = vsel %vm864, %v779, inf
        %v881 = vsel %vm865, %v780, inf
        %v882 = vsel %vm866, %v781, inf
        %v883 = vsel %vm867, %v782, inf
        %v884 = vsel %vm868, %v783, inf
        %v885 = vsel %vm869, %v784, inf
        %v886 = vsel %vm870, %v785, inf
        %vm887 = vcmask 523264
        %v888 = vsel %vm887, %v871, inf
        %889 = vmin.xlane.f32.xlu0 %v888
        %v890 = vpop.xlane.xlu0 %889
        %v891 = vsel %vm887, %v872, inf
        %892 = vmin.xlane.f32.xlu0 %v891
        %v893 = vpop.xlane.xlu0 %892
        %v894 = vsel %vm887, %v873, inf
        %895 = vmin.xlane.f32.xlu0 %v894
        %v896 = vpop.xlane.xlu0 %895
        %v897 = vsel %vm887, %v874, inf
        %898 = vmin.xlane.f32.xlu0 %v897
        %v899 = vpop.xlane.xlu0 %898
        %v900 = vsel %vm887, %v875, inf
        %901 = vmin.xlane.f32.xlu0 %v900
        %v902 = vpop.xlane.xlu0 %901
        %v903 = vsel %vm887, %v876, inf
        %904 = vmin.xlane.f32.xlu0 %v903
        %v905 = vpop.xlane.xlu0 %904
        %v906 = vsel %vm887, %v877, inf
        %907 = vmin.xlane.f32.xlu0 %v906
        %v908 = vpop.xlane.xlu0 %907
        %v909 = vsel %vm887, %v878, inf
        %910 = vmin.xlane.f32.xlu0 %v909
        %v911 = vpop.xlane.xlu0 %910
        %v912 = vsel %vm887, %v879, inf
        %913 = vmin.xlane.f32.xlu0 %v912
        %v914 = vpop.xlane.xlu0 %913
        %v915 = vsel %vm887, %v880, inf
        %916 = vmin.xlane.f32.xlu0 %v915
        %v917 = vpop.xlane.xlu0 %916
        %v918 = vsel %vm887, %v881, inf
        %919 = vmin.xlane.f32.xlu0 %v918
        %v920 = vpop.xlane.xlu0 %919
        %v921 = vsel %vm887, %v882, inf
        %922 = vmin.xlane.f32.xlu0 %v921
        %v923 = vpop.xlane.xlu0 %922
        %v924 = vsel %vm887, %v883, inf
        %925 = vmin.xlane.f32.xlu0 %v924
        %v926 = vpop.xlane.xlu0 %925
        %v927 = vsel %vm887, %v884, inf
        %928 = vmin.xlane.f32.xlu0 %v927
        %v929 = vpop.xlane.xlu0 %928
        %v930 = vsel %vm887, %v885, inf
        %931 = vmin.xlane.f32.xlu0 %v930
        %v932 = vpop.xlane.xlu0 %931
        %v933 = vsel %vm887, %v886, inf
        %934 = vmin.xlane.f32.xlu0 %v933
        %v935 = vpop.xlane.xlu0 %934
        %vm936 = vcmp.eq.f32.partialorder %v871, %v890
        %vm937 = vcmp.eq.f32.partialorder %v872, %v893
        %vm938 = vcmp.eq.f32.partialorder %v873, %v896
        %vm939 = vcmp.eq.f32.partialorder %v874, %v899
        %vm940 = vcmp.eq.f32.partialorder %v875, %v902
        %vm941 = vcmp.eq.f32.partialorder %v876, %v905
        %vm942 = vcmp.eq.f32.partialorder %v877, %v908
        %vm943 = vcmp.eq.f32.partialorder %v878, %v911
        %vm944 = vcmp.eq.f32.partialorder %v879, %v914
        %vm945 = vcmp.eq.f32.partialorder %v880, %v917
        %vm946 = vcmp.eq.f32.partialorder %v881, %v920
        %vm947 = vcmp.eq.f32.partialorder %v882, %v923
        %vm948 = vcmp.eq.f32.partialorder %v883, %v926
        %vm949 = vcmp.eq.f32.partialorder %v884, %v929
        %vm950 = vcmp.eq.f32.partialorder %v885, %v932
        %vm951 = vcmp.eq.f32.partialorder %v886, %v935
        %v952 = vmax.f32 %v890, 1e-16
        %v953 = vmax.f32 %v893, 1e-16
        %v954 = vmax.f32 %v896, 1e-16
        %v955 = vmax.f32 %v899, 1e-16
        %v956 = vmax.f32 %v902, 1e-16
        %v957 = vmax.f32 %v905, 1e-16
        %v958 = vmax.f32 %v908, 1e-16
        %v959 = vmax.f32 %v911, 1e-16
        %v960 = vmax.f32 %v914, 1e-16
        %v961 = vmax.f32 %v917, 1e-16
        %v962 = vmax.f32 %v920, 1e-16
        %v963 = vmax.f32 %v923, 1e-16
        %v964 = vmax.f32 %v926, 1e-16
        %v965 = vmax.f32 %v929, 1e-16
        %v966 = vmax.f32 %v932, 1e-16
        %v967 = vmax.f32 %v935, 1e-16
        %v968 = vrcp.pop %v952
        %v969 = vmul.f32 1.0, %v968
        %v970 = vrcp.pop %v953
        %v971 = vmul.f32 1.0, %v970
        %v972 = vrcp.pop %v954
        %v973 = vmul.f32 1.0, %v972
        %v974 = vrcp.pop %v955
        %v975 = vmul.f32 1.0, %v974
        %v976 = vrcp.pop %v956
        %v977 = vmul.f32 1.0, %v976
        %v978 = vrcp.pop %v957
        %v979 = vmul.f32 1.0, %v978
        %v980 = vrcp.pop %v958
        %v981 = vmul.f32 1.0, %v980
        %v982 = vrcp.pop %v959
        %v983 = vmul.f32 1.0, %v982
        %v984 = vrcp.pop %v960
        %v985 = vmul.f32 1.0, %v984
        %v986 = vrcp.pop %v961
        %v987 = vmul.f32 1.0, %v986
        %v988 = vrcp.pop %v962
        %v989 = vmul.f32 1.0, %v988
        %v990 = vrcp.pop %v963
        %v991 = vmul.f32 1.0, %v990
        %v992 = vrcp.pop %v964
        %v993 = vmul.f32 1.0, %v992
        %v994 = vrcp.pop %v965
        %v995 = vmul.f32 1.0, %v994
        %v996 = vrcp.pop %v966
        %v997 = vmul.f32 1.0, %v996
        %v998 = vrcp.pop %v967
        %v999 = vmul.f32 1.0, %v998
        %v1000 = vsel %vm936, %v969, 0.0
        %v1001 = vsel %vm937, %v971, 0.0
        %v1002 = vsel %vm938, %v973, 0.0
        %v1003 = vsel %vm939, %v975, 0.0
        %v1004 = vsel %vm940, %v977, 0.0
        %v1005 = vsel %vm941, %v979, 0.0
        %v1006 = vsel %vm942, %v981, 0.0
        %v1007 = vsel %vm943, %v983, 0.0
        %v1008 = vsel %vm944, %v985, 0.0
        %v1009 = vsel %vm945, %v987, 0.0
        %v1010 = vsel %vm946, %v989, 0.0
        %v1011 = vsel %vm947, %v991, 0.0
        %v1012 = vsel %vm948, %v993, 0.0
        %v1013 = vsel %vm949, %v995, 0.0
        %v1014 = vsel %vm950, %v997, 0.0
        %v1015 = vsel %vm951, %v999, 0.0
        %v1016 = vadd.f32 %v969, 0.0
        %v1017 = vadd.f32 %v971, 0.0
        %v1018 = vadd.f32 %v973, 0.0
        %v1019 = vadd.f32 %v975, 0.0
        %v1020 = vadd.f32 %v977, 0.0
        %v1021 = vadd.f32 %v979, 0.0
        %v1022 = vadd.f32 %v981, 0.0
        %v1023 = vadd.f32 %v983, 0.0
        %v1024 = vadd.f32 %v985, 0.0
        %v1025 = vadd.f32 %v987, 0.0
        %v1026 = vadd.f32 %v989, 0.0
        %v1027 = vadd.f32 %v991, 0.0
        %v1028 = vadd.f32 %v993, 0.0
        %v1029 = vadd.f32 %v995, 0.0
        %v1030 = vadd.f32 %v997, 0.0
        %v1031 = vadd.f32 %v999, 0.0
        %v1032 = vsel %vm936, inf, %v871
        %v1033 = vsel %vm937, inf, %v872
        %v1034 = vsel %vm938, inf, %v873
        %v1035 = vsel %vm939, inf, %v874
        %v1036 = vsel %vm940, inf, %v875
        %v1037 = vsel %vm941, inf, %v876
        %v1038 = vsel %vm942, inf, %v877
        %v1039 = vsel %vm943, inf, %v878
        %v1040 = vsel %vm944, inf, %v879
        %v1041 = vsel %vm945, inf, %v880
        %v1042 = vsel %vm946, inf, %v881
        %v1043 = vsel %vm947, inf, %v882
        %v1044 = vsel %vm948, inf, %v883
        %v1045 = vsel %vm949, inf, %v884
        %v1046 = vsel %vm950, inf, %v885
        %v1047 = vsel %vm951, inf, %v886
        %v1048 = vsel %vm887, %v1032, inf
        %1049 = vmin.xlane.f32.xlu0 %v1048
        %v1050 = vpop.xlane.xlu0 %1049
        %v1051 = vsel %vm887, %v1033, inf
        %1052 = vmin.xlane.f32.xlu0 %v1051
        %v1053 = vpop.xlane.xlu0 %1052
        %v1054 = vsel %vm887, %v1034, inf
        %1055 = vmin.xlane.f32.xlu0 %v1054
        %v1056 = vpop.xlane.xlu0 %1055
        %v1057 = vsel %vm887, %v1035, inf
        %1058 = vmin.xlane.f32.xlu0 %v1057
        %v1059 = vpop.xlane.xlu0 %1058
        %v1060 = vsel %vm887, %v1036, inf
        %1061 = vmin.xlane.f32.xlu0 %v1060
        %v1062 = vpop.xlane.xlu0 %1061
        %v1063 = vsel %vm887, %v1037, inf
        %1064 = vmin.xlane.f32.xlu0 %v1063
        %v1065 = vpop.xlane.xlu0 %1064
        %v1066 = vsel %vm887, %v1038, inf
        %1067 = vmin.xlane.f32.xlu0 %v1066
        %v1068 = vpop.xlane.xlu0 %1067
        %v1069 = vsel %vm887, %v1039, inf
        %1070 = vmin.xlane.f32.xlu0 %v1069
        %v1071 = vpop.xlane.xlu0 %1070
        %v1072 = vsel %vm887, %v1040, inf
        %1073 = vmin.xlane.f32.xlu0 %v1072
        %v1074 = vpop.xlane.xlu0 %1073
        %v1075 = vsel %vm887, %v1041, inf
        %1076 = vmin.xlane.f32.xlu0 %v1075
        %v1077 = vpop.xlane.xlu0 %1076
        %v1078 = vsel %vm887, %v1042, inf
        %1079 = vmin.xlane.f32.xlu0 %v1078
        %v1080 = vpop.xlane.xlu0 %1079
        %v1081 = vsel %vm887, %v1043, inf
        %1082 = vmin.xlane.f32.xlu0 %v1081
        %v1083 = vpop.xlane.xlu0 %1082
        %v1084 = vsel %vm887, %v1044, inf
        %1085 = vmin.xlane.f32.xlu0 %v1084
        %v1086 = vpop.xlane.xlu0 %1085
        %v1087 = vsel %vm887, %v1045, inf
        %1088 = vmin.xlane.f32.xlu0 %v1087
        %v1089 = vpop.xlane.xlu0 %1088
        %v1090 = vsel %vm887, %v1046, inf
        %1091 = vmin.xlane.f32.xlu0 %v1090
        %v1092 = vpop.xlane.xlu0 %1091
        %v1093 = vsel %vm887, %v1047, inf
        %1094 = vmin.xlane.f32.xlu0 %v1093
        %v1095 = vpop.xlane.xlu0 %1094
        %vm1096 = vcmp.eq.f32.partialorder %v1032, %v1050
        %vm1097 = vcmp.eq.f32.partialorder %v1033, %v1053
        %vm1098 = vcmp.eq.f32.partialorder %v1034, %v1056
        %vm1099 = vcmp.eq.f32.partialorder %v1035, %v1059
        %vm1100 = vcmp.eq.f32.partialorder %v1036, %v1062
        %vm1101 = vcmp.eq.f32.partialorder %v1037, %v1065
        %vm1102 = vcmp.eq.f32.partialorder %v1038, %v1068
        %vm1103 = vcmp.eq.f32.partialorder %v1039, %v1071
        %vm1104 = vcmp.eq.f32.partialorder %v1040, %v1074
        %vm1105 = vcmp.eq.f32.partialorder %v1041, %v1077
        %vm1106 = vcmp.eq.f32.partialorder %v1042, %v1080
        %vm1107 = vcmp.eq.f32.partialorder %v1043, %v1083
        %vm1108 = vcmp.eq.f32.partialorder %v1044, %v1086
        %vm1109 = vcmp.eq.f32.partialorder %v1045, %v1089
        %vm1110 = vcmp.eq.f32.partialorder %v1046, %v1092
        %vm1111 = vcmp.eq.f32.partialorder %v1047, %v1095
        %v1112 = vmax.f32 %v1050, 1e-16
        %v1113 = vmax.f32 %v1053, 1e-16
        %v1114 = vmax.f32 %v1056, 1e-16
        %v1115 = vmax.f32 %v1059, 1e-16
        %v1116 = vmax.f32 %v1062, 1e-16
        %v1117 = vmax.f32 %v1065, 1e-16
        %v1118 = vmax.f32 %v1068, 1e-16
        %v1119 = vmax.f32 %v1071, 1e-16
        %v1120 = vmax.f32 %v1074, 1e-16
        %v1121 = vmax.f32 %v1077, 1e-16
        %v1122 = vmax.f32 %v1080, 1e-16
        %v1123 = vmax.f32 %v1083, 1e-16
        %v1124 = vmax.f32 %v1086, 1e-16
        %v1125 = vmax.f32 %v1089, 1e-16
        %v1126 = vmax.f32 %v1092, 1e-16
        %v1127 = vmax.f32 %v1095, 1e-16
        %v1128 = vrcp.pop %v1112
        %v1129 = vmul.f32 1.0, %v1128
        %v1130 = vrcp.pop %v1113
        %v1131 = vmul.f32 1.0, %v1130
        %v1132 = vrcp.pop %v1114
        %v1133 = vmul.f32 1.0, %v1132
        %v1134 = vrcp.pop %v1115
        %v1135 = vmul.f32 1.0, %v1134
        %v1136 = vrcp.pop %v1116
        %v1137 = vmul.f32 1.0, %v1136
        %v1138 = vrcp.pop %v1117
        %v1139 = vmul.f32 1.0, %v1138
        %v1140 = vrcp.pop %v1118
        %v1141 = vmul.f32 1.0, %v1140
        %v1142 = vrcp.pop %v1119
        %v1143 = vmul.f32 1.0, %v1142
        %v1144 = vrcp.pop %v1120
        %v1145 = vmul.f32 1.0, %v1144
        %v1146 = vrcp.pop %v1121
        %v1147 = vmul.f32 1.0, %v1146
        %v1148 = vrcp.pop %v1122
        %v1149 = vmul.f32 1.0, %v1148
        %v1150 = vrcp.pop %v1123
        %v1151 = vmul.f32 1.0, %v1150
        %v1152 = vrcp.pop %v1124
        %v1153 = vmul.f32 1.0, %v1152
        %v1154 = vrcp.pop %v1125
        %v1155 = vmul.f32 1.0, %v1154
        %v1156 = vrcp.pop %v1126
        %v1157 = vmul.f32 1.0, %v1156
        %v1158 = vrcp.pop %v1127
        %v1159 = vmul.f32 1.0, %v1158
        %v1160 = vsel %vm1096, %v1129, %v1000
        %v1161 = vsel %vm1097, %v1131, %v1001
        %v1162 = vsel %vm1098, %v1133, %v1002
        %v1163 = vsel %vm1099, %v1135, %v1003
        %v1164 = vsel %vm1100, %v1137, %v1004
        %v1165 = vsel %vm1101, %v1139, %v1005
        %v1166 = vsel %vm1102, %v1141, %v1006
        %v1167 = vsel %vm1103, %v1143, %v1007
        %v1168 = vsel %vm1104, %v1145, %v1008
        %v1169 = vsel %vm1105, %v1147, %v1009
        %v1170 = vsel %vm1106, %v1149, %v1010
        %v1171 = vsel %vm1107, %v1151, %v1011
        %v1172 = vsel %vm1108, %v1153, %v1012
        %v1173 = vsel %vm1109, %v1155, %v1013
        %v1174 = vsel %vm1110, %v1157, %v1014
        %v1175 = vsel %vm1111, %v1159, %v1015
        %v1176 = vadd.f32 %v1016, %v1129
        %v1177 = vadd.f32 %v1017, %v1131
        %v1178 = vadd.f32 %v1018, %v1133
        %v1179 = vadd.f32 %v1019, %v1135
        %v1180 = vadd.f32 %v1020, %v1137
        %v1181 = vadd.f32 %v1021, %v1139
        %v1182 = vadd.f32 %v1022, %v1141
        %v1183 = vadd.f32 %v1023, %v1143
        %v1184 = vadd.f32 %v1024, %v1145
        %v1185 = vadd.f32 %v1025, %v1147
        %v1186 = vadd.f32 %v1026, %v1149
        %v1187 = vadd.f32 %v1027, %v1151
        %v1188 = vadd.f32 %v1028, %v1153
        %v1189 = vadd.f32 %v1029, %v1155
        %v1190 = vadd.f32 %v1030, %v1157
        %v1191 = vadd.f32 %v1031, %v1159
        %v1192 = vsel %vm1096, inf, %v1032
        %v1193 = vsel %vm1097, inf, %v1033
        %v1194 = vsel %vm1098, inf, %v1034
        %v1195 = vsel %vm1099, inf, %v1035
        %v1196 = vsel %vm1100, inf, %v1036
        %v1197 = vsel %vm1101, inf, %v1037
        %v1198 = vsel %vm1102, inf, %v1038
        %v1199 = vsel %vm1103, inf, %v1039
        %v1200 = vsel %vm1104, inf, %v1040
        %v1201 = vsel %vm1105, inf, %v1041
        %v1202 = vsel %vm1106, inf, %v1042
        %v1203 = vsel %vm1107, inf, %v1043
        %v1204 = vsel %vm1108, inf, %v1044
        %v1205 = vsel %vm1109, inf, %v1045
        %v1206 = vsel %vm1110, inf, %v1046
        %v1207 = vsel %vm1111, inf, %v1047
        %v1208 = vsel %vm887, %v1192, inf
        %1209 = vmin.xlane.f32.xlu0 %v1208
        %v1210 = vpop.xlane.xlu0 %1209
        %v1211 = vsel %vm887, %v1193, inf
        %1212 = vmin.xlane.f32.xlu0 %v1211
        %v1213 = vpop.xlane.xlu0 %1212
        %v1214 = vsel %vm887, %v1194, inf
        %1215 = vmin.xlane.f32.xlu0 %v1214
        %v1216 = vpop.xlane.xlu0 %1215
        %v1217 = vsel %vm887, %v1195, inf
        %1218 = vmin.xlane.f32.xlu0 %v1217
        %v1219 = vpop.xlane.xlu0 %1218
        %v1220 = vsel %vm887, %v1196, inf
        %1221 = vmin.xlane.f32.xlu0 %v1220
        %v1222 = vpop.xlane.xlu0 %1221
        %v1223 = vsel %vm887, %v1197, inf
        %1224 = vmin.xlane.f32.xlu0 %v1223
        %v1225 = vpop.xlane.xlu0 %1224
        %v1226 = vsel %vm887, %v1198, inf
        %1227 = vmin.xlane.f32.xlu0 %v1226
        %v1228 = vpop.xlane.xlu0 %1227
        %v1229 = vsel %vm887, %v1199, inf
        %1230 = vmin.xlane.f32.xlu0 %v1229
        %v1231 = vpop.xlane.xlu0 %1230
        %v1232 = vsel %vm887, %v1200, inf
        %1233 = vmin.xlane.f32.xlu0 %v1232
        %v1234 = vpop.xlane.xlu0 %1233
        %v1235 = vsel %vm887, %v1201, inf
        %1236 = vmin.xlane.f32.xlu0 %v1235
        %v1237 = vpop.xlane.xlu0 %1236
        %v1238 = vsel %vm887, %v1202, inf
        %1239 = vmin.xlane.f32.xlu0 %v1238
        %v1240 = vpop.xlane.xlu0 %1239
        %v1241 = vsel %vm887, %v1203, inf
        %1242 = vmin.xlane.f32.xlu0 %v1241
        %v1243 = vpop.xlane.xlu0 %1242
        %v1244 = vsel %vm887, %v1204, inf
        %1245 = vmin.xlane.f32.xlu0 %v1244
        %v1246 = vpop.xlane.xlu0 %1245
        %v1247 = vsel %vm887, %v1205, inf
        %1248 = vmin.xlane.f32.xlu0 %v1247
        %v1249 = vpop.xlane.xlu0 %1248
        %v1250 = vsel %vm887, %v1206, inf
        %1251 = vmin.xlane.f32.xlu0 %v1250
        %v1252 = vpop.xlane.xlu0 %1251
        %v1253 = vsel %vm887, %v1207, inf
        %1254 = vmin.xlane.f32.xlu0 %v1253
        %v1255 = vpop.xlane.xlu0 %1254
        %vm1256 = vcmp.eq.f32.partialorder %v1192, %v1210
        %vm1257 = vcmp.eq.f32.partialorder %v1193, %v1213
        %vm1258 = vcmp.eq.f32.partialorder %v1194, %v1216
        %vm1259 = vcmp.eq.f32.partialorder %v1195, %v1219
        %vm1260 = vcmp.eq.f32.partialorder %v1196, %v1222
        %vm1261 = vcmp.eq.f32.partialorder %v1197, %v1225
        %vm1262 = vcmp.eq.f32.partialorder %v1198, %v1228
        %vm1263 = vcmp.eq.f32.partialorder %v1199, %v1231
        %vm1264 = vcmp.eq.f32.partialorder %v1200, %v1234
        %vm1265 = vcmp.eq.f32.partialorder %v1201, %v1237
        %vm1266 = vcmp.eq.f32.partialorder %v1202, %v1240
        %vm1267 = vcmp.eq.f32.partialorder %v1203, %v1243
        %vm1268 = vcmp.eq.f32.partialorder %v1204, %v1246
        %vm1269 = vcmp.eq.f32.partialorder %v1205, %v1249
        %vm1270 = vcmp.eq.f32.partialorder %v1206, %v1252
        %vm1271 = vcmp.eq.f32.partialorder %v1207, %v1255
        %v1272 = vmax.f32 %v1210, 1e-16
        %v1273 = vmax.f32 %v1213, 1e-16
        %v1274 = vmax.f32 %v1216, 1e-16
        %v1275 = vmax.f32 %v1219, 1e-16
        %v1276 = vmax.f32 %v1222, 1e-16
        %v1277 = vmax.f32 %v1225, 1e-16
        %v1278 = vmax.f32 %v1228, 1e-16
        %v1279 = vmax.f32 %v1231, 1e-16
        %v1280 = vmax.f32 %v1234, 1e-16
        %v1281 = vmax.f32 %v1237, 1e-16
        %v1282 = vmax.f32 %v1240, 1e-16
        %v1283 = vmax.f32 %v1243, 1e-16
        %v1284 = vmax.f32 %v1246, 1e-16
        %v1285 = vmax.f32 %v1249, 1e-16
        %v1286 = vmax.f32 %v1252, 1e-16
        %v1287 = vmax.f32 %v1255, 1e-16
        %v1288 = vrcp.pop %v1272
        %v1289 = vmul.f32 1.0, %v1288
        %v1290 = vrcp.pop %v1273
        %v1291 = vmul.f32 1.0, %v1290
        %v1292 = vrcp.pop %v1274
        %v1293 = vmul.f32 1.0, %v1292
        %v1294 = vrcp.pop %v1275
        %v1295 = vmul.f32 1.0, %v1294
        %v1296 = vrcp.pop %v1276
        %v1297 = vmul.f32 1.0, %v1296
        %v1298 = vrcp.pop %v1277
        %v1299 = vmul.f32 1.0, %v1298
        %v1300 = vrcp.pop %v1278
        %v1301 = vmul.f32 1.0, %v1300
        %v1302 = vrcp.pop %v1279
        %v1303 = vmul.f32 1.0, %v1302
        %v1304 = vrcp.pop %v1280
        %v1305 = vmul.f32 1.0, %v1304
        %v1306 = vrcp.pop %v1281
        %v1307 = vmul.f32 1.0, %v1306
        %v1308 = vrcp.pop %v1282
        %v1309 = vmul.f32 1.0, %v1308
        %v1310 = vrcp.pop %v1283
        %v1311 = vmul.f32 1.0, %v1310
        %v1312 = vrcp.pop %v1284
        %v1313 = vmul.f32 1.0, %v1312
        %v1314 = vrcp.pop %v1285
        %v1315 = vmul.f32 1.0, %v1314
        %v1316 = vrcp.pop %v1286
        %v1317 = vmul.f32 1.0, %v1316
        %v1318 = vrcp.pop %v1287
        %v1319 = vmul.f32 1.0, %v1318
        %v1320 = vsel %vm1256, %v1289, %v1160
        %v1321 = vsel %vm1257, %v1291, %v1161
        %v1322 = vsel %vm1258, %v1293, %v1162
        %v1323 = vsel %vm1259, %v1295, %v1163
        %v1324 = vsel %vm1260, %v1297, %v1164
        %v1325 = vsel %vm1261, %v1299, %v1165
        %v1326 = vsel %vm1262, %v1301, %v1166
        %v1327 = vsel %vm1263, %v1303, %v1167
        %v1328 = vsel %vm1264, %v1305, %v1168
        %v1329 = vsel %vm1265, %v1307, %v1169
        %v1330 = vsel %vm1266, %v1309, %v1170
        %v1331 = vsel %vm1267, %v1311, %v1171
        %v1332 = vsel %vm1268, %v1313, %v1172
        %v1333 = vsel %vm1269, %v1315, %v1173
        %v1334 = vsel %vm1270, %v1317, %v1174
        %v1335 = vsel %vm1271, %v1319, %v1175
        %v1336 = vadd.f32 %v1176, %v1289
        %v1337 = vadd.f32 %v1177, %v1291
        %v1338 = vadd.f32 %v1178, %v1293
        %v1339 = vadd.f32 %v1179, %v1295
        %v1340 = vadd.f32 %v1180, %v1297
        %v1341 = vadd.f32 %v1181, %v1299
        %v1342 = vadd.f32 %v1182, %v1301
        %v1343 = vadd.f32 %v1183, %v1303
        %v1344 = vadd.f32 %v1184, %v1305
        %v1345 = vadd.f32 %v1185, %v1307
        %v1346 = vadd.f32 %v1186, %v1309
        %v1347 = vadd.f32 %v1187, %v1311
        %v1348 = vadd.f32 %v1188, %v1313
        %v1349 = vadd.f32 %v1189, %v1315
        %v1350 = vadd.f32 %v1190, %v1317
        %v1351 = vadd.f32 %v1191, %v1319
        %v1352 = vld [vmem:[%s4] sm:$0xff]
        %v1353 = vld [vmem:[%s4 + $0x8] sm:$0xff]
        %v1354 = vld [vmem:[%s4 + $0x10] sm:$0xff]
        %v1355 = vld [vmem:[%s4 + $0x18] sm:$0xff]
        %v1356 = vld [vmem:[%s4 + $0x20] sm:$0xff]
        %v1357 = vld [vmem:[%s4 + $0x28] sm:$0xff]
        %v1358 = vld [vmem:[%s4 + $0x30] sm:$0xff]
        %v1359 = vld [vmem:[%s4 + $0x38] sm:$0xff]
        %v1361 = vsel %vm887, %v1320, 0
        %v1364 = vsel %vm887, %v1321, 0
        %v1367 = vsel %vm887, %v1322, 0
        %v1370 = vsel %vm887, %v1323, 0
        %v1373 = vsel %vm887, %v1324, 0
        %v1376 = vsel %vm887, %v1325, 0
        %v1379 = vsel %vm887, %v1326, 0
        %v1382 = vsel %vm887, %v1327, 0
        %v1385 = vsel %vm887, %v1328, 0
        %v1388 = vsel %vm887, %v1329, 0
        %v1391 = vsel %vm887, %v1330, 0
        %v1394 = vsel %vm887, %v1331, 0
        %v1397 = vsel %vm887, %v1332, 0
        %v1400 = vsel %vm887, %v1333, 0
        %v1403 = vsel %vm887, %v1334, 0
        %v1406 = vsel %vm887, %v1335, 0
        %1408 = vmatprep.subr.mxu0 0.0
        %1409 = vmatpush1.msra.mxu0 %v1352
        %1410 = vmatprep.subr.mxu0 0.0
        %1411 = vmatpush1.msra.mxu0 %v1353
        %1412 = vmatprep.subr.mxu0 0.0
        %1413 = vmatpush1.msra.mxu0 %v1354
        %1414 = vmatprep.subr.mxu0 0.0
        %1415 = vmatpush1.msra.mxu0 %v1355
        %1416 = vmatprep.subr.mxu0 0.0
        %1417 = vmatpush1.msra.mxu0 %v1356
        %1418 = vmatprep.subr.mxu0 0.0
        %1419 = vmatpush1.msra.mxu0 %v1357
        %1420 = vmatprep.subr.mxu0 0.0
        %1421 = vmatpush1.msra.mxu0 %v1358
        %1422 = vmatprep.subr.mxu0 0.0
        %1423 = vmatpush1.msra.mxu0 %v1359
        %1424 = vmatprep.subr.mxu0 0.0
        %1425 = vmatpush1.msra.mxu0 0.0
        %1426 = vmatprep.subr.mxu0 0.0
        %1427 = vmatpush1.msra.mxu0 0.0
        %1428 = vmatprep.subr.mxu0 0.0
        %1429 = vmatpush1.msra.mxu0 0.0
        %1430 = vmatprep.subr.mxu0 0.0
        %1431 = vmatpush1.msra.mxu0 0.0
        %1432 = vmatprep.subr.mxu0 0.0
        %1433 = vmatpush1.msra.mxu0 0.0
        %1434 = vmatprep.subr.mxu0 0.0
        %1435 = vmatpush1.msra.mxu0 0.0
        %1436 = vmatprep.subr.mxu0 0.0
        %1437 = vmatpush1.msra.mxu0 0.0
        %1438 = vmatprep.subr.mxu0 0.0
        %1439 = vmatpush1.msra.mxu0 0.0
        %1440 = vmatprep.subr.mxu0 0.0
        %1441 = vmatpush1.msra.mxu0 0.0
        %1442 = vmatprep.subr.mxu0 0.0
        %1443 = vmatpush1.msra.mxu0 0.0
        %1444 = vmatprep.subr.mxu0 0.0
        %1445 = vmatpush1.msra.mxu0 0.0
        %1446 = vmatprep.subr.mxu0 0.0
        %1447 = vmatpush1.msra.mxu0 0.0
        %1448 = vmatprep.subr.mxu0 0.0
        %1449 = vmatpush1.msra.mxu0 0.0
        %1450 = vmatprep.subr.mxu0 0.0
        %1451 = vmatpush1.msra.mxu0 0.0
        %1452 = vmatprep.subr.mxu0 0.0
        %1453 = vmatpush1.msra.mxu0 0.0
        %1454 = vmatprep.subr.mxu0 0.0
        %1455 = vmatpush1.msra.mxu0 0.0
        %1456 = vmatprep.subr.mxu0 0.0
        %1457 = vmatpush1.msra.mxu0 0.0
        %1458 = vmatprep.subr.mxu0 0.0
        %1459 = vmatpush1.msra.mxu0 0.0
        %1460 = vmatprep.subr.mxu0 0.0
        %1461 = vmatpush1.msra.mxu0 0.0
        %1462 = vmatprep.subr.mxu0 0.0
        %1463 = vmatpush1.msra.mxu0 0.0
        %1464 = vmatprep.subr.mxu0 0.0
        %1465 = vmatpush1.msra.mxu0 0.0
        %1466 = vmatprep.subr.mxu0 0.0
        %1467 = vmatpush1.msra.mxu0 0.0
        %1468 = vmatprep.subr.mxu0 0.0
        %1469 = vmatpush1.msra.mxu0 0.0
        %1470 = vmatprep.subr.mxu0 0.0
        %1471 = vmatpush1.msra.mxu0 0.0
        %1472 = vmatprep.mubr.f32.mxu0 0.0
        %1473 = vmatmul.mubr.f32.gmra.mrb[0].mxu0 %v1361
        %v1474 = vpop.f32.mrb[0].mxu0
        %v1475 = vadd.f32 0.0, %v1474
        %v1476 = vpop.f32.mrb[0].mxu0
        %1477 = vmatprep.mubr.f32.mxu0 0.0
        %1478 = vmatmul.mubr.f32.gmra.mrb[0].mxu0 %v1364
        %v1479 = vpop.f32.mrb[0].mxu0
        %v1480 = vadd.f32 0.0, %v1479
        %v1481 = vpop.f32.mrb[0].mxu0
        %1482 = vmatprep.mubr.f32.mxu0 0.0
        %1483 = vmatmul.mubr.f32.gmra.mrb[0].mxu0 %v1367
        %v1484 = vpop.f32.mrb[0].mxu0
        %v1485 = vadd.f32 0.0, %v1484
        %v1486 = vpop.f32.mrb[0].mxu0
        %1487 = vmatprep.mubr.f32.mxu0 0.0
        %1488 = vmatmul.mubr.f32.gmra.mrb[0].mxu0 %v1370
        %v1489 = vpop.f32.mrb[0].mxu0
        %v1490 = vadd.f32 0.0, %v1489
        %v1491 = vpop.f32.mrb[0].mxu0
        %1492 = vmatprep.mubr.f32.mxu0 0.0
        %1493 = vmatmul.mubr.f32.gmra.mrb[0].mxu0 %v1373
        %v1494 = vpop.f32.mrb[0].mxu0
        %v1495 = vadd.f32 0.0, %v1494
        %v1496 = vpop.f32.mrb[0].mxu0
        %1497 = vmatprep.mubr.f32.mxu0 0.0
        %1498 = vmatmul.mubr.f32.gmra.mrb[0].mxu0 %v1376
        %v1499 = vpop.f32.mrb[0].mxu0
        %v1500 = vadd.f32 0.0, %v1499
        %v1501 = vpop.f32.mrb[0].mxu0
        %1502 = vmatprep.mubr.f32.mxu0 0.0
        %1503 = vmatmul.mubr.f32.gmra.mrb[0].mxu0 %v1379
        %v1504 = vpop.f32.mrb[0].mxu0
        %v1505 = vadd.f32 0.0, %v1504
        %v1506 = vpop.f32.mrb[0].mxu0
        %1507 = vmatprep.mubr.f32.mxu0 0.0
        %1508 = vmatmul.mubr.f32.gmra.mrb[0].mxu0 %v1382
        %v1509 = vpop.f32.mrb[0].mxu0
        %v1510 = vadd.f32 0.0, %v1509
        %v1511 = vpop.f32.mrb[0].mxu0
        %1512 = vmatprep.mubr.f32.mxu0 0.0
        %1513 = vmatmul.mubr.f32.gmra.mrb[0].mxu0 %v1385
        %v1514 = vpop.f32.mrb[0].mxu0
        %v1515 = vadd.f32 0.0, %v1514
        %v1516 = vpop.f32.mrb[0].mxu0
        %1517 = vmatprep.mubr.f32.mxu0 0.0
        %1518 = vmatmul.mubr.f32.gmra.mrb[0].mxu0 %v1388
        %v1519 = vpop.f32.mrb[0].mxu0
        %v1520 = vadd.f32 0.0, %v1519
        %v1521 = vpop.f32.mrb[0].mxu0
        %1522 = vmatprep.mubr.f32.mxu0 0.0
        %1523 = vmatmul.mubr.f32.gmra.mrb[0].mxu0 %v1391
        %v1524 = vpop.f32.mrb[0].mxu0
        %v1525 = vadd.f32 0.0, %v1524
        %v1526 = vpop.f32.mrb[0].mxu0
        %1527 = vmatprep.mubr.f32.mxu0 0.0
        %1528 = vmatmul.mubr.f32.gmra.mrb[0].mxu0 %v1394
        %v1529 = vpop.f32.mrb[0].mxu0
        %v1530 = vadd.f32 0.0, %v1529
        %v1531 = vpop.f32.mrb[0].mxu0
        %1532 = vmatprep.mubr.f32.mxu0 0.0
        %1533 = vmatmul.mubr.f32.gmra.mrb[0].mxu0 %v1397
        %v1534 = vpop.f32.mrb[0].mxu0
        %v1535 = vadd.f32 0.0, %v1534
        %v1536 = vpop.f32.mrb[0].mxu0
        %1537 = vmatprep.mubr.f32.mxu0 0.0
        %1538 = vmatmul.mubr.f32.gmra.mrb[0].mxu0 %v1400
        %v1539 = vpop.f32.mrb[0].mxu0
        %v1540 = vadd.f32 0.0, %v1539
        %v1541 = vpop.f32.mrb[0].mxu0
        %1542 = vmatprep.mubr.f32.mxu0 0.0
        %1543 = vmatmul.mubr.f32.gmra.mrb[0].mxu0 %v1403
        %v1544 = vpop.f32.mrb[0].mxu0
        %v1545 = vadd.f32 0.0, %v1544
        %v1546 = vpop.f32.mrb[0].mxu0
        %1547 = vmatprep.mubr.f32.mxu0 0.0
        %1548 = vmatmul.mubr.f32.gmra.mrb[0].mxu0 %v1406
        %v1549 = vpop.f32.mrb[0].mxu0
        %v1550 = vadd.f32 0.0, %v1549
        %v1551 = vpop.f32.mrb[0].mxu0
        %1552 = vdwg.mxu0
        %v1553 = vrcp.pop %v1336
        %v1554 = vmul.f32 1.0, %v1553
        %v1555 = vrcp.pop %v1337
        %v1556 = vmul.f32 1.0, %v1555
        %v1557 = vrcp.pop %v1338
        %v1558 = vmul.f32 1.0, %v1557
        %v1559 = vrcp.pop %v1339
        %v1560 = vmul.f32 1.0, %v1559
        %v1561 = vrcp.pop %v1340
        %v1562 = vmul.f32 1.0, %v1561
        %v1563 = vrcp.pop %v1341
        %v1564 = vmul.f32 1.0, %v1563
        %v1565 = vrcp.pop %v1342
        %v1566 = vmul.f32 1.0, %v1565
        %v1567 = vrcp.pop %v1343
        %v1568 = vmul.f32 1.0, %v1567
        %v1569 = vrcp.pop %v1344
        %v1570 = vmul.f32 1.0, %v1569
        %v1571 = vrcp.pop %v1345
        %v1572 = vmul.f32 1.0, %v1571
        %v1573 = vrcp.pop %v1346
        %v1574 = vmul.f32 1.0, %v1573
        %v1575 = vrcp.pop %v1347
        %v1576 = vmul.f32 1.0, %v1575
        %v1577 = vrcp.pop %v1348
        %v1578 = vmul.f32 1.0, %v1577
        %v1579 = vrcp.pop %v1349
        %v1580 = vmul.f32 1.0, %v1579
        %v1581 = vrcp.pop %v1350
        %v1582 = vmul.f32 1.0, %v1581
        %v1583 = vrcp.pop %v1351
        %v1584 = vmul.f32 1.0, %v1583
        %v1585 = vld [vmem:[%s402] sm:$0xff]
        %v1586 = vld [vmem:[%s402 + $0x8] sm:$0xff]
        %v1587 = vld [vmem:[%s402 + $0x10] sm:$0xff]
        %v1588 = vld [vmem:[%s402 + $0x18] sm:$0xff]
        %v1589 = vld [vmem:[%s402 + $0x20] sm:$0xff]
        %v1590 = vld [vmem:[%s402 + $0x28] sm:$0xff]
        %v1591 = vld [vmem:[%s402 + $0x30] sm:$0xff]
        %v1592 = vld [vmem:[%s402 + $0x38] sm:$0xff]
        %v1593 = vld [vmem:[%s402 + $0x40] sm:$0xff]
        %v1594 = vld [vmem:[%s402 + $0x48] sm:$0xff]
        %v1595 = vld [vmem:[%s402 + $0x50] sm:$0xff]
        %v1596 = vld [vmem:[%s402 + $0x58] sm:$0xff]
        %v1597 = vld [vmem:[%s402 + $0x60] sm:$0xff]
        %v1598 = vld [vmem:[%s402 + $0x68] sm:$0xff]
        %v1599 = vld [vmem:[%s402 + $0x70] sm:$0xff]
        %v1600 = vld [vmem:[%s402 + $0x78] sm:$0xff]
        %v1601 = vmul.f32 %v1475, %v1554
        %v1602 = vmul.f32 %v1480, %v1556
        %v1603 = vmul.f32 %v1485, %v1558
        %v1604 = vmul.f32 %v1490, %v1560
        %v1605 = vmul.f32 %v1495, %v1562
        %v1606 = vmul.f32 %v1500, %v1564
        %v1607 = vmul.f32 %v1505, %v1566
        %v1608 = vmul.f32 %v1510, %v1568
        %v1609 = vmul.f32 %v1515, %v1570
        %v1610 = vmul.f32 %v1520, %v1572
        %v1611 = vmul.f32 %v1525, %v1574
        %v1612 = vmul.f32 %v1530, %v1576
        %v1613 = vmul.f32 %v1535, %v1578
        %v1614 = vmul.f32 %v1540, %v1580
        %v1615 = vmul.f32 %v1545, %v1582
        %v1616 = vmul.f32 %v1550, %v1584
        %v1617 = vld [vmem:[%s6] sm:$0xff]
        %v1618 = vld [vmem:[%s6 + $0x8] sm:$0xff]
        %v1619 = vld [vmem:[%s6 + $0x10] sm:$0xff]
        %v1620 = vld [vmem:[%s6 + $0x18] sm:$0xff]
        %vm1621 = vcmask 261120
        %v1623 = vsel %vm1621, %v1585, 0
        %v1626 = vsel %vm1621, %v1586, 0
        %v1629 = vsel %vm1621, %v1587, 0
        %v1632 = vsel %vm1621, %v1588, 0
        %v1635 = vsel %vm1621, %v1589, 0
        %v1638 = vsel %vm1621, %v1590, 0
        %v1641 = vsel %vm1621, %v1591, 0
        %v1644 = vsel %vm1621, %v1592, 0
        %v1647 = vsel %vm1621, %v1593, 0
        %v1650 = vsel %vm1621, %v1594, 0
        %v1653 = vsel %vm1621, %v1595, 0
        %v1656 = vsel %vm1621, %v1596, 0
        %v1659 = vsel %vm1621, %v1597, 0
        %v1662 = vsel %vm1621, %v1598, 0
        %v1665 = vsel %vm1621, %v1599, 0
        %v1668 = vsel %vm1621, %v1600, 0
        %1670 = vmatprep.subr.mxu0 0.0
        %1671 = vmatpush1.msra.mxu0 %v1617
        %1672 = vmatprep.subr.mxu0 0.0
        %1673 = vmatpush1.msra.mxu0 %v1618
        %1674 = vmatprep.subr.mxu0 0.0
        %1675 = vmatpush1.msra.mxu0 %v1619
        %1676 = vmatprep.subr.mxu0 0.0
        %1677 = vmatpush1.msra.mxu0 %v1620
        %1678 = vmatprep.subr.mxu0 0.0
        %1679 = vmatpush1.msra.mxu0 0.0
        %1680 = vmatprep.subr.mxu0 0.0
        %1681 = vmatpush1.msra.mxu0 0.0
        %1682 = vmatprep.subr.mxu0 0.0
        %1683 = vmatpush1.msra.mxu0 0.0
        %1684 = vmatprep.subr.mxu0 0.0
        %1685 = vmatpush1.msra.mxu0 0.0
        %1686 = vmatprep.subr.mxu0 0.0
        %1687 = vmatpush1.msra.mxu0 0.0
        %1688 = vmatprep.subr.mxu0 0.0
        %1689 = vmatpush1.msra.mxu0 0.0
        %1690 = vmatprep.subr.mxu0 0.0
        %1691 = vmatpush1.msra.mxu0 0.0
        %1692 = vmatprep.subr.mxu0 0.0
        %1693 = vmatpush1.msra.mxu0 0.0
        %1694 = vmatprep.subr.mxu0 0.0
        %1695 = vmatpush1.msra.mxu0 0.0
        %1696 = vmatprep.subr.mxu0 0.0
        %1697 = vmatpush1.msra.mxu0 0.0
        %1698 = vmatprep.subr.mxu0 0.0
        %1699 = vmatpush1.msra.mxu0 0.0
        %1700 = vmatprep.subr.mxu0 0.0
        %1701 = vmatpush1.msra.mxu0 0.0
        %1702 = vmatprep.subr.mxu0 0.0
        %1703 = vmatpush1.msra.mxu0 0.0
        %1704 = vmatprep.subr.mxu0 0.0
        %1705 = vmatpush1.msra.mxu0 0.0
        %1706 = vmatprep.subr.mxu0 0.0
        %1707 = vmatpush1.msra.mxu0 0.0
        %1708 = vmatprep.subr.mxu0 0.0
        %1709 = vmatpush1.msra.mxu0 0.0
        %1710 = vmatprep.subr.mxu0 0.0
        %1711 = vmatpush1.msra.mxu0 0.0
        %1712 = vmatprep.subr.mxu0 0.0
        %1713 = vmatpush1.msra.mxu0 0.0
        %1714 = vmatprep.subr.mxu0 0.0
        %1715 = vmatpush1.msra.mxu0 0.0
        %1716 = vmatprep.subr.mxu0 0.0
        %1717 = vmatpush1.msra.mxu0 0.0
        %1718 = vmatprep.subr.mxu0 0.0
        %1719 = vmatpush1.msra.mxu0 0.0
        %1720 = vmatprep.subr.mxu0 0.0
        %1721 = vmatpush1.msra.mxu0 0.0
        %1722 = vmatprep.subr.mxu0 0.0
        %1723 = vmatpush1.msra.mxu0 0.0
        %1724 = vmatprep.subr.mxu0 0.0
        %1725 = vmatpush1.msra.mxu0 0.0
        %1726 = vmatprep.subr.mxu0 0.0
        %1727 = vmatpush1.msra.mxu0 0.0
        %1728 = vmatprep.subr.mxu0 0.0
        %1729 = vmatpush1.msra.mxu0 0.0
        %1730 = vmatprep.subr.mxu0 0.0
        %1731 = vmatpush1.msra.mxu0 0.0
        %1732 = vmatprep.subr.mxu0 0.0
        %1733 = vmatpush1.msra.mxu0 0.0
        %1734 = vmatprep.mubr.f32.mxu0 0.0
        %1735 = vmatmul.mubr.f32.gmra.mrb[0].mxu0 %v1623
        %v1736 = vpop.f32.mrb[0].mxu0
        %v1737 = vadd.f32 0.0, %v1736
        %v1738 = vpop.f32.mrb[0].mxu0
        %1739 = vmatprep.mubr.f32.mxu0 0.0
        %1740 = vmatmul.mubr.f32.gmra.mrb[0].mxu0 %v1626
        %v1741 = vpop.f32.mrb[0].mxu0
        %v1742 = vadd.f32 0.0, %v1741
        %v1743 = vpop.f32.mrb[0].mxu0
        %1744 = vmatprep.mubr.f32.mxu0 0.0
        %1745 = vmatmul.mubr.f32.gmra.mrb[0].mxu0 %v1629
        %v1746 = vpop.f32.mrb[0].mxu0
        %v1747 = vadd.f32 0.0, %v1746
        %v1748 = vpop.f32.mrb[0].mxu0
        %1749 = vmatprep.mubr.f32.mxu0 0.0
        %1750 = vmatmul.mubr.f32.gmra.mrb[0].mxu0 %v1632
        %v1751 = vpop.f32.mrb[0].mxu0
        %v1752 = vadd.f32 0.0, %v1751
        %v1753 = vpop.f32.mrb[0].mxu0
        %1754 = vmatprep.mubr.f32.mxu0 0.0
        %1755 = vmatmul.mubr.f32.gmra.mrb[0].mxu0 %v1635
        %v1756 = vpop.f32.mrb[0].mxu0
        %v1757 = vadd.f32 0.0, %v1756
        %v1758 = vpop.f32.mrb[0].mxu0
        %1759 = vmatprep.mubr.f32.mxu0 0.0
        %1760 = vmatmul.mubr.f32.gmra.mrb[0].mxu0 %v1638
        %v1761 = vpop.f32.mrb[0].mxu0
        %v1762 = vadd.f32 0.0, %v1761
        %v1763 = vpop.f32.mrb[0].mxu0
        %1764 = vmatprep.mubr.f32.mxu0 0.0
        %1765 = vmatmul.mubr.f32.gmra.mrb[0].mxu0 %v1641
        %v1766 = vpop.f32.mrb[0].mxu0
        %v1767 = vadd.f32 0.0, %v1766
        %v1768 = vpop.f32.mrb[0].mxu0
        %1769 = vmatprep.mubr.f32.mxu0 0.0
        %1770 = vmatmul.mubr.f32.gmra.mrb[0].mxu0 %v1644
        %v1771 = vpop.f32.mrb[0].mxu0
        %v1772 = vadd.f32 0.0, %v1771
        %v1773 = vpop.f32.mrb[0].mxu0
        %1774 = vmatprep.mubr.f32.mxu0 0.0
        %1775 = vmatmul.mubr.f32.gmra.mrb[0].mxu0 %v1647
        %v1776 = vpop.f32.mrb[0].mxu0
        %v1777 = vadd.f32 0.0, %v1776
        %v1778 = vpop.f32.mrb[0].mxu0
        %1779 = vmatprep.mubr.f32.mxu0 0.0
        %1780 = vmatmul.mubr.f32.gmra.mrb[0].mxu0 %v1650
        %v1781 = vpop.f32.mrb[0].mxu0
        %v1782 = vadd.f32 0.0, %v1781
        %v1783 = vpop.f32.mrb[0].mxu0
        %1784 = vmatprep.mubr.f32.mxu0 0.0
        %1785 = vmatmul.mubr.f32.gmra.mrb[0].mxu0 %v1653
        %v1786 = vpop.f32.mrb[0].mxu0
        %v1787 = vadd.f32 0.0, %v1786
        %v1788 = vpop.f32.mrb[0].mxu0
        %1789 = vmatprep.mubr.f32.mxu0 0.0
        %1790 = vmatmul.mubr.f32.gmra.mrb[0].mxu0 %v1656
        %v1791 = vpop.f32.mrb[0].mxu0
        %v1792 = vadd.f32 0.0, %v1791
        %v1793 = vpop.f32.mrb[0].mxu0
        %1794 = vmatprep.mubr.f32.mxu0 0.0
        %1795 = vmatmul.mubr.f32.gmra.mrb[0].mxu0 %v1659
        %v1796 = vpop.f32.mrb[0].mxu0
        %v1797 = vadd.f32 0.0, %v1796
        %v1798 = vpop.f32.mrb[0].mxu0
        %1799 = vmatprep.mubr.f32.mxu0 0.0
        %1800 = vmatmul.mubr.f32.gmra.mrb[0].mxu0 %v1662
        %v1801 = vpop.f32.mrb[0].mxu0
        %v1802 = vadd.f32 0.0, %v1801
        %v1803 = vpop.f32.mrb[0].mxu0
        %1804 = vmatprep.mubr.f32.mxu0 0.0
        %1805 = vmatmul.mubr.f32.gmra.mrb[0].mxu0 %v1665
        %v1806 = vpop.f32.mrb[0].mxu0
        %v1807 = vadd.f32 0.0, %v1806
        %v1808 = vpop.f32.mrb[0].mxu0
        %1809 = vmatprep.mubr.f32.mxu0 0.0
        %1810 = vmatmul.mubr.f32.gmra.mrb[0].mxu0 %v1668
        %v1811 = vpop.f32.mrb[0].mxu0
        %v1812 = vadd.f32 0.0, %v1811
        %v1813 = vpop.f32.mrb[0].mxu0
        %1814 = vdwg.mxu0
        %v1815 = vadd.f32 %v1601, %v1737
        %v1816 = vadd.f32 %v1602, %v1742
        %v1817 = vadd.f32 %v1603, %v1747
        %v1818 = vadd.f32 %v1604, %v1752
        %v1819 = vadd.f32 %v1605, %v1757
        %v1820 = vadd.f32 %v1606, %v1762
        %v1821 = vadd.f32 %v1607, %v1767
        %v1822 = vadd.f32 %v1608, %v1772
        %v1823 = vadd.f32 %v1609, %v1777
        %v1824 = vadd.f32 %v1610, %v1782
        %v1825 = vadd.f32 %v1611, %v1787
        %v1826 = vadd.f32 %v1612, %v1792
        %v1827 = vadd.f32 %v1613, %v1797
        %v1828 = vadd.f32 %v1614, %v1802
        %v1829 = vadd.f32 %v1615, %v1807
        %v1830 = vadd.f32 %v1616, %v1812
        %v1831 = vld [vmem:[%s7] sm:$0x1]
        %v1833 = vlaneseq
        %v1834 = vshrl.u32 %v1833, 7
        %v1835 = vsub.s32 0, %v1834
        %v1836 = vrot.slane %v1831, %v1835
        %v1838 = vadd.f32 %v1815, %v1836
        %v1839 = vadd.f32 %v1816, %v1836
        %v1840 = vadd.f32 %v1817, %v1836
        %v1841 = vadd.f32 %v1818, %v1836
        %v1842 = vadd.f32 %v1819, %v1836
        %v1843 = vadd.f32 %v1820, %v1836
        %v1844 = vadd.f32 %v1821, %v1836
        %v1845 = vadd.f32 %v1822, %v1836
        %v1846 = vadd.f32 %v1823, %v1836
        %v1847 = vadd.f32 %v1824, %v1836
        %v1848 = vadd.f32 %v1825, %v1836
        %v1849 = vadd.f32 %v1826, %v1836
        %v1850 = vadd.f32 %v1827, %v1836
        %v1851 = vadd.f32 %v1828, %v1836
        %v1852 = vadd.f32 %v1829, %v1836
        %v1853 = vadd.f32 %v1830, %v1836
        %v1854 = vmax.f32 %v1838, 0.0
        %v1855 = vmax.f32 %v1839, 0.0
        %v1856 = vmax.f32 %v1840, 0.0
        %v1857 = vmax.f32 %v1841, 0.0
        %v1858 = vmax.f32 %v1842, 0.0
        %v1859 = vmax.f32 %v1843, 0.0
        %v1860 = vmax.f32 %v1844, 0.0
        %v1861 = vmax.f32 %v1845, 0.0
        %v1862 = vmax.f32 %v1846, 0.0
        %v1863 = vmax.f32 %v1847, 0.0
        %v1864 = vmax.f32 %v1848, 0.0
        %v1865 = vmax.f32 %v1849, 0.0
        %v1866 = vmax.f32 %v1850, 0.0
        %v1867 = vmax.f32 %v1851, 0.0
        %v1868 = vmax.f32 %v1852, 0.0
        %v1869 = vmax.f32 %v1853, 0.0
        %v1870 = vld [vmem:[%s8] sm:$0xff]
        %v1871 = vld [vmem:[%s8 + $0x8] sm:$0xff]
        %v1872 = vld [vmem:[%s8 + $0x10] sm:$0xff]
        %v1873 = vld [vmem:[%s8 + $0x18] sm:$0xff]
        %v1874 = vld [vmem:[%s8 + $0x20] sm:$0xff]
        %v1875 = vld [vmem:[%s8 + $0x28] sm:$0xff]
        %v1876 = vld [vmem:[%s8 + $0x30] sm:$0xff]
        %v1877 = vld [vmem:[%s8 + $0x38] sm:$0xff]
        %v1878 = vld [vmem:[%s9] sm:$0x1]
        %v1880 = vlaneseq
        %v1881 = vshrl.u32 %v1880, 7
        %v1882 = vsub.s32 0, %v1881
        %v1883 = vrot.slane %v1878, %v1882
        %v1886 = vsel %vm887, %v1854, 0
        %v1889 = vsel %vm887, %v1855, 0
        %v1892 = vsel %vm887, %v1856, 0
        %v1895 = vsel %vm887, %v1857, 0
        %v1898 = vsel %vm887, %v1858, 0
        %v1901 = vsel %vm887, %v1859, 0
        %v1904 = vsel %vm887, %v1860, 0
        %v1907 = vsel %vm887, %v1861, 0
        %v1910 = vsel %vm887, %v1862, 0
        %v1913 = vsel %vm887, %v1863, 0
        %v1916 = vsel %vm887, %v1864, 0
        %v1919 = vsel %vm887, %v1865, 0
        %v1922 = vsel %vm887, %v1866, 0
        %v1925 = vsel %vm887, %v1867, 0
        %v1928 = vsel %vm887, %v1868, 0
        %v1931 = vsel %vm887, %v1869, 0
        %1933 = vmatprep.subr.mxu0 0.0
        %1934 = vmatpush1.msra.mxu0 %v1870
        %1935 = vmatprep.subr.mxu0 0.0
        %1936 = vmatpush1.msra.mxu0 %v1871
        %1937 = vmatprep.subr.mxu0 0.0
        %1938 = vmatpush1.msra.mxu0 %v1872
        %1939 = vmatprep.subr.mxu0 0.0
        %1940 = vmatpush1.msra.mxu0 %v1873
        %1941 = vmatprep.subr.mxu0 0.0
        %1942 = vmatpush1.msra.mxu0 %v1874
        %1943 = vmatprep.subr.mxu0 0.0
        %1944 = vmatpush1.msra.mxu0 %v1875
        %1945 = vmatprep.subr.mxu0 0.0
        %1946 = vmatpush1.msra.mxu0 %v1876
        %1947 = vmatprep.subr.mxu0 0.0
        %1948 = vmatpush1.msra.mxu0 %v1877
        %1949 = vmatprep.subr.mxu0 0.0
        %1950 = vmatpush1.msra.mxu0 0.0
        %1951 = vmatprep.subr.mxu0 0.0
        %1952 = vmatpush1.msra.mxu0 0.0
        %1953 = vmatprep.subr.mxu0 0.0
        %1954 = vmatpush1.msra.mxu0 0.0
        %1955 = vmatprep.subr.mxu0 0.0
        %1956 = vmatpush1.msra.mxu0 0.0
        %1957 = vmatprep.subr.mxu0 0.0
        %1958 = vmatpush1.msra.mxu0 0.0
        %1959 = vmatprep.subr.mxu0 0.0
        %1960 = vmatpush1.msra.mxu0 0.0
        %1961 = vmatprep.subr.mxu0 0.0
        %1962 = vmatpush1.msra.mxu0 0.0
        %1963 = vmatprep.subr.mxu0 0.0
        %1964 = vmatpush1.msra.mxu0 0.0
        %1965 = vmatprep.subr.mxu0 0.0
        %1966 = vmatpush1.msra.mxu0 0.0
        %1967 = vmatprep.subr.mxu0 0.0
        %1968 = vmatpush1.msra.mxu0 0.0
        %1969 = vmatprep.subr.mxu0 0.0
        %1970 = vmatpush1.msra.mxu0 0.0
        %1971 = vmatprep.subr.mxu0 0.0
        %1972 = vmatpush1.msra.mxu0 0.0
        %1973 = vmatprep.subr.mxu0 0.0
        %1974 = vmatpush1.msra.mxu0 0.0
        %1975 = vmatprep.subr.mxu0 0.0
        %1976 = vmatpush1.msra.mxu0 0.0
        %1977 = vmatprep.subr.mxu0 0.0
        %1978 = vmatpush1.msra.mxu0 0.0
        %1979 = vmatprep.subr.mxu0 0.0
        %1980 = vmatpush1.msra.mxu0 0.0
        %1981 = vmatprep.subr.mxu0 0.0
        %1982 = vmatpush1.msra.mxu0 0.0
        %1983 = vmatprep.subr.mxu0 0.0
        %1984 = vmatpush1.msra.mxu0 0.0
        %1985 = vmatprep.subr.mxu0 0.0
        %1986 = vmatpush1.msra.mxu0 0.0
        %1987 = vmatprep.subr.mxu0 0.0
        %1988 = vmatpush1.msra.mxu0 0.0
        %1989 = vmatprep.subr.mxu0 0.0
        %1990 = vmatpush1.msra.mxu0 0.0
        %1991 = vmatprep.subr.mxu0 0.0
        %1992 = vmatpush1.msra.mxu0 0.0
        %1993 = vmatprep.subr.mxu0 0.0
        %1994 = vmatpush1.msra.mxu0 0.0
        %1995 = vmatprep.subr.mxu0 0.0
        %1996 = vmatpush1.msra.mxu0 0.0
        %1997 = vmatprep.mubr.f32.mxu0 0.0
        %1998 = vmatmul.mubr.f32.gmra.mrb[0].mxu0 %v1886
        %v1999 = vpop.f32.mrb[0].mxu0
        %v2000 = vadd.f32 %v1883, %v1999
        %v2001 = vpop.f32.mrb[0].mxu0
        %2002 = vmatprep.mubr.f32.mxu0 0.0
        %2003 = vmatmul.mubr.f32.gmra.mrb[0].mxu0 %v1889
        %v2004 = vpop.f32.mrb[0].mxu0
        %v2005 = vadd.f32 %v1883, %v2004
        %v2006 = vpop.f32.mrb[0].mxu0
        %2007 = vmatprep.mubr.f32.mxu0 0.0
        %2008 = vmatmul.mubr.f32.gmra.mrb[0].mxu0 %v1892
        %v2009 = vpop.f32.mrb[0].mxu0
        %v2010 = vadd.f32 %v1883, %v2009
        %v2011 = vpop.f32.mrb[0].mxu0
        %2012 = vmatprep.mubr.f32.mxu0 0.0
        %2013 = vmatmul.mubr.f32.gmra.mrb[0].mxu0 %v1895
        %v2014 = vpop.f32.mrb[0].mxu0
        %v2015 = vadd.f32 %v1883, %v2014
        %v2016 = vpop.f32.mrb[0].mxu0
        %2017 = vmatprep.mubr.f32.mxu0 0.0
        %2018 = vmatmul.mubr.f32.gmra.mrb[0].mxu0 %v1898
        %v2019 = vpop.f32.mrb[0].mxu0
        %v2020 = vadd.f32 %v1883, %v2019
        %v2021 = vpop.f32.mrb[0].mxu0
        %2022 = vmatprep.mubr.f32.mxu0 0.0
        %2023 = vmatmul.mubr.f32.gmra.mrb[0].mxu0 %v1901
        %v2024 = vpop.f32.mrb[0].mxu0
        %v2025 = vadd.f32 %v1883, %v2024
        %v2026 = vpop.f32.mrb[0].mxu0
        %2027 = vmatprep.mubr.f32.mxu0 0.0
        %2028 = vmatmul.mubr.f32.gmra.mrb[0].mxu0 %v1904
        %v2029 = vpop.f32.mrb[0].mxu0
        %v2030 = vadd.f32 %v1883, %v2029
        %v2031 = vpop.f32.mrb[0].mxu0
        %2032 = vmatprep.mubr.f32.mxu0 0.0
        %2033 = vmatmul.mubr.f32.gmra.mrb[0].mxu0 %v1907
        %v2034 = vpop.f32.mrb[0].mxu0
        %v2035 = vadd.f32 %v1883, %v2034
        %v2036 = vpop.f32.mrb[0].mxu0
        %2037 = vmatprep.mubr.f32.mxu0 0.0
        %2038 = vmatmul.mubr.f32.gmra.mrb[0].mxu0 %v1910
        %v2039 = vpop.f32.mrb[0].mxu0
        %v2040 = vadd.f32 %v1883, %v2039
        %v2041 = vpop.f32.mrb[0].mxu0
        %2042 = vmatprep.mubr.f32.mxu0 0.0
        %2043 = vmatmul.mubr.f32.gmra.mrb[0].mxu0 %v1913
        %v2044 = vpop.f32.mrb[0].mxu0
        %v2045 = vadd.f32 %v1883, %v2044
        %v2046 = vpop.f32.mrb[0].mxu0
        %2047 = vmatprep.mubr.f32.mxu0 0.0
        %2048 = vmatmul.mubr.f32.gmra.mrb[0].mxu0 %v1916
        %v2049 = vpop.f32.mrb[0].mxu0
        %v2050 = vadd.f32 %v1883, %v2049
        %v2051 = vpop.f32.mrb[0].mxu0
        %2052 = vmatprep.mubr.f32.mxu0 0.0
        %2053 = vmatmul.mubr.f32.gmra.mrb[0].mxu0 %v1919
        %v2054 = vpop.f32.mrb[0].mxu0
        %v2055 = vadd.f32 %v1883, %v2054
        %v2056 = vpop.f32.mrb[0].mxu0
        %2057 = vmatprep.mubr.f32.mxu0 0.0
        %2058 = vmatmul.mubr.f32.gmra.mrb[0].mxu0 %v1922
        %v2059 = vpop.f32.mrb[0].mxu0
        %v2060 = vadd.f32 %v1883, %v2059
        %v2061 = vpop.f32.mrb[0].mxu0
        %2062 = vmatprep.mubr.f32.mxu0 0.0
        %2063 = vmatmul.mubr.f32.gmra.mrb[0].mxu0 %v1925
        %v2064 = vpop.f32.mrb[0].mxu0
        %v2065 = vadd.f32 %v1883, %v2064
        %v2066 = vpop.f32.mrb[0].mxu0
        %2067 = vmatprep.mubr.f32.mxu0 0.0
        %2068 = vmatmul.mubr.f32.gmra.mrb[0].mxu0 %v1928
        %v2069 = vpop.f32.mrb[0].mxu0
        %v2070 = vadd.f32 %v1883, %v2069
        %v2071 = vpop.f32.mrb[0].mxu0
        %2072 = vmatprep.mubr.f32.mxu0 0.0
        %2073 = vmatmul.mubr.f32.gmra.mrb[0].mxu0 %v1931
        %v2074 = vpop.f32.mrb[0].mxu0
        %v2075 = vadd.f32 %v1883, %v2074
        %v2076 = vpop.f32.mrb[0].mxu0
        %2077 = vdwg.mxu0
        %v2078 = vmax.f32 %v2000, 0.0
        %v2079 = vmax.f32 %v2005, 0.0
        %v2080 = vmax.f32 %v2010, 0.0
        %v2081 = vmax.f32 %v2015, 0.0
        %v2082 = vmax.f32 %v2020, 0.0
        %v2083 = vmax.f32 %v2025, 0.0
        %v2084 = vmax.f32 %v2030, 0.0
        %v2085 = vmax.f32 %v2035, 0.0
        %v2086 = vmax.f32 %v2040, 0.0
        %v2087 = vmax.f32 %v2045, 0.0
        %v2088 = vmax.f32 %v2050, 0.0
        %v2089 = vmax.f32 %v2055, 0.0
        %v2090 = vmax.f32 %v2060, 0.0
        %v2091 = vmax.f32 %v2065, 0.0
        %v2092 = vmax.f32 %v2070, 0.0
        %v2093 = vmax.f32 %v2075, 0.0
        %2094 = vst [vmem:[%s385] sm:$0xff] %v2078
        %2095 = vst [vmem:[%s385 + $0x8] sm:$0xff] %v2079
        %2096 = vst [vmem:[%s385 + $0x10] sm:$0xff] %v2080
        %2097 = vst [vmem:[%s385 + $0x18] sm:$0xff] %v2081
        %2098 = vst [vmem:[%s385 + $0x20] sm:$0xff] %v2082
        %2099 = vst [vmem:[%s385 + $0x28] sm:$0xff] %v2083
        %2100 = vst [vmem:[%s385 + $0x30] sm:$0xff] %v2084
        %2101 = vst [vmem:[%s385 + $0x38] sm:$0xff] %v2085
        %2102 = vst [vmem:[%s385 + $0x40] sm:$0xff] %v2086
        %2103 = vst [vmem:[%s385 + $0x48] sm:$0xff] %v2087
        %2104 = vst [vmem:[%s385 + $0x50] sm:$0xff] %v2088
        %2105 = vst [vmem:[%s385 + $0x58] sm:$0xff] %v2089
        %2106 = vst [vmem:[%s385 + $0x60] sm:$0xff] %v2090
        %2107 = vst [vmem:[%s385 + $0x68] sm:$0xff] %v2091
        %2108 = vst [vmem:[%s385 + $0x70] sm:$0xff] %v2092
        %2109 = vst [vmem:[%s385 + $0x78] sm:$0xff] %v2093
        %s2110 = sand.u32 %s257, 1
        %s2111 = scalar_lea.sflag [#allocation3], %s2110
        %s2112 = sand.u32 %s257, 1
        %s2113 = smul.addr %s2112, 128
        %s2114 = scalar_lea.vmem [#allocation2], %s2113
        // Predicated region
        $region61: #{tpu_custom_call.1} parent=59 // pred_check
          %p2115 = pneg %p267
        $region62: #{tpu_custom_call.1} parent=59 // pred_check_branch
          %2117 = sbr.rel (%p2115) target = $region64
        $region63: #{tpu_custom_call.1} parent=59 // pred_region
          %s2118 = smul.u32 16, %s24
          %s2120 = ssub.s32 2048, 2048
          %2121 = vsyncadd %s2111, %s2120
          %s2122 = smul.addr %s2118, 128
          %s2123 = scalar_lea.hbm %s10, %s2122
          %s2124 = sshll.u32 %s2114, 4
          %s2125 = int_to_ptr.vmem [resolvable:$true] %s2124
          %2130 = dma.vmem_to_hbm [thread:$0]  %s2125, 2048, %s2123, %s2111, 128, 128, 8
        $region64: #{tpu_custom_call.1} parent=59 // pred_fallthru
          _
      $region60: #{tpu_custom_call.1} parent=5 // pred_fallthru
        _
      %p2131 = scmp.le.s32.totalorder 2, %s19
      // Predicated region
      $region65: #{tpu_custom_call.1} parent=5 // pred_check
        %p2132 = pneg %p2131
      $region66: #{tpu_custom_call.1} parent=5 // pred_check_branch
        %2134 = sbr.rel (%p2132) target = $region68
      $region67: #{tpu_custom_call.1} parent=5 // pred_region
        %s2135 = ssub.s32 %s19, 2
        // Predicated region
        $region69: #{tpu_custom_call.1} parent=67 // pred_check
          %p2136 = pneg %p273
        $region70: #{tpu_custom_call.1} parent=67 // pred_check_branch
          %2138 = sbr.rel (%p2136) target = $region72
        $region71: #{tpu_custom_call.1} parent=67 // pred_region
          %s2139 = sand.u32 %s258, 1
          %s2140 = scalar_lea.sflag [#allocation3], %s2139
          %s2141 = sand.u32 %s258, 1
          %s2142 = smul.addr %s2141, 128
          %s2143 = scalar_lea.vmem [#allocation2], %s2142
          %2144 = dma.done %s2140, 2048
        $region72: #{tpu_custom_call.1} parent=67 // pred_fallthru
          _
      $region68: #{tpu_custom_call.1} parent=5 // pred_fallthru
        _
    $region6: #{tpu_custom_call.1} parent=1 // loop_footer
      %s23 = sadd.s32 1, %s19
    $region7: #{tpu_custom_call.1} parent=1 // loop_footer_branch
      %18 = sbr.rel target = $region3
    $region8: #{tpu_custom_call.1} parent=1 // loop_exit
      _
    %2145 = vsyncpa [#allocation3], 1
    %s2146 = scalar_lea.sflag [#allocation3], 1
    %2147 = vsyncpa %s2146, 1

// kernel: tpu_custom_call.1
$region0: #{tpu_custom_call.1}
  #allocation0 [shape = 'u32[]', space=smem, size = 0x4, offset = 0x4, fixed_abs, tag = 'smem constant byte address 0x4 - core index']
  #allocation1 [shape = 'u32[144,128]{1,0:T(1,128)}', space=vmem, size = 0x12000, scoped, tag = 'internal scratch']
  %s0 = inlined_call_operand.vmem [shape: f32[256,3], index: 0, kind: input, shape index: {}]
  %s1 = inlined_call_operand.vmem [shape: s32[256,1], index: 1, kind: input, shape index: {}]
  %s2 = inlined_call_operand.vmem [shape: f32[3,64], index: 2, kind: input, shape index: {}]
  %s3 = inlined_call_operand.vmem [shape: s32[1,64], index: 3, kind: input, shape index: {}]
  %s4 = inlined_call_operand.vmem [shape: f32[64,64], index: 4, kind: input, shape index: {}]
  %s5 = inlined_call_operand.vmem [shape: f32[256,32], index: 5, kind: input, shape index: {}]
  %s6 = inlined_call_operand.vmem [shape: f32[32,64], index: 6, kind: input, shape index: {}]
  %s7 = inlined_call_operand.vmem [shape: f32[1,64], index: 7, kind: input, shape index: {}]
  %s8 = inlined_call_operand.vmem [shape: f32[64,128], index: 8, kind: input, shape index: {}]
  %s9 = inlined_call_operand.vmem [shape: f32[1,128], index: 9, kind: input, shape index: {}]
  %s10 = inlined_call_operand.hbm [shape: f32[256,128], index: 10, kind: output, shape index: {}]
  %s11 = sld [smem:[#allocation0]]
  $region73: #{tpu_custom_call.1} parent=0
    _
  %s13 = ssub.s32 1, %s11
  %s14 = scalar_select 0, %s13, %s11
  $region1: #{tpu_custom_call.1} parent=0
    #allocation2 [shape = 'u8[131072]{0}', space=vmem, size = 0x20000, scoped, tag = 'output window, operand 0']
    #allocation3 [shape = 's32[2]{0}', space=sflag, size = 0x8, scoped, tag = 'scoped memory for tpu_custom_call.1']
    %15 = vsyncpa [#allocation3], 0
    %s16 = scalar_lea.sflag [#allocation3], 1
    %17 = vsyncpa %s16, 0
    loop: start=0, step=1, limit=4
    $region2: #{tpu_custom_call.1} parent=1 // loop_pre_header
      _
    $region3: #{tpu_custom_call.1} parent=1 // loop_header
      %s19 = sphi 0, %s23
      %p20 = scmp.ge.s32.totalorder %s19, 4
      %s29 = sphi 0, %s31
      %s32 = sphi 0, %s29
      %s33 = sphi 0, %s32
      %s49 = sphi 0, %s33
      %s55 = sphi 0, %s57
      %s58 = sphi 0, %s55
      %s59 = sphi 0, %s58
      %s75 = sphi 0, %s59
      %s79 = sphi 0, %s79
      %s81 = sphi 0, %s79
      %s82 = sphi 0, %s81
      %s96 = sphi 0, %s82
      %s100 = sphi 0, %s100
      %s102 = sphi 0, %s100
      %s103 = sphi 0, %s102
      %s117 = sphi 0, %s103
      %s121 = sphi 0, %s121
      %s123 = sphi 0, %s121
      %s124 = sphi 0, %s123
      %s138 = sphi 0, %s124
      %s144 = sphi 0, %s146
      %s147 = sphi 0, %s144
      %s148 = sphi 0, %s147
      %s164 = sphi 0, %s148
      %s168 = sphi 0, %s168
      %s170 = sphi 0, %s168
      %s171 = sphi 0, %s170
      %s185 = sphi 0, %s171
      %s189 = sphi 0, %s189
      %s191 = sphi 0, %s189
      %s192 = sphi 0, %s191
      %s206 = sphi 0, %s192
      %s210 = sphi 0, %s210
      %s212 = sphi 0, %s210
      %s213 = sphi 0, %s212
      %s227 = sphi 0, %s213
      %s231 = sphi 0, %s231
      %s233 = sphi 0, %s231
      %s234 = sphi 0, %s233
      %s248 = sphi 0, %s234
      %s254 = sphi 0, %s256
      %s257 = sphi 0, %s254
      %s258 = sphi 0, %s257
      %s274 = sphi 0, %s258
    $region4: #{tpu_custom_call.1} parent=1 // loop_header_branch
      %22 = sbr.rel (%p20) target = $region8
    $region5: #{tpu_custom_call.1} parent=1 // loop_body
      %s24 = ssub.s32 %s19, 1
      %s25 = ssub.s32 %s19, 2
      %s26 = sadd.s32 %s19, 1
      %s27 = ssub.s32 %s19, %s26
      %p28 = scmp.eq.s32.totalorder %s27, 0
      %s30 = sadd.s32 %s29, 1
      %s31 = scalar_select %p28, %s29, %s30
      %p34 = pneg %p28
      %p35 = scmp.eq.s32.totalorder %s19, 1
      %p36 = por %p34, %p35
      %p37 = scmp.ne.s32.totalorder %s29, %s32
      %p38 = scmp.eq.s32.totalorder %s19, 0
      %p39 = por %p37, %p38
      %p40 = scmp.ne.s32.totalorder %s29, %s32
      %p41 = scmp.eq.s32.totalorder %s24, 1
      %p42 = por %p40, %p41
      %p43 = scmp.ne.s32.totalorder %s32, %s33
      %p44 = scmp.eq.s32.totalorder %s24, 0
      %p45 = por %p43, %p44
      %p46 = scmp.ne.s32.totalorder %s32, %s33
      %p47 = scmp.eq.s32.totalorder %s25, 1
      %p48 = por %p46, %p47
      %p50 = scmp.ne.s32.totalorder %s33, %s49
      %p51 = scmp.eq.s32.totalorder %s25, 0
      %p52 = por %p50, %p51
      %s53 = ssub.s32 %s19, %s26
      %p54 = scmp.eq.s32.totalorder %s53, 0
      %s56 = sadd.s32 %s55, 1
      %s57 = scalar_select %p54, %s55, %s56
      %p60 = pneg %p54
      %p61 = scmp.eq.s32.totalorder %s19, 1
      %p62 = por %p60, %p61
      %p63 = scmp.ne.s32.totalorder %s55, %s58
      %p64 = scmp.eq.s32.totalorder %s19, 0
      %p65 = por %p63, %p64
      %p66 = scmp.ne.s32.totalorder %s55, %s58
      %p67 = scmp.eq.s32.totalorder %s24, 1
      %p68 = por %p66, %p67
      %p69 = scmp.ne.s32.totalorder %s58, %s59
      %p70 = scmp.eq.s32.totalorder %s24, 0
      %p71 = por %p69, %p70
      %p72 = scmp.ne.s32.totalorder %s58, %s59
      %p73 = scmp.eq.s32.totalorder %s25, 1
      %p74 = por %p72, %p73
      %p76 = scmp.ne.s32.totalorder %s59, %s75
      %p77 = scmp.eq.s32.totalorder %s25, 0
      %p78 = por %p76, %p77
      %s80 = sadd.s32 %s79, 1
      %p83 = scmp.eq.s32.totalorder %s19, 1
      %p84 = scmp.ne.s32.totalorder %s79, %s81
      %p85 = scmp.eq.s32.totalorder %s19, 0
      %p86 = por %p84, %p85
      %p87 = scmp.ne.s32.totalorder %s79, %s81
      %p88 = scmp.eq.s32.totalorder %s24, 1
      %p89 = por %p87, %p88
      %p90 = scmp.ne.s32.totalorder %s81, %s82
      %p91 = scmp.eq.s32.totalorder %s24, 0
      %p92 = por %p90, %p91
      %p93 = scmp.ne.s32.totalorder %s81, %s82
      %p94 = scmp.eq.s32.totalorder %s25, 1
      %p95 = por %p93, %p94
      %p97 = scmp.ne.s32.totalorder %s82, %s96
      %p98 = scmp.eq.s32.totalorder %s25, 0
      %p99 = por %p97, %p98
      %s101 = sadd.s32 %s100, 1
      %p104 = scmp.eq.s32.totalorder %s19, 1
      %p105 = scmp.ne.s32.totalorder %s100, %s102
      %p106 = scmp.eq.s32.totalorder %s19, 0
      %p107 = por %p105, %p106
      %p108 = scmp.ne.s32.totalorder %s100, %s102
      %p109 = scmp.eq.s32.totalorder %s24, 1
      %p110 = por %p108, %p109
      %p111 = scmp.ne.s32.totalorder %s102, %s103
      %p112 = scmp.eq.s32.totalorder %s24, 0
      %p113 = por %p111, %p112
      %p114 = scmp.ne.s32.totalorder %s102, %s103
      %p115 = scmp.eq.s32.totalorder %s25, 1
      %p116 = por %p114, %p115
      %p118 = scmp.ne.s32.totalorder %s103, %s117
      %p119 = scmp.eq.s32.totalorder %s25, 0
      %p120 = por %p118, %p119
      %s122 = sadd.s32 %s121, 1
      %p125 = scmp.eq.s32.totalorder %s19, 1
      %p126 = scmp.ne.s32.totalorder %s121, %s123
      %p127 = scmp.eq.s32.totalorder %s19, 0
      %p128 = por %p126, %p127
      %p129 = scmp.ne.s32.totalorder %s121, %s123
      %p130 = scmp.eq.s32.totalorder %s24, 1
      %p131 = por %p129, %p130
      %p132 = scmp.ne.s32.totalorder %s123, %s124
      %p133 = scmp.eq.s32.totalorder %s24, 0
      %p134 = por %p132, %p133
      %p135 = scmp.ne.s32.totalorder %s123, %s124
      %p136 = scmp.eq.s32.totalorder %s25, 1
      %p137 = por %p135, %p136
      %p139 = scmp.ne.s32.totalorder %s124, %s138
      %p140 = scmp.eq.s32.totalorder %s25, 0
      %p141 = por %p139, %p140
      %s142 = ssub.s32 %s19, %s26
      %p143 = scmp.eq.s32.totalorder %s142, 0
      %s145 = sadd.s32 %s144, 1
      %s146 = scalar_select %p143, %s144, %s145
      %p149 = pneg %p143
      %p150 = scmp.eq.s32.totalorder %s19, 1
      %p151 = por %p149, %p150
      %p152 = scmp.ne.s32.totalorder %s144, %s147
      %p153 = scmp.eq.s32.totalorder %s19, 0
      %p154 = por %p152, %p153
      %p155 = scmp.ne.s32.totalorder %s144, %s147
      %p156 = scmp.eq.s32.totalorder %s24, 1
      %p157 = por %p155, %p156
      %p158 = scmp.ne.s32.totalorder %s147, %s148
      %p159 = scmp.eq.s32.totalorder %s24, 0
      %p160 = por %p158, %p159
      %p161 = scmp.ne.s32.totalorder %s147, %s148
      %p162 = scmp.eq.s32.totalorder %s25, 1
      %p163 = por %p161, %p162
      %p165 = scmp.ne.s32.totalorder %s148, %s164
      %p166 = scmp.eq.s32.totalorder %s25, 0
      %p167 = por %p165, %p166
      %s169 = sadd.s32 %s168, 1
      %p172 = scmp.eq.s32.totalorder %s19, 1
      %p173 = scmp.ne.s32.totalorder %s168, %s170
      %p174 = scmp.eq.s32.totalorder %s19, 0
      %p175 = por %p173, %p174
      %p176 = scmp.ne.s32.totalorder %s168, %s170
      %p177 = scmp.eq.s32.totalorder %s24, 1
      %p178 = por %p176, %p177
      %p179 = scmp.ne.s32.totalorder %s170, %s171
      %p180 = scmp.eq.s32.totalorder %s24, 0
      %p181 = por %p179, %p180
      %p182 = scmp.ne.s32.totalorder %s170, %s171
      %p183 = scmp.eq.s32.totalorder %s25, 1
      %p184 = por %p182, %p183
      %p186 = scmp.ne.s32.totalorder %s171, %s185
      %p187 = scmp.eq.s32.totalorder %s25, 0
      %p188 = por %p186, %p187
      %s190 = sadd.s32 %s189, 1
      %p193 = scmp.eq.s32.totalorder %s19, 1
      %p194 = scmp.ne.s32.totalorder %s189, %s191
      %p195 = scmp.eq.s32.totalorder %s19, 0
      %p196 = por %p194, %p195
      %p197 = scmp.ne.s32.totalorder %s189, %s191
      %p198 = scmp.eq.s32.totalorder %s24, 1
      %p199 = por %p197, %p198
      %p200 = scmp.ne.s32.totalorder %s191, %s192
      %p201 = scmp.eq.s32.totalorder %s24, 0
      %p202 = por %p200, %p201
      %p203 = scmp.ne.s32.totalorder %s191, %s192
      %p204 = scmp.eq.s32.totalorder %s25, 1
      %p205 = por %p203, %p204
      %p207 = scmp.ne.s32.totalorder %s192, %s206
      %p208 = scmp.eq.s32.totalorder %s25, 0
      %p209 = por %p207, %p208
      %s211 = sadd.s32 %s210, 1
      %p214 = scmp.eq.s32.totalorder %s19, 1
      %p215 = scmp.ne.s32.totalorder %s210, %s212
      %p216 = scmp.eq.s32.totalorder %s19, 0
      %p217 = por %p215, %p216
      %p218 = scmp.ne.s32.totalorder %s210, %s212
      %p219 = scmp.eq.s32.totalorder %s24, 1
      %p220 = por %p218, %p219
      %p221 = scmp.ne.s32.totalorder %s212, %s213
      %p222 = scmp.eq.s32.totalorder %s24, 0
      %p223 = por %p221, %p222
      %p224 = scmp.ne.s32.totalorder %s212, %s213
      %p225 = scmp.eq.s32.totalorder %s25, 1
      %p226 = por %p224, %p225
      %p228 = scmp.ne.s32.totalorder %s213, %s227
      %p229 = scmp.eq.s32.totalorder %s25, 0
      %p230 = por %p228, %p229
      %s232 = sadd.s32 %s231, 1
      %p235 = scmp.eq.s32.totalorder %s19, 1
      %p236 = scmp.ne.s32.totalorder %s231, %s233
      %p237 = scmp.eq.s32.totalorder %s19, 0
      %p238 = por %p236, %p237
      %p239 = scmp.ne.s32.totalorder %s231, %s233
      %p240 = scmp.eq.s32.totalorder %s24, 1
      %p241 = por %p239, %p240
      %p242 = scmp.ne.s32.totalorder %s233, %s234
      %p243 = scmp.eq.s32.totalorder %s24, 0
      %p244 = por %p242, %p243
      %p245 = scmp.ne.s32.totalorder %s233, %s234
      %p246 = scmp.eq.s32.totalorder %s25, 1
      %p247 = por %p245, %p246
      %p249 = scmp.ne.s32.totalorder %s234, %s248
      %p250 = scmp.eq.s32.totalorder %s25, 0
      %p251 = por %p249, %p250
      %s252 = ssub.s32 %s19, %s26
      %p253 = scmp.eq.s32.totalorder %s252, 0
      %s255 = sadd.s32 %s254, 1
      %s256 = scalar_select %p253, %s254, %s255
      %p259 = pneg %p253
      %p260 = scmp.eq.s32.totalorder %s19, 1
      %p261 = por %p259, %p260
      %p262 = scmp.ne.s32.totalorder %s254, %s257
      %p263 = scmp.eq.s32.totalorder %s19, 0
      %p264 = por %p262, %p263
      %p265 = scmp.ne.s32.totalorder %s254, %s257
      %p266 = scmp.eq.s32.totalorder %s24, 1
      %p267 = por %p265, %p266
      %p268 = scmp.ne.s32.totalorder %s257, %s258
      %p269 = scmp.eq.s32.totalorder %s24, 0
      %p270 = por %p268, %p269
      %p271 = scmp.ne.s32.totalorder %s257, %s258
      %p272 = scmp.eq.s32.totalorder %s25, 1
      %p273 = por %p271, %p272
      %p275 = scmp.ne.s32.totalorder %s258, %s274
      %p276 = scmp.eq.s32.totalorder %s25, 0
      %p277 = por %p275, %p276
      %p278 = scmp.le.s32.totalorder 1, %s19
      %p279 = scmp.lt.s32.totalorder %s19, 3
      %p280 = pnand %p278, %p279
      %p281 = pneg %p280
      // Predicated region
      $region9: #{tpu_custom_call.1} parent=5 // pred_check
        _
      $region10: #{tpu_custom_call.1} parent=5 // pred_check_branch
        %283 = sbr.rel (%p280) target = $region12
      $region11: #{tpu_custom_call.1} parent=5 // pred_region
        %s284 = ssub.s32 %s19, 1
        // Predicated region
        $region13: #{tpu_custom_call.1} parent=11 // pred_check
          %p285 = pneg %p92
        $region14: #{tpu_custom_call.1} parent=11 // pred_check_branch
          %287 = sbr.rel (%p285) target = $region16
        $region15: #{tpu_custom_call.1} parent=11 // pred_region
          _
        $region16: #{tpu_custom_call.1} parent=11 // pred_fallthru
          _
        // Predicated region
        $region17: #{tpu_custom_call.1} parent=11 // pred_check
          %p288 = pneg %p113
        $region18: #{tpu_custom_call.1} parent=11 // pred_check_branch
          %290 = sbr.rel (%p288) target = $region20
        $region19: #{tpu_custom_call.1} parent=11 // pred_region
          _
        $region20: #{tpu_custom_call.1} parent=11 // pred_fallthru
          _
        // Predicated region
        $region21: #{tpu_custom_call.1} parent=11 // pred_check
          %p291 = pneg %p134
        $region22: #{tpu_custom_call.1} parent=11 // pred_check_branch
          %293 = sbr.rel (%p291) target = $region24
        $region23: #{tpu_custom_call.1} parent=11 // pred_region
          _
        $region24: #{tpu_custom_call.1} parent=11 // pred_fallthru
          _
        // Predicated region
        $region25: #{tpu_custom_call.1} parent=11 // pred_check
          %p294 = pneg %p181
        $region26: #{tpu_custom_call.1} parent=11 // pred_check_branch
          %296 = sbr.rel (%p294) target = $region28
        $region27: #{tpu_custom_call.1} parent=11 // pred_region
          _
        $region28: #{tpu_custom_call.1} parent=11 // pred_fallthru
          _
        // Predicated region
        $region29: #{tpu_custom_call.1} parent=11 // pred_check
          %p297 = pneg %p202
        $region30: #{tpu_custom_call.1} parent=11 // pred_check_branch
          %299 = sbr.rel (%p297) target = $region32
        $region31: #{tpu_custom_call.1} parent=11 // pred_region
          _
        $region32: #{tpu_custom_call.1} parent=11 // pred_fallthru
          _
        // Predicated region
        $region33: #{tpu_custom_call.1} parent=11 // pred_check
          %p300 = pneg %p223
        $region34: #{tpu_custom_call.1} parent=11 // pred_check_branch
          %302 = sbr.rel (%p300) target = $region36
        $region35: #{tpu_custom_call.1} parent=11 // pred_region
          _
        $region36: #{tpu_custom_call.1} parent=11 // pred_fallthru
          _
        // Predicated region
        $region37: #{tpu_custom_call.1} parent=11 // pred_check
          %p303 = pneg %p244
        $region38: #{tpu_custom_call.1} parent=11 // pred_check_branch
          %305 = sbr.rel (%p303) target = $region40
        $region39: #{tpu_custom_call.1} parent=11 // pred_region
          _
        $region40: #{tpu_custom_call.1} parent=11 // pred_fallthru
          _
      $region12: #{tpu_custom_call.1} parent=5 // pred_fallthru
        _
      %p306 = scmp.lt.s32.totalorder %s19, 2
      // Predicated region
      $region41: #{tpu_custom_call.1} parent=5 // pred_check
        %p307 = pneg %p306
      $region42: #{tpu_custom_call.1} parent=5 // pred_check_branch
        %309 = sbr.rel (%p307) target = $region44
      $region43: #{tpu_custom_call.1} parent=5 // pred_region
        // Predicated region
        $region45: #{tpu_custom_call.1} parent=43 // pred_check
          %p310 = pneg %p39
        $region46: #{tpu_custom_call.1} parent=43 // pred_check_branch
          %312 = sbr.rel (%p310) target = $region48
        $region47: #{tpu_custom_call.1} parent=43 // pred_region
          %s313 = smul.u32 16, %s19
          %p314 = scmp.lt.s32.totalorder %s313, 31
          %s315 = scalar_select %p314, %s313, 31
          %s316 = smul.addr %s315, 8
          %s317 = scalar_lea.vmem %s0, %s316
          %s318 = smul.u32 16, %s19
        $region48: #{tpu_custom_call.1} parent=43 // pred_fallthru
          _
        // Predicated region
        $region49: #{tpu_custom_call.1} parent=43 // pred_check
          %p319 = pneg %p65
        $region50: #{tpu_custom_call.1} parent=43 // pred_check_branch
          %321 = sbr.rel (%p319) target = $region52
        $region51: #{tpu_custom_call.1} parent=43 // pred_region
          %s322 = smul.u32 16, %s19
          %p323 = scmp.lt.s32.totalorder %s322, 31
          %s324 = scalar_select %p323, %s322, 31
          %s325 = smul.addr %s324, 8
          %s326 = scalar_lea.vmem %s1, %s325
          %s327 = smul.u32 16, %s19
        $region52: #{tpu_custom_call.1} parent=43 // pred_fallthru
          _
        // Predicated region
        $region53: #{tpu_custom_call.1} parent=43 // pred_check
          %p328 = pneg %p154
        $region54: #{tpu_custom_call.1} parent=43 // pred_check_branch
          %330 = sbr.rel (%p328) target = $region56
        $region55: #{tpu_custom_call.1} parent=43 // pred_region
          %s331 = smul.u32 16, %s19
          %p332 = scmp.lt.s32.totalorder %s331, 31
          %s333 = scalar_select %p332, %s331, 31
          %s334 = smul.addr %s333, 8
          %s335 = scalar_lea.vmem %s5, %s334
          %s336 = smul.u32 16, %s19
        $region56: #{tpu_custom_call.1} parent=43 // pred_fallthru
          _
      $region44: #{tpu_custom_call.1} parent=5 // pred_fallthru
        _
      %p337 = scmp.le.s32.totalorder 1, %s19
      %p338 = scmp.lt.s32.totalorder %s19, 3
      %p339 = pnand %p337, %p338
      %p340 = pneg %p339
      // Predicated region
      $region57: #{tpu_custom_call.1} parent=5 // pred_check
        _
      $region58: #{tpu_custom_call.1} parent=5 // pred_check_branch
        %342 = sbr.rel (%p339) target = $region60
      $region59: #{tpu_custom_call.1} parent=5 // pred_region
        %s343 = ssub.s32 %s19, 1
        %s344 = smul.u32 16, %s24
        %p345 = scmp.lt.s32.totalorder %s344, 31
        %s346 = scalar_select %p345, %s344, 31
        %s347 = smul.addr %s346, 8
        %s348 = scalar_lea.vmem %s0, %s347
        %p349 = pneg %p45
        %p350 = pneg %p42
        %s351 = smul.u32 16, %s24
        %p352 = scmp.lt.s32.totalorder %s351, 31
        %s353 = scalar_select %p352, %s351, 31
        %s354 = smul.addr %s353, 8
        %s355 = scalar_lea.vmem %s1, %s354
        %p356 = pneg %p71
        %p357 = pneg %p68
        %p358 = pneg %p92
        %p359 = pneg %p89
        %p360 = pneg %p113
        %p361 = pneg %p110
        %p362 = pneg %p134
        %p363 = pneg %p131
        %s364 = smul.u32 16, %s24
        %p365 = scmp.lt.s32.totalorder %s364, 31
        %s366 = scalar_select %p365, %s364, 31
        %s367 = smul.addr %s366, 8
        %s368 = scalar_lea.vmem %s5, %s367
        %p369 = pneg %p160
        %p370 = pneg %p157
        %p371 = pneg %p181
        %p372 = pneg %p178
        %p373 = pneg %p202
        %p374 = pneg %p199
        %p375 = pneg %p223
        %p376 = pneg %p220
        %p377 = pneg %p244
        %p378 = pneg %p241
        %p379 = pneg %p270
        %p380 = pneg %p267
        %s381 = sand.u32 %s257, 1
        %s382 = scalar_lea.sflag [#allocation3], %s381
        %s383 = sand.u32 %s257, 1
        %s384 = smul.addr %s383, 128
        %s385 = scalar_lea.vmem [#allocation2], %s384
        %s386 = smul.u32 16, %s24
        %p387 = scmp.lt.s32.totalorder %s386, 31
        %s388 = scalar_select %p387, %s386, 31
        %s389 = smul.addr %s388, 8
        %s390 = scalar_lea.vmem %s0, %s389
        %s391 = smul.u32 16, %s24
        %s392 = smul.u32 16, %s24
        %p393 = scmp.lt.s32.totalorder %s392, 31
        %s394 = scalar_select %p393, %s392, 31
        %s395 = smul.addr %s394, 8
        %s396 = scalar_lea.vmem %s1, %s395
        %s397 = smul.u32 16, %s24
        %s398 = smul.u32 16, %s24
        %p399 = scmp.lt.s32.totalorder %s398, 31
        %s400 = scalar_select %p399, %s398, 31
        %s401 = smul.addr %s400, 8
        %s402 = scalar_lea.vmem %s5, %s401
        %s403 = smul.u32 16, %s24
        %s404 = smul.u32 16, %s24
        %v405 = vld [vmem:[%s390] sm:$0xff]
        %v406 = vld [vmem:[%s390 + $0x8] sm:$0xff]
        %v407 = vld [vmem:[%s390 + $0x10] sm:$0xff]
        %v408 = vld [vmem:[%s390 + $0x18] sm:$0xff]
        %v409 = vld [vmem:[%s390 + $0x20] sm:$0xff]
        %v410 = vld [vmem:[%s390 + $0x28] sm:$0xff]
        %v411 = vld [vmem:[%s390 + $0x30] sm:$0xff]
        %v412 = vld [vmem:[%s390 + $0x38] sm:$0xff]
        %v413 = vld [vmem:[%s390 + $0x40] sm:$0xff]
        %v414 = vld [vmem:[%s390 + $0x48] sm:$0xff]
        %v415 = vld [vmem:[%s390 + $0x50] sm:$0xff]
        %v416 = vld [vmem:[%s390 + $0x58] sm:$0xff]
        %v417 = vld [vmem:[%s390 + $0x60] sm:$0xff]
        %v418 = vld [vmem:[%s390 + $0x68] sm:$0xff]
        %v419 = vld [vmem:[%s390 + $0x70] sm:$0xff]
        %v420 = vld [vmem:[%s390 + $0x78] sm:$0xff]
        %v421 = vld [vmem:[%s2] sm:$0x7]
        %423 = vset.pattern.permute.xlu0 0
        %424 = vperm.xlu0 %423, %v405
        %v425 = vpop.permute.xlu0 %424
        %428 = vset.pattern.permute.xlu0 0
        %429 = vperm.xlu0 %428, %v406
        %v430 = vpop.permute.xlu0 %429
        %433 = vset.pattern.permute.xlu0 0
        %434 = vperm.xlu0 %433, %v407
        %v435 = vpop.permute.xlu0 %434
        %438 = vset.pattern.permute.xlu0 0
        %439 = vperm.xlu0 %438, %v408
        %v440 = vpop.permute.xlu0 %439
        %443 = vset.pattern.permute.xlu0 0
        %444 = vperm.xlu0 %443, %v409
        %v445 = vpop.permute.xlu0 %444
        %448 = vset.pattern.permute.xlu0 0
        %449 = vperm.xlu0 %448, %v410
        %v450 = vpop.permute.xlu0 %449
        %453 = vset.pattern.permute.xlu0 0
        %454 = vperm.xlu0 %453, %v411
        %v455 = vpop.permute.xlu0 %454
        %458 = vset.pattern.permute.xlu0 0
        %459 = vperm.xlu0 %458, %v412
        %v460 = vpop.permute.xlu0 %459
        %463 = vset.pattern.permute.xlu0 0
        %464 = vperm.xlu0 %463, %v413
        %v465 = vpop.permute.xlu0 %464
        %468 = vset.pattern.permute.xlu0 0
        %469 = vperm.xlu0 %468, %v414
        %v470 = vpop.permute.xlu0 %469
        %473 = vset.pattern.permute.xlu0 0
        %474 = vperm.xlu0 %473, %v415
        %v475 = vpop.permute.xlu0 %474
        %478 = vset.pattern.permute.xlu0 0
        %479 = vperm.xlu0 %478, %v416
        %v480 = vpop.permute.xlu0 %479
        %483 = vset.pattern.permute.xlu0 0
        %484 = vperm.xlu0 %483, %v417
        %v485 = vpop.permute.xlu0 %484
        %488 = vset.pattern.permute.xlu0 0
        %489 = vperm.xlu0 %488, %v418
        %v490 = vpop.permute.xlu0 %489
        %493 = vset.pattern.permute.xlu0 0
        %494 = vperm.xlu0 %493, %v419
        %v495 = vpop.permute.xlu0 %494
        %498 = vset.pattern.permute.xlu0 0
        %499 = vperm.xlu0 %498, %v420
        %v500 = vpop.permute.xlu0 %499
        %v502 = vlaneseq
        %v503 = vshrl.u32 %v502, 7
        %v504 = vsub.s32 0, %v503
        %v505 = vrot.slane %v421, %v504
        %v506 = vsub.f32 %v425, %v505
        %v507 = vsub.f32 %v430, %v505
        %v508 = vsub.f32 %v435, %v505
        %v509 = vsub.f32 %v440, %v505
        %v510 = vsub.f32 %v445, %v505
        %v511 = vsub.f32 %v450, %v505
        %v512 = vsub.f32 %v455, %v505
        %v513 = vsub.f32 %v460, %v505
        %v514 = vsub.f32 %v465, %v505
        %v515 = vsub.f32 %v470, %v505
        %v516 = vsub.f32 %v475, %v505
        %v517 = vsub.f32 %v480, %v505
        %v518 = vsub.f32 %v485, %v505
        %v519 = vsub.f32 %v490, %v505
        %v520 = vsub.f32 %v495, %v505
        %v521 = vsub.f32 %v500, %v505
        %v522 = vmul.f32 %v506, %v506
        %v523 = vmul.f32 %v507, %v507
        %v524 = vmul.f32 %v508, %v508
        %v525 = vmul.f32 %v509, %v509
        %v526 = vmul.f32 %v510, %v510
        %v527 = vmul.f32 %v511, %v511
        %v528 = vmul.f32 %v512, %v512
        %v529 = vmul.f32 %v513, %v513
        %v530 = vmul.f32 %v514, %v514
        %v531 = vmul.f32 %v515, %v515
        %v532 = vmul.f32 %v516, %v516
        %v533 = vmul.f32 %v517, %v517
        %v534 = vmul.f32 %v518, %v518
        %v535 = vmul.f32 %v519, %v519
        %v536 = vmul.f32 %v520, %v520
        %v537 = vmul.f32 %v521, %v521
        %v538 = vadd.f32 %v522, 0.0
        %v539 = vadd.f32 %v523, 0.0
        %v540 = vadd.f32 %v524, 0.0
        %v541 = vadd.f32 %v525, 0.0
        %v542 = vadd.f32 %v526, 0.0
        %v543 = vadd.f32 %v527, 0.0
        %v544 = vadd.f32 %v528, 0.0
        %v545 = vadd.f32 %v529, 0.0
        %v546 = vadd.f32 %v530, 0.0
        %v547 = vadd.f32 %v531, 0.0
        %v548 = vadd.f32 %v532, 0.0
        %v549 = vadd.f32 %v533, 0.0
        %v550 = vadd.f32 %v534, 0.0
        %v551 = vadd.f32 %v535, 0.0
        %v552 = vadd.f32 %v536, 0.0
        %v553 = vadd.f32 %v537, 0.0
        %554 = vset.pattern.permute.xlu0 1
        %555 = vperm.xlu0 %554, %v405
        %v556 = vpop.permute.xlu0 %555
        %558 = vset.pattern.permute.xlu0 1
        %559 = vperm.xlu0 %558, %v406
        %v560 = vpop.permute.xlu0 %559
        %562 = vset.pattern.permute.xlu0 1
        %563 = vperm.xlu0 %562, %v407
        %v564 = vpop.permute.xlu0 %563
        %566 = vset.pattern.permute.xlu0 1
        %567 = vperm.xlu0 %566, %v408
        %v568 = vpop.permute.xlu0 %567
        %570 = vset.pattern.permute.xlu0 1
        %571 = vperm.xlu0 %570, %v409
        %v572 = vpop.permute.xlu0 %571
        %574 = vset.pattern.permute.xlu0 1
        %575 = vperm.xlu0 %574, %v410
        %v576 = vpop.permute.xlu0 %575
        %578 = vset.pattern.permute.xlu0 1
        %579 = vperm.xlu0 %578, %v411
        %v580 = vpop.permute.xlu0 %579
        %582 = vset.pattern.permute.xlu0 1
        %583 = vperm.xlu0 %582, %v412
        %v584 = vpop.permute.xlu0 %583
        %586 = vset.pattern.permute.xlu0 1
        %587 = vperm.xlu0 %586, %v413
        %v588 = vpop.permute.xlu0 %587
        %590 = vset.pattern.permute.xlu0 1
        %591 = vperm.xlu0 %590, %v414
        %v592 = vpop.permute.xlu0 %591
        %594 = vset.pattern.permute.xlu0 1
        %595 = vperm.xlu0 %594, %v415
        %v596 = vpop.permute.xlu0 %595
        %598 = vset.pattern.permute.xlu0 1
        %599 = vperm.xlu0 %598, %v416
        %v600 = vpop.permute.xlu0 %599
        %602 = vset.pattern.permute.xlu0 1
        %603 = vperm.xlu0 %602, %v417
        %v604 = vpop.permute.xlu0 %603
        %606 = vset.pattern.permute.xlu0 1
        %607 = vperm.xlu0 %606, %v418
        %v608 = vpop.permute.xlu0 %607
        %610 = vset.pattern.permute.xlu0 1
        %611 = vperm.xlu0 %610, %v419
        %v612 = vpop.permute.xlu0 %611
        %614 = vset.pattern.permute.xlu0 1
        %615 = vperm.xlu0 %614, %v420
        %v616 = vpop.permute.xlu0 %615
        %v618 = vlaneseq
        %v619 = vshrl.u32 %v618, 7
        %v620 = vsub.s32 1, %v619
        %v621 = vrot.slane %v421, %v620
        %v622 = vsub.f32 %v556, %v621
        %v623 = vsub.f32 %v560, %v621
        %v624 = vsub.f32 %v564, %v621
        %v625 = vsub.f32 %v568, %v621
        %v626 = vsub.f32 %v572, %v621
        %v627 = vsub.f32 %v576, %v621
        %v628 = vsub.f32 %v580, %v621
        %v629 = vsub.f32 %v584, %v621
        %v630 = vsub.f32 %v588, %v621
        %v631 = vsub.f32 %v592, %v621
        %v632 = vsub.f32 %v596, %v621
        %v633 = vsub.f32 %v600, %v621
        %v634 = vsub.f32 %v604, %v621
        %v635 = vsub.f32 %v608, %v621
        %v636 = vsub.f32 %v612, %v621
        %v637 = vsub.f32 %v616, %v621
        %v638 = vmul.f32 %v622, %v622
        %v639 = vmul.f32 %v623, %v623
        %v640 = vmul.f32 %v624, %v624
        %v641 = vmul.f32 %v625, %v625
        %v642 = vmul.f32 %v626, %v626
        %v643 = vmul.f32 %v627, %v627
        %v644 = vmul.f32 %v628, %v628
        %v645 = vmul.f32 %v629, %v629
        %v646 = vmul.f32 %v630, %v630
        %v647 = vmul.f32 %v631, %v631
        %v648 = vmul.f32 %v632, %v632
        %v649 = vmul.f32 %v633, %v633
        %v650 = vmul.f32 %v634, %v634
        %v651 = vmul.f32 %v635, %v635
        %v652 = vmul.f32 %v636, %v636
        %v653 = vmul.f32 %v637, %v637
        %v654 = vadd.f32 %v538, %v638
        %v655 = vadd.f32 %v539, %v639
        %v656 = vadd.f32 %v540, %v640
        %v657 = vadd.f32 %v541, %v641
        %v658 = vadd.f32 %v542, %v642
        %v659 = vadd.f32 %v543, %v643
        %v660 = vadd.f32 %v544, %v644
        %v661 = vadd.f32 %v545, %v645
        %v662 = vadd.f32 %v546, %v646
        %v663 = vadd.f32 %v547, %v647
        %v664 = vadd.f32 %v548, %v648
        %v665 = vadd.f32 %v549, %v649
        %v666 = vadd.f32 %v550, %v650
        %v667 = vadd.f32 %v551, %v651
        %v668 = vadd.f32 %v552, %v652
        %v669 = vadd.f32 %v553, %v653
        %670 = vset.pattern.permute.xlu0 2
        %671 = vperm.xlu0 %670, %v405
        %v672 = vpop.permute.xlu0 %671
        %674 = vset.pattern.permute.xlu0 2
        %675 = vperm.xlu0 %674, %v406
        %v676 = vpop.permute.xlu0 %675
        %678 = vset.pattern.permute.xlu0 2
        %679 = vperm.xlu0 %678, %v407
        %v680 = vpop.permute.xlu0 %679
        %682 = vset.pattern.permute.xlu0 2
        %683 = vperm.xlu0 %682, %v408
        %v684 = vpop.permute.xlu0 %683
        %686 = vset.pattern.permute.xlu0 2
        %687 = vperm.xlu0 %686, %v409
        %v688 = vpop.permute.xlu0 %687
        %690 = vset.pattern.permute.xlu0 2
        %691 = vperm.xlu0 %690, %v410
        %v692 = vpop.permute.xlu0 %691
        %694 = vset.pattern.permute.xlu0 2
        %695 = vperm.xlu0 %694, %v411
        %v696 = vpop.permute.xlu0 %695
        %698 = vset.pattern.permute.xlu0 2
        %699 = vperm.xlu0 %698, %v412
        %v700 = vpop.permute.xlu0 %699
        %702 = vset.pattern.permute.xlu0 2
        %703 = vperm.xlu0 %702, %v413
        %v704 = vpop.permute.xlu0 %703
        %706 = vset.pattern.permute.xlu0 2
        %707 = vperm.xlu0 %706, %v414
        %v708 = vpop.permute.xlu0 %707
        %710 = vset.pattern.permute.xlu0 2
        %711 = vperm.xlu0 %710, %v415
        %v712 = vpop.permute.xlu0 %711
        %714 = vset.pattern.permute.xlu0 2
        %715 = vperm.xlu0 %714, %v416
        %v716 = vpop.permute.xlu0 %715
        %718 = vset.pattern.permute.xlu0 2
        %719 = vperm.xlu0 %718, %v417
        %v720 = vpop.permute.xlu0 %719
        %722 = vset.pattern.permute.xlu0 2
        %723 = vperm.xlu0 %722, %v418
        %v724 = vpop.permute.xlu0 %723
        %726 = vset.pattern.permute.xlu0 2
        %727 = vperm.xlu0 %726, %v419
        %v728 = vpop.permute.xlu0 %727
        %730 = vset.pattern.permute.xlu0 2
        %731 = vperm.xlu0 %730, %v420
        %v732 = vpop.permute.xlu0 %731
        %v734 = vlaneseq
        %v735 = vshrl.u32 %v734, 7
        %v736 = vsub.s32 2, %v735
        %v737 = vrot.slane %v421, %v736
        %v738 = vsub.f32 %v672, %v737
        %v739 = vsub.f32 %v676, %v737
        %v740 = vsub.f32 %v680, %v737
        %v741 = vsub.f32 %v684, %v737
        %v742 = vsub.f32 %v688, %v737
        %v743 = vsub.f32 %v692, %v737
        %v744 = vsub.f32 %v696, %v737
        %v745 = vsub.f32 %v700, %v737
        %v746 = vsub.f32 %v704, %v737
        %v747 = vsub.f32 %v708, %v737
        %v748 = vsub.f32 %v712, %v737
        %v749 = vsub.f32 %v716, %v737
        %v750 = vsub.f32 %v720, %v737
        %v751 = vsub.f32 %v724, %v737
        %v752 = vsub.f32 %v728, %v737
        %v753 = vsub.f32 %v732, %v737
        %v754 = vmul.f32 %v738, %v738
        %v755 = vmul.f32 %v739, %v739
        %v756 = vmul.f32 %v740, %v740
        %v757 = vmul.f32 %v741, %v741
        %v758 = vmul.f32 %v742, %v742
        %v759 = vmul.f32 %v743, %v743
        %v760 = vmul.f32 %v744, %v744
        %v761 = vmul.f32 %v745, %v745
        %v762 = vmul.f32 %v746, %v746
        %v763 = vmul.f32 %v747, %v747
        %v764 = vmul.f32 %v748, %v748
        %v765 = vmul.f32 %v749, %v749
        %v766 = vmul.f32 %v750, %v750
        %v767 = vmul.f32 %v751, %v751
        %v768 = vmul.f32 %v752, %v752
        %v769 = vmul.f32 %v753, %v753
        %v770 = vadd.f32 %v654, %v754
        %v771 = vadd.f32 %v655, %v755
        %v772 = vadd.f32 %v656, %v756
        %v773 = vadd.f32 %v657, %v757
        %v774 = vadd.f32 %v658, %v758
        %v775 = vadd.f32 %v659, %v759
        %v776 = vadd.f32 %v660, %v760
        %v777 = vadd.f32 %v661, %v761
        %v778 = vadd.f32 %v662, %v762
        %v779 = vadd.f32 %v663, %v763
        %v780 = vadd.f32 %v664, %v764
        %v781 = vadd.f32 %v665, %v765
        %v782 = vadd.f32 %v666, %v766
        %v783 = vadd.f32 %v667, %v767
        %v784 = vadd.f32 %v668, %v768
        %v785 = vadd.f32 %v669, %v769
        %v786 = vld [vmem:[%s396] sm:$0xff]
        %v787 = vld [vmem:[%s396 + $0x8] sm:$0xff]
        %v788 = vld [vmem:[%s396 + $0x10] sm:$0xff]
        %v789 = vld [vmem:[%s396 + $0x18] sm:$0xff]
        %v790 = vld [vmem:[%s396 + $0x20] sm:$0xff]
        %v791 = vld [vmem:[%s396 + $0x28] sm:$0xff]
        %v792 = vld [vmem:[%s396 + $0x30] sm:$0xff]
        %v793 = vld [vmem:[%s396 + $0x38] sm:$0xff]
        %v794 = vld [vmem:[%s396 + $0x40] sm:$0xff]
        %v795 = vld [vmem:[%s396 + $0x48] sm:$0xff]
        %v796 = vld [vmem:[%s396 + $0x50] sm:$0xff]
        %v797 = vld [vmem:[%s396 + $0x58] sm:$0xff]
        %v798 = vld [vmem:[%s396 + $0x60] sm:$0xff]
        %v799 = vld [vmem:[%s396 + $0x68] sm:$0xff]
        %v800 = vld [vmem:[%s396 + $0x70] sm:$0xff]
        %v801 = vld [vmem:[%s396 + $0x78] sm:$0xff]
        %v802 = vld [vmem:[%s3] sm:$0x1]
        %803 = vset.pattern.permute.xlu0 0
        %804 = vperm.xlu0 %803, %v786
        %v805 = vpop.permute.xlu0 %804
        %806 = vset.pattern.permute.xlu0 0
        %807 = vperm.xlu0 %806, %v787
        %v808 = vpop.permute.xlu0 %807
        %809 = vset.pattern.permute.xlu0 0
        %810 = vperm.xlu0 %809, %v788
        %v811 = vpop.permute.xlu0 %810
        %812 = vset.pattern.permute.xlu0 0
        %813 = vperm.xlu0 %812, %v789
        %v814 = vpop.permute.xlu0 %813
        %815 = vset.pattern.permute.xlu0 0
        %816 = vperm.xlu0 %815, %v790
        %v817 = vpop.permute.xlu0 %816
        %818 = vset.pattern.permute.xlu0 0
        %819 = vperm.xlu0 %818, %v791
        %v820 = vpop.permute.xlu0 %819
        %821 = vset.pattern.permute.xlu0 0
        %822 = vperm.xlu0 %821, %v792
        %v823 = vpop.permute.xlu0 %822
        %824 = vset.pattern.permute.xlu0 0
        %825 = vperm.xlu0 %824, %v793
        %v826 = vpop.permute.xlu0 %825
        %827 = vset.pattern.permute.xlu0 0
        %828 = vperm.xlu0 %827, %v794
        %v829 = vpop.permute.xlu0 %828
        %830 = vset.pattern.permute.xlu0 0
        %831 = vperm.xlu0 %830, %v795
        %v832 = vpop.permute.xlu0 %831
        %833 = vset.pattern.permute.xlu0 0
        %834 = vperm.xlu0 %833, %v796
        %v835 = vpop.permute.xlu0 %834
        %836 = vset.pattern.permute.xlu0 0
        %837 = vperm.xlu0 %836, %v797
        %v838 = vpop.permute.xlu0 %837
        %839 = vset.pattern.permute.xlu0 0
        %840 = vperm.xlu0 %839, %v798
        %v841 = vpop.permute.xlu0 %840
        %842 = vset.pattern.permute.xlu0 0
        %843 = vperm.xlu0 %842, %v799
        %v844 = vpop.permute.xlu0 %843
        %845 = vset.pattern.permute.xlu0 0
        %846 = vperm.xlu0 %845, %v800
        %v847 = vpop.permute.xlu0 %846
        %848 = vset.pattern.permute.xlu0 0
        %849 = vperm.xlu0 %848, %v801
        %v850 = vpop.permute.xlu0 %849
        %v851 = vlaneseq
        %v852 = vshrl.u32 %v851, 7
        %v853 = vsub.s32 0, %v852
        %v854 = vrot.slane %v802, %v853
        %vm855 = vcmp.eq.s32.totalorder %v805, %v854
        %vm856 = vcmp.eq.s32.totalorder %v808, %v854
        %vm857 = vcmp.eq.s32.totalorder %v811, %v854
        %vm858 = vcmp.eq.s32.totalorder %v814, %v854
        %vm859 = vcmp.eq.s32.totalorder %v817, %v854
        %vm860 = vcmp.eq.s32.totalorder %v820, %v854
        %vm861 = vcmp.eq.s32.totalorder %v823, %v854
        %vm862 = vcmp.eq.s32.totalorder %v826, %v854
        %vm863 = vcmp.eq.s32.totalorder %v829, %v854
        %vm864 = vcmp.eq.s32.totalorder %v832, %v854
        %vm865 = vcmp.eq.s32.totalorder %v835, %v854
        %vm866 = vcmp.eq.s32.totalorder %v838, %v854
        %vm867 = vcmp.eq.s32.totalorder %v841, %v854
        %vm868 = vcmp.eq.s32.totalorder %v844, %v854
        %vm869 = vcmp.eq.s32.totalorder %v847, %v854
        %vm870 = vcmp.eq.s32.totalorder %v850, %v854
        %v871 = vsel %vm855, %v770, inf
        %v872 = vsel %vm856, %v771, inf
        %v873 = vsel %vm857, %v772, inf
        %v874 = vsel %vm858, %v773, inf
        %v875 = vsel %vm859, %v774, inf
        %v876 = vsel %vm860, %v775, inf
        %v877 = vsel %vm861, %v776, inf
        %v878 = vsel %vm862, %v777, inf
        %v879 = vsel %vm863, %v778, inf
        %v880 = vsel %vm864, %v779, inf
        %v881 = vsel %vm865, %v780, inf
        %v882 = vsel %vm866, %v781, inf
        %v883 = vsel %vm867, %v782, inf
        %v884 = vsel %vm868, %v783, inf
        %v885 = vsel %vm869, %v784, inf
        %v886 = vsel %vm870, %v785, inf
        %vm887 = vcmask 523264
        %v888 = vsel %vm887, %v871, inf
        %889 = vmin.xlane.f32.xlu0 %v888
        %v890 = vpop.xlane.xlu0 %889
        %v891 = vsel %vm887, %v872, inf
        %892 = vmin.xlane.f32.xlu0 %v891
        %v893 = vpop.xlane.xlu0 %892
        %v894 = vsel %vm887, %v873, inf
        %895 = vmin.xlane.f32.xlu0 %v894
        %v896 = vpop.xlane.xlu0 %895
        %v897 = vsel %vm887, %v874, inf
        %898 = vmin.xlane.f32.xlu0 %v897
        %v899 = vpop.xlane.xlu0 %898
        %v900 = vsel %vm887, %v875, inf
        %901 = vmin.xlane.f32.xlu0 %v900
        %v902 = vpop.xlane.xlu0 %901
        %v903 = vsel %vm887, %v876, inf
        %904 = vmin.xlane.f32.xlu0 %v903
        %v905 = vpop.xlane.xlu0 %904
        %v906 = vsel %vm887, %v877, inf
        %907 = vmin.xlane.f32.xlu0 %v906
        %v908 = vpop.xlane.xlu0 %907
        %v909 = vsel %vm887, %v878, inf
        %910 = vmin.xlane.f32.xlu0 %v909
        %v911 = vpop.xlane.xlu0 %910
        %v912 = vsel %vm887, %v879, inf
        %913 = vmin.xlane.f32.xlu0 %v912
        %v914 = vpop.xlane.xlu0 %913
        %v915 = vsel %vm887, %v880, inf
        %916 = vmin.xlane.f32.xlu0 %v915
        %v917 = vpop.xlane.xlu0 %916
        %v918 = vsel %vm887, %v881, inf
        %919 = vmin.xlane.f32.xlu0 %v918
        %v920 = vpop.xlane.xlu0 %919
        %v921 = vsel %vm887, %v882, inf
        %922 = vmin.xlane.f32.xlu0 %v921
        %v923 = vpop.xlane.xlu0 %922
        %v924 = vsel %vm887, %v883, inf
        %925 = vmin.xlane.f32.xlu0 %v924
        %v926 = vpop.xlane.xlu0 %925
        %v927 = vsel %vm887, %v884, inf
        %928 = vmin.xlane.f32.xlu0 %v927
        %v929 = vpop.xlane.xlu0 %928
        %v930 = vsel %vm887, %v885, inf
        %931 = vmin.xlane.f32.xlu0 %v930
        %v932 = vpop.xlane.xlu0 %931
        %v933 = vsel %vm887, %v886, inf
        %934 = vmin.xlane.f32.xlu0 %v933
        %v935 = vpop.xlane.xlu0 %934
        %vm936 = vcmp.eq.f32.partialorder %v871, %v890
        %vm937 = vcmp.eq.f32.partialorder %v872, %v893
        %vm938 = vcmp.eq.f32.partialorder %v873, %v896
        %vm939 = vcmp.eq.f32.partialorder %v874, %v899
        %vm940 = vcmp.eq.f32.partialorder %v875, %v902
        %vm941 = vcmp.eq.f32.partialorder %v876, %v905
        %vm942 = vcmp.eq.f32.partialorder %v877, %v908
        %vm943 = vcmp.eq.f32.partialorder %v878, %v911
        %vm944 = vcmp.eq.f32.partialorder %v879, %v914
        %vm945 = vcmp.eq.f32.partialorder %v880, %v917
        %vm946 = vcmp.eq.f32.partialorder %v881, %v920
        %vm947 = vcmp.eq.f32.partialorder %v882, %v923
        %vm948 = vcmp.eq.f32.partialorder %v883, %v926
        %vm949 = vcmp.eq.f32.partialorder %v884, %v929
        %vm950 = vcmp.eq.f32.partialorder %v885, %v932
        %vm951 = vcmp.eq.f32.partialorder %v886, %v935
        %v952 = vmax.f32 %v890, 1e-16
        %v953 = vmax.f32 %v893, 1e-16
        %v954 = vmax.f32 %v896, 1e-16
        %v955 = vmax.f32 %v899, 1e-16
        %v956 = vmax.f32 %v902, 1e-16
        %v957 = vmax.f32 %v905, 1e-16
        %v958 = vmax.f32 %v908, 1e-16
        %v959 = vmax.f32 %v911, 1e-16
        %v960 = vmax.f32 %v914, 1e-16
        %v961 = vmax.f32 %v917, 1e-16
        %v962 = vmax.f32 %v920, 1e-16
        %v963 = vmax.f32 %v923, 1e-16
        %v964 = vmax.f32 %v926, 1e-16
        %v965 = vmax.f32 %v929, 1e-16
        %v966 = vmax.f32 %v932, 1e-16
        %v967 = vmax.f32 %v935, 1e-16
        %v968 = vrcp.pop %v952
        %v969 = vmul.f32 1.0, %v968
        %v970 = vrcp.pop %v953
        %v971 = vmul.f32 1.0, %v970
        %v972 = vrcp.pop %v954
        %v973 = vmul.f32 1.0, %v972
        %v974 = vrcp.pop %v955
        %v975 = vmul.f32 1.0, %v974
        %v976 = vrcp.pop %v956
        %v977 = vmul.f32 1.0, %v976
        %v978 = vrcp.pop %v957
        %v979 = vmul.f32 1.0, %v978
        %v980 = vrcp.pop %v958
        %v981 = vmul.f32 1.0, %v980
        %v982 = vrcp.pop %v959
        %v983 = vmul.f32 1.0, %v982
        %v984 = vrcp.pop %v960
        %v985 = vmul.f32 1.0, %v984
        %v986 = vrcp.pop %v961
        %v987 = vmul.f32 1.0, %v986
        %v988 = vrcp.pop %v962
        %v989 = vmul.f32 1.0, %v988
        %v990 = vrcp.pop %v963
        %v991 = vmul.f32 1.0, %v990
        %v992 = vrcp.pop %v964
        %v993 = vmul.f32 1.0, %v992
        %v994 = vrcp.pop %v965
        %v995 = vmul.f32 1.0, %v994
        %v996 = vrcp.pop %v966
        %v997 = vmul.f32 1.0, %v996
        %v998 = vrcp.pop %v967
        %v999 = vmul.f32 1.0, %v998
        %v1000 = vsel %vm936, %v969, 0.0
        %v1001 = vsel %vm937, %v971, 0.0
        %v1002 = vsel %vm938, %v973, 0.0
        %v1003 = vsel %vm939, %v975, 0.0
        %v1004 = vsel %vm940, %v977, 0.0
        %v1005 = vsel %vm941, %v979, 0.0
        %v1006 = vsel %vm942, %v981, 0.0
        %v1007 = vsel %vm943, %v983, 0.0
        %v1008 = vsel %vm944, %v985, 0.0
        %v1009 = vsel %vm945, %v987, 0.0
        %v1010 = vsel %vm946, %v989, 0.0
        %v1011 = vsel %vm947, %v991, 0.0
        %v1012 = vsel %vm948, %v993, 0.0
        %v1013 = vsel %vm949, %v995, 0.0
        %v1014 = vsel %vm950, %v997, 0.0
        %v1015 = vsel %vm951, %v999, 0.0
        %v1016 = vadd.f32 %v969, 0.0
        %v1017 = vadd.f32 %v971, 0.0
        %v1018 = vadd.f32 %v973, 0.0
        %v1019 = vadd.f32 %v975, 0.0
        %v1020 = vadd.f32 %v977, 0.0
        %v1021 = vadd.f32 %v979, 0.0
        %v1022 = vadd.f32 %v981, 0.0
        %v1023 = vadd.f32 %v983, 0.0
        %v1024 = vadd.f32 %v985, 0.0
        %v1025 = vadd.f32 %v987, 0.0
        %v1026 = vadd.f32 %v989, 0.0
        %v1027 = vadd.f32 %v991, 0.0
        %v1028 = vadd.f32 %v993, 0.0
        %v1029 = vadd.f32 %v995, 0.0
        %v1030 = vadd.f32 %v997, 0.0
        %v1031 = vadd.f32 %v999, 0.0
        %v1032 = vsel %vm936, inf, %v871
        %v1033 = vsel %vm937, inf, %v872
        %v1034 = vsel %vm938, inf, %v873
        %v1035 = vsel %vm939, inf, %v874
        %v1036 = vsel %vm940, inf, %v875
        %v1037 = vsel %vm941, inf, %v876
        %v1038 = vsel %vm942, inf, %v877
        %v1039 = vsel %vm943, inf, %v878
        %v1040 = vsel %vm944, inf, %v879
        %v1041 = vsel %vm945, inf, %v880
        %v1042 = vsel %vm946, inf, %v881
        %v1043 = vsel %vm947, inf, %v882
        %v1044 = vsel %vm948, inf, %v883
        %v1045 = vsel %vm949, inf, %v884
        %v1046 = vsel %vm950, inf, %v885
        %v1047 = vsel %vm951, inf, %v886
        %v1048 = vsel %vm887, %v1032, inf
        %1049 = vmin.xlane.f32.xlu0 %v1048
        %v1050 = vpop.xlane.xlu0 %1049
        %v1051 = vsel %vm887, %v1033, inf
        %1052 = vmin.xlane.f32.xlu0 %v1051
        %v1053 = vpop.xlane.xlu0 %1052
        %v1054 = vsel %vm887, %v1034, inf
        %1055 = vmin.xlane.f32.xlu0 %v1054
        %v1056 = vpop.xlane.xlu0 %1055
        %v1057 = vsel %vm887, %v1035, inf
        %1058 = vmin.xlane.f32.xlu0 %v1057
        %v1059 = vpop.xlane.xlu0 %1058
        %v1060 = vsel %vm887, %v1036, inf
        %1061 = vmin.xlane.f32.xlu0 %v1060
        %v1062 = vpop.xlane.xlu0 %1061
        %v1063 = vsel %vm887, %v1037, inf
        %1064 = vmin.xlane.f32.xlu0 %v1063
        %v1065 = vpop.xlane.xlu0 %1064
        %v1066 = vsel %vm887, %v1038, inf
        %1067 = vmin.xlane.f32.xlu0 %v1066
        %v1068 = vpop.xlane.xlu0 %1067
        %v1069 = vsel %vm887, %v1039, inf
        %1070 = vmin.xlane.f32.xlu0 %v1069
        %v1071 = vpop.xlane.xlu0 %1070
        %v1072 = vsel %vm887, %v1040, inf
        %1073 = vmin.xlane.f32.xlu0 %v1072
        %v1074 = vpop.xlane.xlu0 %1073
        %v1075 = vsel %vm887, %v1041, inf
        %1076 = vmin.xlane.f32.xlu0 %v1075
        %v1077 = vpop.xlane.xlu0 %1076
        %v1078 = vsel %vm887, %v1042, inf
        %1079 = vmin.xlane.f32.xlu0 %v1078
        %v1080 = vpop.xlane.xlu0 %1079
        %v1081 = vsel %vm887, %v1043, inf
        %1082 = vmin.xlane.f32.xlu0 %v1081
        %v1083 = vpop.xlane.xlu0 %1082
        %v1084 = vsel %vm887, %v1044, inf
        %1085 = vmin.xlane.f32.xlu0 %v1084
        %v1086 = vpop.xlane.xlu0 %1085
        %v1087 = vsel %vm887, %v1045, inf
        %1088 = vmin.xlane.f32.xlu0 %v1087
        %v1089 = vpop.xlane.xlu0 %1088
        %v1090 = vsel %vm887, %v1046, inf
        %1091 = vmin.xlane.f32.xlu0 %v1090
        %v1092 = vpop.xlane.xlu0 %1091
        %v1093 = vsel %vm887, %v1047, inf
        %1094 = vmin.xlane.f32.xlu0 %v1093
        %v1095 = vpop.xlane.xlu0 %1094
        %vm1096 = vcmp.eq.f32.partialorder %v1032, %v1050
        %vm1097 = vcmp.eq.f32.partialorder %v1033, %v1053
        %vm1098 = vcmp.eq.f32.partialorder %v1034, %v1056
        %vm1099 = vcmp.eq.f32.partialorder %v1035, %v1059
        %vm1100 = vcmp.eq.f32.partialorder %v1036, %v1062
        %vm1101 = vcmp.eq.f32.partialorder %v1037, %v1065
        %vm1102 = vcmp.eq.f32.partialorder %v1038, %v1068
        %vm1103 = vcmp.eq.f32.partialorder %v1039, %v1071
        %vm1104 = vcmp.eq.f32.partialorder %v1040, %v1074
        %vm1105 = vcmp.eq.f32.partialorder %v1041, %v1077
        %vm1106 = vcmp.eq.f32.partialorder %v1042, %v1080
        %vm1107 = vcmp.eq.f32.partialorder %v1043, %v1083
        %vm1108 = vcmp.eq.f32.partialorder %v1044, %v1086
        %vm1109 = vcmp.eq.f32.partialorder %v1045, %v1089
        %vm1110 = vcmp.eq.f32.partialorder %v1046, %v1092
        %vm1111 = vcmp.eq.f32.partialorder %v1047, %v1095
        %v1112 = vmax.f32 %v1050, 1e-16
        %v1113 = vmax.f32 %v1053, 1e-16
        %v1114 = vmax.f32 %v1056, 1e-16
        %v1115 = vmax.f32 %v1059, 1e-16
        %v1116 = vmax.f32 %v1062, 1e-16
        %v1117 = vmax.f32 %v1065, 1e-16
        %v1118 = vmax.f32 %v1068, 1e-16
        %v1119 = vmax.f32 %v1071, 1e-16
        %v1120 = vmax.f32 %v1074, 1e-16
        %v1121 = vmax.f32 %v1077, 1e-16
        %v1122 = vmax.f32 %v1080, 1e-16
        %v1123 = vmax.f32 %v1083, 1e-16
        %v1124 = vmax.f32 %v1086, 1e-16
        %v1125 = vmax.f32 %v1089, 1e-16
        %v1126 = vmax.f32 %v1092, 1e-16
        %v1127 = vmax.f32 %v1095, 1e-16
        %v1128 = vrcp.pop %v1112
        %v1129 = vmul.f32 1.0, %v1128
        %v1130 = vrcp.pop %v1113
        %v1131 = vmul.f32 1.0, %v1130
        %v1132 = vrcp.pop %v1114
        %v1133 = vmul.f32 1.0, %v1132
        %v1134 = vrcp.pop %v1115
        %v1135 = vmul.f32 1.0, %v1134
        %v1136 = vrcp.pop %v1116
        %v1137 = vmul.f32 1.0, %v1136
        %v1138 = vrcp.pop %v1117
        %v1139 = vmul.f32 1.0, %v1138
        %v1140 = vrcp.pop %v1118
        %v1141 = vmul.f32 1.0, %v1140
        %v1142 = vrcp.pop %v1119
        %v1143 = vmul.f32 1.0, %v1142
        %v1144 = vrcp.pop %v1120
        %v1145 = vmul.f32 1.0, %v1144
        %v1146 = vrcp.pop %v1121
        %v1147 = vmul.f32 1.0, %v1146
        %v1148 = vrcp.pop %v1122
        %v1149 = vmul.f32 1.0, %v1148
        %v1150 = vrcp.pop %v1123
        %v1151 = vmul.f32 1.0, %v1150
        %v1152 = vrcp.pop %v1124
        %v1153 = vmul.f32 1.0, %v1152
        %v1154 = vrcp.pop %v1125
        %v1155 = vmul.f32 1.0, %v1154
        %v1156 = vrcp.pop %v1126
        %v1157 = vmul.f32 1.0, %v1156
        %v1158 = vrcp.pop %v1127
        %v1159 = vmul.f32 1.0, %v1158
        %v1160 = vsel %vm1096, %v1129, %v1000
        %v1161 = vsel %vm1097, %v1131, %v1001
        %v1162 = vsel %vm1098, %v1133, %v1002
        %v1163 = vsel %vm1099, %v1135, %v1003
        %v1164 = vsel %vm1100, %v1137, %v1004
        %v1165 = vsel %vm1101, %v1139, %v1005
        %v1166 = vsel %vm1102, %v1141, %v1006
        %v1167 = vsel %vm1103, %v1143, %v1007
        %v1168 = vsel %vm1104, %v1145, %v1008
        %v1169 = vsel %vm1105, %v1147, %v1009
        %v1170 = vsel %vm1106, %v1149, %v1010
        %v1171 = vsel %vm1107, %v1151, %v1011
        %v1172 = vsel %vm1108, %v1153, %v1012
        %v1173 = vsel %vm1109, %v1155, %v1013
        %v1174 = vsel %vm1110, %v1157, %v1014
        %v1175 = vsel %vm1111, %v1159, %v1015
        %v1176 = vadd.f32 %v1016, %v1129
        %v1177 = vadd.f32 %v1017, %v1131
        %v1178 = vadd.f32 %v1018, %v1133
        %v1179 = vadd.f32 %v1019, %v1135
        %v1180 = vadd.f32 %v1020, %v1137
        %v1181 = vadd.f32 %v1021, %v1139
        %v1182 = vadd.f32 %v1022, %v1141
        %v1183 = vadd.f32 %v1023, %v1143
        %v1184 = vadd.f32 %v1024, %v1145
        %v1185 = vadd.f32 %v1025, %v1147
        %v1186 = vadd.f32 %v1026, %v1149
        %v1187 = vadd.f32 %v1027, %v1151
        %v1188 = vadd.f32 %v1028, %v1153
        %v1189 = vadd.f32 %v1029, %v1155
        %v1190 = vadd.f32 %v1030, %v1157
        %v1191 = vadd.f32 %v1031, %v1159
        %v1192 = vsel %vm1096, inf, %v1032
        %v1193 = vsel %vm1097, inf, %v1033
        %v1194 = vsel %vm1098, inf, %v1034
        %v1195 = vsel %vm1099, inf, %v1035
        %v1196 = vsel %vm1100, inf, %v1036
        %v1197 = vsel %vm1101, inf, %v1037
        %v1198 = vsel %vm1102, inf, %v1038
        %v1199 = vsel %vm1103, inf, %v1039
        %v1200 = vsel %vm1104, inf, %v1040
        %v1201 = vsel %vm1105, inf, %v1041
        %v1202 = vsel %vm1106, inf, %v1042
        %v1203 = vsel %vm1107, inf, %v1043
        %v1204 = vsel %vm1108, inf, %v1044
        %v1205 = vsel %vm1109, inf, %v1045
        %v1206 = vsel %vm1110, inf, %v1046
        %v1207 = vsel %vm1111, inf, %v1047
        %v1208 = vsel %vm887, %v1192, inf
        %1209 = vmin.xlane.f32.xlu0 %v1208
        %v1210 = vpop.xlane.xlu0 %1209
        %v1211 = vsel %vm887, %v1193, inf
        %1212 = vmin.xlane.f32.xlu0 %v1211
        %v1213 = vpop.xlane.xlu0 %1212
        %v1214 = vsel %vm887, %v1194, inf
        %1215 = vmin.xlane.f32.xlu0 %v1214
        %v1216 = vpop.xlane.xlu0 %1215
        %v1217 = vsel %vm887, %v1195, inf
        %1218 = vmin.xlane.f32.xlu0 %v1217
        %v1219 = vpop.xlane.xlu0 %1218
        %v1220 = vsel %vm887, %v1196, inf
        %1221 = vmin.xlane.f32.xlu0 %v1220
        %v1222 = vpop.xlane.xlu0 %1221
        %v1223 = vsel %vm887, %v1197, inf
        %1224 = vmin.xlane.f32.xlu0 %v1223
        %v1225 = vpop.xlane.xlu0 %1224
        %v1226 = vsel %vm887, %v1198, inf
        %1227 = vmin.xlane.f32.xlu0 %v1226
        %v1228 = vpop.xlane.xlu0 %1227
        %v1229 = vsel %vm887, %v1199, inf
        %1230 = vmin.xlane.f32.xlu0 %v1229
        %v1231 = vpop.xlane.xlu0 %1230
        %v1232 = vsel %vm887, %v1200, inf
        %1233 = vmin.xlane.f32.xlu0 %v1232
        %v1234 = vpop.xlane.xlu0 %1233
        %v1235 = vsel %vm887, %v1201, inf
        %1236 = vmin.xlane.f32.xlu0 %v1235
        %v1237 = vpop.xlane.xlu0 %1236
        %v1238 = vsel %vm887, %v1202, inf
        %1239 = vmin.xlane.f32.xlu0 %v1238
        %v1240 = vpop.xlane.xlu0 %1239
        %v1241 = vsel %vm887, %v1203, inf
        %1242 = vmin.xlane.f32.xlu0 %v1241
        %v1243 = vpop.xlane.xlu0 %1242
        %v1244 = vsel %vm887, %v1204, inf
        %1245 = vmin.xlane.f32.xlu0 %v1244
        %v1246 = vpop.xlane.xlu0 %1245
        %v1247 = vsel %vm887, %v1205, inf
        %1248 = vmin.xlane.f32.xlu0 %v1247
        %v1249 = vpop.xlane.xlu0 %1248
        %v1250 = vsel %vm887, %v1206, inf
        %1251 = vmin.xlane.f32.xlu0 %v1250
        %v1252 = vpop.xlane.xlu0 %1251
        %v1253 = vsel %vm887, %v1207, inf
        %1254 = vmin.xlane.f32.xlu0 %v1253
        %v1255 = vpop.xlane.xlu0 %1254
        %vm1256 = vcmp.eq.f32.partialorder %v1192, %v1210
        %vm1257 = vcmp.eq.f32.partialorder %v1193, %v1213
        %vm1258 = vcmp.eq.f32.partialorder %v1194, %v1216
        %vm1259 = vcmp.eq.f32.partialorder %v1195, %v1219
        %vm1260 = vcmp.eq.f32.partialorder %v1196, %v1222
        %vm1261 = vcmp.eq.f32.partialorder %v1197, %v1225
        %vm1262 = vcmp.eq.f32.partialorder %v1198, %v1228
        %vm1263 = vcmp.eq.f32.partialorder %v1199, %v1231
        %vm1264 = vcmp.eq.f32.partialorder %v1200, %v1234
        %vm1265 = vcmp.eq.f32.partialorder %v1201, %v1237
        %vm1266 = vcmp.eq.f32.partialorder %v1202, %v1240
        %vm1267 = vcmp.eq.f32.partialorder %v1203, %v1243
        %vm1268 = vcmp.eq.f32.partialorder %v1204, %v1246
        %vm1269 = vcmp.eq.f32.partialorder %v1205, %v1249
        %vm1270 = vcmp.eq.f32.partialorder %v1206, %v1252
        %vm1271 = vcmp.eq.f32.partialorder %v1207, %v1255
        %v1272 = vmax.f32 %v1210, 1e-16
        %v1273 = vmax.f32 %v1213, 1e-16
        %v1274 = vmax.f32 %v1216, 1e-16
        %v1275 = vmax.f32 %v1219, 1e-16
        %v1276 = vmax.f32 %v1222, 1e-16
        %v1277 = vmax.f32 %v1225, 1e-16
        %v1278 = vmax.f32 %v1228, 1e-16
        %v1279 = vmax.f32 %v1231, 1e-16
        %v1280 = vmax.f32 %v1234, 1e-16
        %v1281 = vmax.f32 %v1237, 1e-16
        %v1282 = vmax.f32 %v1240, 1e-16
        %v1283 = vmax.f32 %v1243, 1e-16
        %v1284 = vmax.f32 %v1246, 1e-16
        %v1285 = vmax.f32 %v1249, 1e-16
        %v1286 = vmax.f32 %v1252, 1e-16
        %v1287 = vmax.f32 %v1255, 1e-16
        %v1288 = vrcp.pop %v1272
        %v1289 = vmul.f32 1.0, %v1288
        %v1290 = vrcp.pop %v1273
        %v1291 = vmul.f32 1.0, %v1290
        %v1292 = vrcp.pop %v1274
        %v1293 = vmul.f32 1.0, %v1292
        %v1294 = vrcp.pop %v1275
        %v1295 = vmul.f32 1.0, %v1294
        %v1296 = vrcp.pop %v1276
        %v1297 = vmul.f32 1.0, %v1296
        %v1298 = vrcp.pop %v1277
        %v1299 = vmul.f32 1.0, %v1298
        %v1300 = vrcp.pop %v1278
        %v1301 = vmul.f32 1.0, %v1300
        %v1302 = vrcp.pop %v1279
        %v1303 = vmul.f32 1.0, %v1302
        %v1304 = vrcp.pop %v1280
        %v1305 = vmul.f32 1.0, %v1304
        %v1306 = vrcp.pop %v1281
        %v1307 = vmul.f32 1.0, %v1306
        %v1308 = vrcp.pop %v1282
        %v1309 = vmul.f32 1.0, %v1308
        %v1310 = vrcp.pop %v1283
        %v1311 = vmul.f32 1.0, %v1310
        %v1312 = vrcp.pop %v1284
        %v1313 = vmul.f32 1.0, %v1312
        %v1314 = vrcp.pop %v1285
        %v1315 = vmul.f32 1.0, %v1314
        %v1316 = vrcp.pop %v1286
        %v1317 = vmul.f32 1.0, %v1316
        %v1318 = vrcp.pop %v1287
        %v1319 = vmul.f32 1.0, %v1318
        %v1320 = vsel %vm1256, %v1289, %v1160
        %v1321 = vsel %vm1257, %v1291, %v1161
        %v1322 = vsel %vm1258, %v1293, %v1162
        %v1323 = vsel %vm1259, %v1295, %v1163
        %v1324 = vsel %vm1260, %v1297, %v1164
        %v1325 = vsel %vm1261, %v1299, %v1165
        %v1326 = vsel %vm1262, %v1301, %v1166
        %v1327 = vsel %vm1263, %v1303, %v1167
        %v1328 = vsel %vm1264, %v1305, %v1168
        %v1329 = vsel %vm1265, %v1307, %v1169
        %v1330 = vsel %vm1266, %v1309, %v1170
        %v1331 = vsel %vm1267, %v1311, %v1171
        %v1332 = vsel %vm1268, %v1313, %v1172
        %v1333 = vsel %vm1269, %v1315, %v1173
        %v1334 = vsel %vm1270, %v1317, %v1174
        %v1335 = vsel %vm1271, %v1319, %v1175
        %v1336 = vadd.f32 %v1176, %v1289
        %v1337 = vadd.f32 %v1177, %v1291
        %v1338 = vadd.f32 %v1178, %v1293
        %v1339 = vadd.f32 %v1179, %v1295
        %v1340 = vadd.f32 %v1180, %v1297
        %v1341 = vadd.f32 %v1181, %v1299
        %v1342 = vadd.f32 %v1182, %v1301
        %v1343 = vadd.f32 %v1183, %v1303
        %v1344 = vadd.f32 %v1184, %v1305
        %v1345 = vadd.f32 %v1185, %v1307
        %v1346 = vadd.f32 %v1186, %v1309
        %v1347 = vadd.f32 %v1187, %v1311
        %v1348 = vadd.f32 %v1188, %v1313
        %v1349 = vadd.f32 %v1189, %v1315
        %v1350 = vadd.f32 %v1190, %v1317
        %v1351 = vadd.f32 %v1191, %v1319
        %v1352 = vld [vmem:[%s4] sm:$0xff]
        %v1353 = vld [vmem:[%s4 + $0x8] sm:$0xff]
        %v1354 = vld [vmem:[%s4 + $0x10] sm:$0xff]
        %v1355 = vld [vmem:[%s4 + $0x18] sm:$0xff]
        %v1356 = vld [vmem:[%s4 + $0x20] sm:$0xff]
        %v1357 = vld [vmem:[%s4 + $0x28] sm:$0xff]
        %v1358 = vld [vmem:[%s4 + $0x30] sm:$0xff]
        %v1359 = vld [vmem:[%s4 + $0x38] sm:$0xff]
        %v1361 = vsel %vm887, %v1320, 0
        %v1364 = vsel %vm887, %v1321, 0
        %v1367 = vsel %vm887, %v1322, 0
        %v1370 = vsel %vm887, %v1323, 0
        %v1373 = vsel %vm887, %v1324, 0
        %v1376 = vsel %vm887, %v1325, 0
        %v1379 = vsel %vm887, %v1326, 0
        %v1382 = vsel %vm887, %v1327, 0
        %v1385 = vsel %vm887, %v1328, 0
        %v1388 = vsel %vm887, %v1329, 0
        %v1391 = vsel %vm887, %v1330, 0
        %v1394 = vsel %vm887, %v1331, 0
        %v1397 = vsel %vm887, %v1332, 0
        %v1400 = vsel %vm887, %v1333, 0
        %v1403 = vsel %vm887, %v1334, 0
        %v1406 = vsel %vm887, %v1335, 0
        %1408 = vmatprep.subr.mxu0 0.0
        %1409 = vmatpush1.msra.mxu0 %v1352
        %1410 = vmatprep.subr.mxu0 0.0
        %1411 = vmatpush1.msra.mxu0 %v1353
        %1412 = vmatprep.subr.mxu0 0.0
        %1413 = vmatpush1.msra.mxu0 %v1354
        %1414 = vmatprep.subr.mxu0 0.0
        %1415 = vmatpush1.msra.mxu0 %v1355
        %1416 = vmatprep.subr.mxu0 0.0
        %1417 = vmatpush1.msra.mxu0 %v1356
        %1418 = vmatprep.subr.mxu0 0.0
        %1419 = vmatpush1.msra.mxu0 %v1357
        %1420 = vmatprep.subr.mxu0 0.0
        %1421 = vmatpush1.msra.mxu0 %v1358
        %1422 = vmatprep.subr.mxu0 0.0
        %1423 = vmatpush1.msra.mxu0 %v1359
        %1424 = vmatprep.subr.mxu0 0.0
        %1425 = vmatpush1.msra.mxu0 0.0
        %1426 = vmatprep.subr.mxu0 0.0
        %1427 = vmatpush1.msra.mxu0 0.0
        %1428 = vmatprep.subr.mxu0 0.0
        %1429 = vmatpush1.msra.mxu0 0.0
        %1430 = vmatprep.subr.mxu0 0.0
        %1431 = vmatpush1.msra.mxu0 0.0
        %1432 = vmatprep.subr.mxu0 0.0
        %1433 = vmatpush1.msra.mxu0 0.0
        %1434 = vmatprep.subr.mxu0 0.0
        %1435 = vmatpush1.msra.mxu0 0.0
        %1436 = vmatprep.subr.mxu0 0.0
        %1437 = vmatpush1.msra.mxu0 0.0
        %1438 = vmatprep.subr.mxu0 0.0
        %1439 = vmatpush1.msra.mxu0 0.0
        %1440 = vmatprep.subr.mxu0 0.0
        %1441 = vmatpush1.msra.mxu0 0.0
        %1442 = vmatprep.subr.mxu0 0.0
        %1443 = vmatpush1.msra.mxu0 0.0
        %1444 = vmatprep.subr.mxu0 0.0
        %1445 = vmatpush1.msra.mxu0 0.0
        %1446 = vmatprep.subr.mxu0 0.0
        %1447 = vmatpush1.msra.mxu0 0.0
        %1448 = vmatprep.subr.mxu0 0.0
        %1449 = vmatpush1.msra.mxu0 0.0
        %1450 = vmatprep.subr.mxu0 0.0
        %1451 = vmatpush1.msra.mxu0 0.0
        %1452 = vmatprep.subr.mxu0 0.0
        %1453 = vmatpush1.msra.mxu0 0.0
        %1454 = vmatprep.subr.mxu0 0.0
        %1455 = vmatpush1.msra.mxu0 0.0
        %1456 = vmatprep.subr.mxu0 0.0
        %1457 = vmatpush1.msra.mxu0 0.0
        %1458 = vmatprep.subr.mxu0 0.0
        %1459 = vmatpush1.msra.mxu0 0.0
        %1460 = vmatprep.subr.mxu0 0.0
        %1461 = vmatpush1.msra.mxu0 0.0
        %1462 = vmatprep.subr.mxu0 0.0
        %1463 = vmatpush1.msra.mxu0 0.0
        %1464 = vmatprep.subr.mxu0 0.0
        %1465 = vmatpush1.msra.mxu0 0.0
        %1466 = vmatprep.subr.mxu0 0.0
        %1467 = vmatpush1.msra.mxu0 0.0
        %1468 = vmatprep.subr.mxu0 0.0
        %1469 = vmatpush1.msra.mxu0 0.0
        %1470 = vmatprep.subr.mxu0 0.0
        %1471 = vmatpush1.msra.mxu0 0.0
        %1472 = vmatprep.mubr.f32.mxu0 0.0
        %1473 = vmatmul.mubr.f32.gmra.mrb[0].mxu0 %v1361
        %v1474 = vpop.f32.mrb[0].mxu0
        %v1475 = vadd.f32 0.0, %v1474
        %v1476 = vpop.f32.mrb[0].mxu0
        %1477 = vmatprep.mubr.f32.mxu0 0.0
        %1478 = vmatmul.mubr.f32.gmra.mrb[0].mxu0 %v1364
        %v1479 = vpop.f32.mrb[0].mxu0
        %v1480 = vadd.f32 0.0, %v1479
        %v1481 = vpop.f32.mrb[0].mxu0
        %1482 = vmatprep.mubr.f32.mxu0 0.0
        %1483 = vmatmul.mubr.f32.gmra.mrb[0].mxu0 %v1367
        %v1484 = vpop.f32.mrb[0].mxu0
        %v1485 = vadd.f32 0.0, %v1484
        %v1486 = vpop.f32.mrb[0].mxu0
        %1487 = vmatprep.mubr.f32.mxu0 0.0
        %1488 = vmatmul.mubr.f32.gmra.mrb[0].mxu0 %v1370
        %v1489 = vpop.f32.mrb[0].mxu0
        %v1490 = vadd.f32 0.0, %v1489
        %v1491 = vpop.f32.mrb[0].mxu0
        %1492 = vmatprep.mubr.f32.mxu0 0.0
        %1493 = vmatmul.mubr.f32.gmra.mrb[0].mxu0 %v1373
        %v1494 = vpop.f32.mrb[0].mxu0
        %v1495 = vadd.f32 0.0, %v1494
        %v1496 = vpop.f32.mrb[0].mxu0
        %1497 = vmatprep.mubr.f32.mxu0 0.0
        %1498 = vmatmul.mubr.f32.gmra.mrb[0].mxu0 %v1376
        %v1499 = vpop.f32.mrb[0].mxu0
        %v1500 = vadd.f32 0.0, %v1499
        %v1501 = vpop.f32.mrb[0].mxu0
        %1502 = vmatprep.mubr.f32.mxu0 0.0
        %1503 = vmatmul.mubr.f32.gmra.mrb[0].mxu0 %v1379
        %v1504 = vpop.f32.mrb[0].mxu0
        %v1505 = vadd.f32 0.0, %v1504
        %v1506 = vpop.f32.mrb[0].mxu0
        %1507 = vmatprep.mubr.f32.mxu0 0.0
        %1508 = vmatmul.mubr.f32.gmra.mrb[0].mxu0 %v1382
        %v1509 = vpop.f32.mrb[0].mxu0
        %v1510 = vadd.f32 0.0, %v1509
        %v1511 = vpop.f32.mrb[0].mxu0
        %1512 = vmatprep.mubr.f32.mxu0 0.0
        %1513 = vmatmul.mubr.f32.gmra.mrb[0].mxu0 %v1385
        %v1514 = vpop.f32.mrb[0].mxu0
        %v1515 = vadd.f32 0.0, %v1514
        %v1516 = vpop.f32.mrb[0].mxu0
        %1517 = vmatprep.mubr.f32.mxu0 0.0
        %1518 = vmatmul.mubr.f32.gmra.mrb[0].mxu0 %v1388
        %v1519 = vpop.f32.mrb[0].mxu0
        %v1520 = vadd.f32 0.0, %v1519
        %v1521 = vpop.f32.mrb[0].mxu0
        %1522 = vmatprep.mubr.f32.mxu0 0.0
        %1523 = vmatmul.mubr.f32.gmra.mrb[0].mxu0 %v1391
        %v1524 = vpop.f32.mrb[0].mxu0
        %v1525 = vadd.f32 0.0, %v1524
        %v1526 = vpop.f32.mrb[0].mxu0
        %1527 = vmatprep.mubr.f32.mxu0 0.0
        %1528 = vmatmul.mubr.f32.gmra.mrb[0].mxu0 %v1394
        %v1529 = vpop.f32.mrb[0].mxu0
        %v1530 = vadd.f32 0.0, %v1529
        %v1531 = vpop.f32.mrb[0].mxu0
        %1532 = vmatprep.mubr.f32.mxu0 0.0
        %1533 = vmatmul.mubr.f32.gmra.mrb[0].mxu0 %v1397
        %v1534 = vpop.f32.mrb[0].mxu0
        %v1535 = vadd.f32 0.0, %v1534
        %v1536 = vpop.f32.mrb[0].mxu0
        %1537 = vmatprep.mubr.f32.mxu0 0.0
        %1538 = vmatmul.mubr.f32.gmra.mrb[0].mxu0 %v1400
        %v1539 = vpop.f32.mrb[0].mxu0
        %v1540 = vadd.f32 0.0, %v1539
        %v1541 = vpop.f32.mrb[0].mxu0
        %1542 = vmatprep.mubr.f32.mxu0 0.0
        %1543 = vmatmul.mubr.f32.gmra.mrb[0].mxu0 %v1403
        %v1544 = vpop.f32.mrb[0].mxu0
        %v1545 = vadd.f32 0.0, %v1544
        %v1546 = vpop.f32.mrb[0].mxu0
        %1547 = vmatprep.mubr.f32.mxu0 0.0
        %1548 = vmatmul.mubr.f32.gmra.mrb[0].mxu0 %v1406
        %v1549 = vpop.f32.mrb[0].mxu0
        %v1550 = vadd.f32 0.0, %v1549
        %v1551 = vpop.f32.mrb[0].mxu0
        %1552 = vdwg.mxu0
        %v1553 = vrcp.pop %v1336
        %v1554 = vmul.f32 1.0, %v1553
        %v1555 = vrcp.pop %v1337
        %v1556 = vmul.f32 1.0, %v1555
        %v1557 = vrcp.pop %v1338
        %v1558 = vmul.f32 1.0, %v1557
        %v1559 = vrcp.pop %v1339
        %v1560 = vmul.f32 1.0, %v1559
        %v1561 = vrcp.pop %v1340
        %v1562 = vmul.f32 1.0, %v1561
        %v1563 = vrcp.pop %v1341
        %v1564 = vmul.f32 1.0, %v1563
        %v1565 = vrcp.pop %v1342
        %v1566 = vmul.f32 1.0, %v1565
        %v1567 = vrcp.pop %v1343
        %v1568 = vmul.f32 1.0, %v1567
        %v1569 = vrcp.pop %v1344
        %v1570 = vmul.f32 1.0, %v1569
        %v1571 = vrcp.pop %v1345
        %v1572 = vmul.f32 1.0, %v1571
        %v1573 = vrcp.pop %v1346
        %v1574 = vmul.f32 1.0, %v1573
        %v1575 = vrcp.pop %v1347
        %v1576 = vmul.f32 1.0, %v1575
        %v1577 = vrcp.pop %v1348
        %v1578 = vmul.f32 1.0, %v1577
        %v1579 = vrcp.pop %v1349
        %v1580 = vmul.f32 1.0, %v1579
        %v1581 = vrcp.pop %v1350
        %v1582 = vmul.f32 1.0, %v1581
        %v1583 = vrcp.pop %v1351
        %v1584 = vmul.f32 1.0, %v1583
        %v1585 = vld [vmem:[%s402] sm:$0xff]
        %v1586 = vld [vmem:[%s402 + $0x8] sm:$0xff]
        %v1587 = vld [vmem:[%s402 + $0x10] sm:$0xff]
        %v1588 = vld [vmem:[%s402 + $0x18] sm:$0xff]
        %v1589 = vld [vmem:[%s402 + $0x20] sm:$0xff]
        %v1590 = vld [vmem:[%s402 + $0x28] sm:$0xff]
        %v1591 = vld [vmem:[%s402 + $0x30] sm:$0xff]
        %v1592 = vld [vmem:[%s402 + $0x38] sm:$0xff]
        %v1593 = vld [vmem:[%s402 + $0x40] sm:$0xff]
        %v1594 = vld [vmem:[%s402 + $0x48] sm:$0xff]
        %v1595 = vld [vmem:[%s402 + $0x50] sm:$0xff]
        %v1596 = vld [vmem:[%s402 + $0x58] sm:$0xff]
        %v1597 = vld [vmem:[%s402 + $0x60] sm:$0xff]
        %v1598 = vld [vmem:[%s402 + $0x68] sm:$0xff]
        %v1599 = vld [vmem:[%s402 + $0x70] sm:$0xff]
        %v1600 = vld [vmem:[%s402 + $0x78] sm:$0xff]
        %v1601 = vmul.f32 %v1475, %v1554
        %v1602 = vmul.f32 %v1480, %v1556
        %v1603 = vmul.f32 %v1485, %v1558
        %v1604 = vmul.f32 %v1490, %v1560
        %v1605 = vmul.f32 %v1495, %v1562
        %v1606 = vmul.f32 %v1500, %v1564
        %v1607 = vmul.f32 %v1505, %v1566
        %v1608 = vmul.f32 %v1510, %v1568
        %v1609 = vmul.f32 %v1515, %v1570
        %v1610 = vmul.f32 %v1520, %v1572
        %v1611 = vmul.f32 %v1525, %v1574
        %v1612 = vmul.f32 %v1530, %v1576
        %v1613 = vmul.f32 %v1535, %v1578
        %v1614 = vmul.f32 %v1540, %v1580
        %v1615 = vmul.f32 %v1545, %v1582
        %v1616 = vmul.f32 %v1550, %v1584
        %v1617 = vld [vmem:[%s6] sm:$0xff]
        %v1618 = vld [vmem:[%s6 + $0x8] sm:$0xff]
        %v1619 = vld [vmem:[%s6 + $0x10] sm:$0xff]
        %v1620 = vld [vmem:[%s6 + $0x18] sm:$0xff]
        %vm1621 = vcmask 261120
        %v1623 = vsel %vm1621, %v1585, 0
        %v1626 = vsel %vm1621, %v1586, 0
        %v1629 = vsel %vm1621, %v1587, 0
        %v1632 = vsel %vm1621, %v1588, 0
        %v1635 = vsel %vm1621, %v1589, 0
        %v1638 = vsel %vm1621, %v1590, 0
        %v1641 = vsel %vm1621, %v1591, 0
        %v1644 = vsel %vm1621, %v1592, 0
        %v1647 = vsel %vm1621, %v1593, 0
        %v1650 = vsel %vm1621, %v1594, 0
        %v1653 = vsel %vm1621, %v1595, 0
        %v1656 = vsel %vm1621, %v1596, 0
        %v1659 = vsel %vm1621, %v1597, 0
        %v1662 = vsel %vm1621, %v1598, 0
        %v1665 = vsel %vm1621, %v1599, 0
        %v1668 = vsel %vm1621, %v1600, 0
        %1670 = vmatprep.subr.mxu0 0.0
        %1671 = vmatpush1.msra.mxu0 %v1617
        %1672 = vmatprep.subr.mxu0 0.0
        %1673 = vmatpush1.msra.mxu0 %v1618
        %1674 = vmatprep.subr.mxu0 0.0
        %1675 = vmatpush1.msra.mxu0 %v1619
        %1676 = vmatprep.subr.mxu0 0.0
        %1677 = vmatpush1.msra.mxu0 %v1620
        %1678 = vmatprep.subr.mxu0 0.0
        %1679 = vmatpush1.msra.mxu0 0.0
        %1680 = vmatprep.subr.mxu0 0.0
        %1681 = vmatpush1.msra.mxu0 0.0
        %1682 = vmatprep.subr.mxu0 0.0
        %1683 = vmatpush1.msra.mxu0 0.0
        %1684 = vmatprep.subr.mxu0 0.0
        %1685 = vmatpush1.msra.mxu0 0.0
        %1686 = vmatprep.subr.mxu0 0.0
        %1687 = vmatpush1.msra.mxu0 0.0
        %1688 = vmatprep.subr.mxu0 0.0
        %1689 = vmatpush1.msra.mxu0 0.0
        %1690 = vmatprep.subr.mxu0 0.0
        %1691 = vmatpush1.msra.mxu0 0.0
        %1692 = vmatprep.subr.mxu0 0.0
        %1693 = vmatpush1.msra.mxu0 0.0
        %1694 = vmatprep.subr.mxu0 0.0
        %1695 = vmatpush1.msra.mxu0 0.0
        %1696 = vmatprep.subr.mxu0 0.0
        %1697 = vmatpush1.msra.mxu0 0.0
        %1698 = vmatprep.subr.mxu0 0.0
        %1699 = vmatpush1.msra.mxu0 0.0
        %1700 = vmatprep.subr.mxu0 0.0
        %1701 = vmatpush1.msra.mxu0 0.0
        %1702 = vmatprep.subr.mxu0 0.0
        %1703 = vmatpush1.msra.mxu0 0.0
        %1704 = vmatprep.subr.mxu0 0.0
        %1705 = vmatpush1.msra.mxu0 0.0
        %1706 = vmatprep.subr.mxu0 0.0
        %1707 = vmatpush1.msra.mxu0 0.0
        %1708 = vmatprep.subr.mxu0 0.0
        %1709 = vmatpush1.msra.mxu0 0.0
        %1710 = vmatprep.subr.mxu0 0.0
        %1711 = vmatpush1.msra.mxu0 0.0
        %1712 = vmatprep.subr.mxu0 0.0
        %1713 = vmatpush1.msra.mxu0 0.0
        %1714 = vmatprep.subr.mxu0 0.0
        %1715 = vmatpush1.msra.mxu0 0.0
        %1716 = vmatprep.subr.mxu0 0.0
        %1717 = vmatpush1.msra.mxu0 0.0
        %1718 = vmatprep.subr.mxu0 0.0
        %1719 = vmatpush1.msra.mxu0 0.0
        %1720 = vmatprep.subr.mxu0 0.0
        %1721 = vmatpush1.msra.mxu0 0.0
        %1722 = vmatprep.subr.mxu0 0.0
        %1723 = vmatpush1.msra.mxu0 0.0
        %1724 = vmatprep.subr.mxu0 0.0
        %1725 = vmatpush1.msra.mxu0 0.0
        %1726 = vmatprep.subr.mxu0 0.0
        %1727 = vmatpush1.msra.mxu0 0.0
        %1728 = vmatprep.subr.mxu0 0.0
        %1729 = vmatpush1.msra.mxu0 0.0
        %1730 = vmatprep.subr.mxu0 0.0
        %1731 = vmatpush1.msra.mxu0 0.0
        %1732 = vmatprep.subr.mxu0 0.0
        %1733 = vmatpush1.msra.mxu0 0.0
        %1734 = vmatprep.mubr.f32.mxu0 0.0
        %1735 = vmatmul.mubr.f32.gmra.mrb[0].mxu0 %v1623
        %v1736 = vpop.f32.mrb[0].mxu0
        %v1737 = vadd.f32 0.0, %v1736
        %v1738 = vpop.f32.mrb[0].mxu0
        %1739 = vmatprep.mubr.f32.mxu0 0.0
        %1740 = vmatmul.mubr.f32.gmra.mrb[0].mxu0 %v1626
        %v1741 = vpop.f32.mrb[0].mxu0
        %v1742 = vadd.f32 0.0, %v1741
        %v1743 = vpop.f32.mrb[0].mxu0
        %1744 = vmatprep.mubr.f32.mxu0 0.0
        %1745 = vmatmul.mubr.f32.gmra.mrb[0].mxu0 %v1629
        %v1746 = vpop.f32.mrb[0].mxu0
        %v1747 = vadd.f32 0.0, %v1746
        %v1748 = vpop.f32.mrb[0].mxu0
        %1749 = vmatprep.mubr.f32.mxu0 0.0
        %1750 = vmatmul.mubr.f32.gmra.mrb[0].mxu0 %v1632
        %v1751 = vpop.f32.mrb[0].mxu0
        %v1752 = vadd.f32 0.0, %v1751
        %v1753 = vpop.f32.mrb[0].mxu0
        %1754 = vmatprep.mubr.f32.mxu0 0.0
        %1755 = vmatmul.mubr.f32.gmra.mrb[0].mxu0 %v1635
        %v1756 = vpop.f32.mrb[0].mxu0
        %v1757 = vadd.f32 0.0, %v1756
        %v1758 = vpop.f32.mrb[0].mxu0
        %1759 = vmatprep.mubr.f32.mxu0 0.0
        %1760 = vmatmul.mubr.f32.gmra.mrb[0].mxu0 %v1638
        %v1761 = vpop.f32.mrb[0].mxu0
        %v1762 = vadd.f32 0.0, %v1761
        %v1763 = vpop.f32.mrb[0].mxu0
        %1764 = vmatprep.mubr.f32.mxu0 0.0
        %1765 = vmatmul.mubr.f32.gmra.mrb[0].mxu0 %v1641
        %v1766 = vpop.f32.mrb[0].mxu0
        %v1767 = vadd.f32 0.0, %v1766
        %v1768 = vpop.f32.mrb[0].mxu0
        %1769 = vmatprep.mubr.f32.mxu0 0.0
        %1770 = vmatmul.mubr.f32.gmra.mrb[0].mxu0 %v1644
        %v1771 = vpop.f32.mrb[0].mxu0
        %v1772 = vadd.f32 0.0, %v1771
        %v1773 = vpop.f32.mrb[0].mxu0
        %1774 = vmatprep.mubr.f32.mxu0 0.0
        %1775 = vmatmul.mubr.f32.gmra.mrb[0].mxu0 %v1647
        %v1776 = vpop.f32.mrb[0].mxu0
        %v1777 = vadd.f32 0.0, %v1776
        %v1778 = vpop.f32.mrb[0].mxu0
        %1779 = vmatprep.mubr.f32.mxu0 0.0
        %1780 = vmatmul.mubr.f32.gmra.mrb[0].mxu0 %v1650
        %v1781 = vpop.f32.mrb[0].mxu0
        %v1782 = vadd.f32 0.0, %v1781
        %v1783 = vpop.f32.mrb[0].mxu0
        %1784 = vmatprep.mubr.f32.mxu0 0.0
        %1785 = vmatmul.mubr.f32.gmra.mrb[0].mxu0 %v1653
        %v1786 = vpop.f32.mrb[0].mxu0
        %v1787 = vadd.f32 0.0, %v1786
        %v1788 = vpop.f32.mrb[0].mxu0
        %1789 = vmatprep.mubr.f32.mxu0 0.0
        %1790 = vmatmul.mubr.f32.gmra.mrb[0].mxu0 %v1656
        %v1791 = vpop.f32.mrb[0].mxu0
        %v1792 = vadd.f32 0.0, %v1791
        %v1793 = vpop.f32.mrb[0].mxu0
        %1794 = vmatprep.mubr.f32.mxu0 0.0
        %1795 = vmatmul.mubr.f32.gmra.mrb[0].mxu0 %v1659
        %v1796 = vpop.f32.mrb[0].mxu0
        %v1797 = vadd.f32 0.0, %v1796
        %v1798 = vpop.f32.mrb[0].mxu0
        %1799 = vmatprep.mubr.f32.mxu0 0.0
        %1800 = vmatmul.mubr.f32.gmra.mrb[0].mxu0 %v1662
        %v1801 = vpop.f32.mrb[0].mxu0
        %v1802 = vadd.f32 0.0, %v1801
        %v1803 = vpop.f32.mrb[0].mxu0
        %1804 = vmatprep.mubr.f32.mxu0 0.0
        %1805 = vmatmul.mubr.f32.gmra.mrb[0].mxu0 %v1665
        %v1806 = vpop.f32.mrb[0].mxu0
        %v1807 = vadd.f32 0.0, %v1806
        %v1808 = vpop.f32.mrb[0].mxu0
        %1809 = vmatprep.mubr.f32.mxu0 0.0
        %1810 = vmatmul.mubr.f32.gmra.mrb[0].mxu0 %v1668
        %v1811 = vpop.f32.mrb[0].mxu0
        %v1812 = vadd.f32 0.0, %v1811
        %v1813 = vpop.f32.mrb[0].mxu0
        %1814 = vdwg.mxu0
        %v1815 = vadd.f32 %v1601, %v1737
        %v1816 = vadd.f32 %v1602, %v1742
        %v1817 = vadd.f32 %v1603, %v1747
        %v1818 = vadd.f32 %v1604, %v1752
        %v1819 = vadd.f32 %v1605, %v1757
        %v1820 = vadd.f32 %v1606, %v1762
        %v1821 = vadd.f32 %v1607, %v1767
        %v1822 = vadd.f32 %v1608, %v1772
        %v1823 = vadd.f32 %v1609, %v1777
        %v1824 = vadd.f32 %v1610, %v1782
        %v1825 = vadd.f32 %v1611, %v1787
        %v1826 = vadd.f32 %v1612, %v1792
        %v1827 = vadd.f32 %v1613, %v1797
        %v1828 = vadd.f32 %v1614, %v1802
        %v1829 = vadd.f32 %v1615, %v1807
        %v1830 = vadd.f32 %v1616, %v1812
        %v1831 = vld [vmem:[%s7] sm:$0x1]
        %v1833 = vlaneseq
        %v1834 = vshrl.u32 %v1833, 7
        %v1835 = vsub.s32 0, %v1834
        %v1836 = vrot.slane %v1831, %v1835
        %v1838 = vadd.f32 %v1815, %v1836
        %v1839 = vadd.f32 %v1816, %v1836
        %v1840 = vadd.f32 %v1817, %v1836
        %v1841 = vadd.f32 %v1818, %v1836
        %v1842 = vadd.f32 %v1819, %v1836
        %v1843 = vadd.f32 %v1820, %v1836
        %v1844 = vadd.f32 %v1821, %v1836
        %v1845 = vadd.f32 %v1822, %v1836
        %v1846 = vadd.f32 %v1823, %v1836
        %v1847 = vadd.f32 %v1824, %v1836
        %v1848 = vadd.f32 %v1825, %v1836
        %v1849 = vadd.f32 %v1826, %v1836
        %v1850 = vadd.f32 %v1827, %v1836
        %v1851 = vadd.f32 %v1828, %v1836
        %v1852 = vadd.f32 %v1829, %v1836
        %v1853 = vadd.f32 %v1830, %v1836
        %v1854 = vmax.f32 %v1838, 0.0
        %v1855 = vmax.f32 %v1839, 0.0
        %v1856 = vmax.f32 %v1840, 0.0
        %v1857 = vmax.f32 %v1841, 0.0
        %v1858 = vmax.f32 %v1842, 0.0
        %v1859 = vmax.f32 %v1843, 0.0
        %v1860 = vmax.f32 %v1844, 0.0
        %v1861 = vmax.f32 %v1845, 0.0
        %v1862 = vmax.f32 %v1846, 0.0
        %v1863 = vmax.f32 %v1847, 0.0
        %v1864 = vmax.f32 %v1848, 0.0
        %v1865 = vmax.f32 %v1849, 0.0
        %v1866 = vmax.f32 %v1850, 0.0
        %v1867 = vmax.f32 %v1851, 0.0
        %v1868 = vmax.f32 %v1852, 0.0
        %v1869 = vmax.f32 %v1853, 0.0
        %v1870 = vld [vmem:[%s8] sm:$0xff]
        %v1871 = vld [vmem:[%s8 + $0x8] sm:$0xff]
        %v1872 = vld [vmem:[%s8 + $0x10] sm:$0xff]
        %v1873 = vld [vmem:[%s8 + $0x18] sm:$0xff]
        %v1874 = vld [vmem:[%s8 + $0x20] sm:$0xff]
        %v1875 = vld [vmem:[%s8 + $0x28] sm:$0xff]
        %v1876 = vld [vmem:[%s8 + $0x30] sm:$0xff]
        %v1877 = vld [vmem:[%s8 + $0x38] sm:$0xff]
        %v1878 = vld [vmem:[%s9] sm:$0x1]
        %v1880 = vlaneseq
        %v1881 = vshrl.u32 %v1880, 7
        %v1882 = vsub.s32 0, %v1881
        %v1883 = vrot.slane %v1878, %v1882
        %v1886 = vsel %vm887, %v1854, 0
        %v1889 = vsel %vm887, %v1855, 0
        %v1892 = vsel %vm887, %v1856, 0
        %v1895 = vsel %vm887, %v1857, 0
        %v1898 = vsel %vm887, %v1858, 0
        %v1901 = vsel %vm887, %v1859, 0
        %v1904 = vsel %vm887, %v1860, 0
        %v1907 = vsel %vm887, %v1861, 0
        %v1910 = vsel %vm887, %v1862, 0
        %v1913 = vsel %vm887, %v1863, 0
        %v1916 = vsel %vm887, %v1864, 0
        %v1919 = vsel %vm887, %v1865, 0
        %v1922 = vsel %vm887, %v1866, 0
        %v1925 = vsel %vm887, %v1867, 0
        %v1928 = vsel %vm887, %v1868, 0
        %v1931 = vsel %vm887, %v1869, 0
        %1933 = vmatprep.subr.mxu0 0.0
        %1934 = vmatpush1.msra.mxu0 %v1870
        %1935 = vmatprep.subr.mxu0 0.0
        %1936 = vmatpush1.msra.mxu0 %v1871
        %1937 = vmatprep.subr.mxu0 0.0
        %1938 = vmatpush1.msra.mxu0 %v1872
        %1939 = vmatprep.subr.mxu0 0.0
        %1940 = vmatpush1.msra.mxu0 %v1873
        %1941 = vmatprep.subr.mxu0 0.0
        %1942 = vmatpush1.msra.mxu0 %v1874
        %1943 = vmatprep.subr.mxu0 0.0
        %1944 = vmatpush1.msra.mxu0 %v1875
        %1945 = vmatprep.subr.mxu0 0.0
        %1946 = vmatpush1.msra.mxu0 %v1876
        %1947 = vmatprep.subr.mxu0 0.0
        %1948 = vmatpush1.msra.mxu0 %v1877
        %1949 = vmatprep.subr.mxu0 0.0
        %1950 = vmatpush1.msra.mxu0 0.0
        %1951 = vmatprep.subr.mxu0 0.0
        %1952 = vmatpush1.msra.mxu0 0.0
        %1953 = vmatprep.subr.mxu0 0.0
        %1954 = vmatpush1.msra.mxu0 0.0
        %1955 = vmatprep.subr.mxu0 0.0
        %1956 = vmatpush1.msra.mxu0 0.0
        %1957 = vmatprep.subr.mxu0 0.0
        %1958 = vmatpush1.msra.mxu0 0.0
        %1959 = vmatprep.subr.mxu0 0.0
        %1960 = vmatpush1.msra.mxu0 0.0
        %1961 = vmatprep.subr.mxu0 0.0
        %1962 = vmatpush1.msra.mxu0 0.0
        %1963 = vmatprep.subr.mxu0 0.0
        %1964 = vmatpush1.msra.mxu0 0.0
        %1965 = vmatprep.subr.mxu0 0.0
        %1966 = vmatpush1.msra.mxu0 0.0
        %1967 = vmatprep.subr.mxu0 0.0
        %1968 = vmatpush1.msra.mxu0 0.0
        %1969 = vmatprep.subr.mxu0 0.0
        %1970 = vmatpush1.msra.mxu0 0.0
        %1971 = vmatprep.subr.mxu0 0.0
        %1972 = vmatpush1.msra.mxu0 0.0
        %1973 = vmatprep.subr.mxu0 0.0
        %1974 = vmatpush1.msra.mxu0 0.0
        %1975 = vmatprep.subr.mxu0 0.0
        %1976 = vmatpush1.msra.mxu0 0.0
        %1977 = vmatprep.subr.mxu0 0.0
        %1978 = vmatpush1.msra.mxu0 0.0
        %1979 = vmatprep.subr.mxu0 0.0
        %1980 = vmatpush1.msra.mxu0 0.0
        %1981 = vmatprep.subr.mxu0 0.0
        %1982 = vmatpush1.msra.mxu0 0.0
        %1983 = vmatprep.subr.mxu0 0.0
        %1984 = vmatpush1.msra.mxu0 0.0
        %1985 = vmatprep.subr.mxu0 0.0
        %1986 = vmatpush1.msra.mxu0 0.0
        %1987 = vmatprep.subr.mxu0 0.0
        %1988 = vmatpush1.msra.mxu0 0.0
        %1989 = vmatprep.subr.mxu0 0.0
        %1990 = vmatpush1.msra.mxu0 0.0
        %1991 = vmatprep.subr.mxu0 0.0
        %1992 = vmatpush1.msra.mxu0 0.0
        %1993 = vmatprep.subr.mxu0 0.0
        %1994 = vmatpush1.msra.mxu0 0.0
        %1995 = vmatprep.subr.mxu0 0.0
        %1996 = vmatpush1.msra.mxu0 0.0
        %1997 = vmatprep.mubr.f32.mxu0 0.0
        %1998 = vmatmul.mubr.f32.gmra.mrb[0].mxu0 %v1886
        %v1999 = vpop.f32.mrb[0].mxu0
        %v2000 = vadd.f32 %v1883, %v1999
        %v2001 = vpop.f32.mrb[0].mxu0
        %2002 = vmatprep.mubr.f32.mxu0 0.0
        %2003 = vmatmul.mubr.f32.gmra.mrb[0].mxu0 %v1889
        %v2004 = vpop.f32.mrb[0].mxu0
        %v2005 = vadd.f32 %v1883, %v2004
        %v2006 = vpop.f32.mrb[0].mxu0
        %2007 = vmatprep.mubr.f32.mxu0 0.0
        %2008 = vmatmul.mubr.f32.gmra.mrb[0].mxu0 %v1892
        %v2009 = vpop.f32.mrb[0].mxu0
        %v2010 = vadd.f32 %v1883, %v2009
        %v2011 = vpop.f32.mrb[0].mxu0
        %2012 = vmatprep.mubr.f32.mxu0 0.0
        %2013 = vmatmul.mubr.f32.gmra.mrb[0].mxu0 %v1895
        %v2014 = vpop.f32.mrb[0].mxu0
        %v2015 = vadd.f32 %v1883, %v2014
        %v2016 = vpop.f32.mrb[0].mxu0
        %2017 = vmatprep.mubr.f32.mxu0 0.0
        %2018 = vmatmul.mubr.f32.gmra.mrb[0].mxu0 %v1898
        %v2019 = vpop.f32.mrb[0].mxu0
        %v2020 = vadd.f32 %v1883, %v2019
        %v2021 = vpop.f32.mrb[0].mxu0
        %2022 = vmatprep.mubr.f32.mxu0 0.0
        %2023 = vmatmul.mubr.f32.gmra.mrb[0].mxu0 %v1901
        %v2024 = vpop.f32.mrb[0].mxu0
        %v2025 = vadd.f32 %v1883, %v2024
        %v2026 = vpop.f32.mrb[0].mxu0
        %2027 = vmatprep.mubr.f32.mxu0 0.0
        %2028 = vmatmul.mubr.f32.gmra.mrb[0].mxu0 %v1904
        %v2029 = vpop.f32.mrb[0].mxu0
        %v2030 = vadd.f32 %v1883, %v2029
        %v2031 = vpop.f32.mrb[0].mxu0
        %2032 = vmatprep.mubr.f32.mxu0 0.0
        %2033 = vmatmul.mubr.f32.gmra.mrb[0].mxu0 %v1907
        %v2034 = vpop.f32.mrb[0].mxu0
        %v2035 = vadd.f32 %v1883, %v2034
        %v2036 = vpop.f32.mrb[0].mxu0
        %2037 = vmatprep.mubr.f32.mxu0 0.0
        %2038 = vmatmul.mubr.f32.gmra.mrb[0].mxu0 %v1910
        %v2039 = vpop.f32.mrb[0].mxu0
        %v2040 = vadd.f32 %v1883, %v2039
        %v2041 = vpop.f32.mrb[0].mxu0
        %2042 = vmatprep.mubr.f32.mxu0 0.0
        %2043 = vmatmul.mubr.f32.gmra.mrb[0].mxu0 %v1913
        %v2044 = vpop.f32.mrb[0].mxu0
        %v2045 = vadd.f32 %v1883, %v2044
        %v2046 = vpop.f32.mrb[0].mxu0
        %2047 = vmatprep.mubr.f32.mxu0 0.0
        %2048 = vmatmul.mubr.f32.gmra.mrb[0].mxu0 %v1916
        %v2049 = vpop.f32.mrb[0].mxu0
        %v2050 = vadd.f32 %v1883, %v2049
        %v2051 = vpop.f32.mrb[0].mxu0
        %2052 = vmatprep.mubr.f32.mxu0 0.0
        %2053 = vmatmul.mubr.f32.gmra.mrb[0].mxu0 %v1919
        %v2054 = vpop.f32.mrb[0].mxu0
        %v2055 = vadd.f32 %v1883, %v2054
        %v2056 = vpop.f32.mrb[0].mxu0
        %2057 = vmatprep.mubr.f32.mxu0 0.0
        %2058 = vmatmul.mubr.f32.gmra.mrb[0].mxu0 %v1922
        %v2059 = vpop.f32.mrb[0].mxu0
        %v2060 = vadd.f32 %v1883, %v2059
        %v2061 = vpop.f32.mrb[0].mxu0
        %2062 = vmatprep.mubr.f32.mxu0 0.0
        %2063 = vmatmul.mubr.f32.gmra.mrb[0].mxu0 %v1925
        %v2064 = vpop.f32.mrb[0].mxu0
        %v2065 = vadd.f32 %v1883, %v2064
        %v2066 = vpop.f32.mrb[0].mxu0
        %2067 = vmatprep.mubr.f32.mxu0 0.0
        %2068 = vmatmul.mubr.f32.gmra.mrb[0].mxu0 %v1928
        %v2069 = vpop.f32.mrb[0].mxu0
        %v2070 = vadd.f32 %v1883, %v2069
        %v2071 = vpop.f32.mrb[0].mxu0
        %2072 = vmatprep.mubr.f32.mxu0 0.0
        %2073 = vmatmul.mubr.f32.gmra.mrb[0].mxu0 %v1931
        %v2074 = vpop.f32.mrb[0].mxu0
        %v2075 = vadd.f32 %v1883, %v2074
        %v2076 = vpop.f32.mrb[0].mxu0
        %2077 = vdwg.mxu0
        %v2078 = vmax.f32 %v2000, 0.0
        %v2079 = vmax.f32 %v2005, 0.0
        %v2080 = vmax.f32 %v2010, 0.0
        %v2081 = vmax.f32 %v2015, 0.0
        %v2082 = vmax.f32 %v2020, 0.0
        %v2083 = vmax.f32 %v2025, 0.0
        %v2084 = vmax.f32 %v2030, 0.0
        %v2085 = vmax.f32 %v2035, 0.0
        %v2086 = vmax.f32 %v2040, 0.0
        %v2087 = vmax.f32 %v2045, 0.0
        %v2088 = vmax.f32 %v2050, 0.0
        %v2089 = vmax.f32 %v2055, 0.0
        %v2090 = vmax.f32 %v2060, 0.0
        %v2091 = vmax.f32 %v2065, 0.0
        %v2092 = vmax.f32 %v2070, 0.0
        %v2093 = vmax.f32 %v2075, 0.0
        %2094 = vst [vmem:[%s385] sm:$0xff] %v2078
        %2095 = vst [vmem:[%s385 + $0x8] sm:$0xff] %v2079
        %2096 = vst [vmem:[%s385 + $0x10] sm:$0xff] %v2080
        %2097 = vst [vmem:[%s385 + $0x18] sm:$0xff] %v2081
        %2098 = vst [vmem:[%s385 + $0x20] sm:$0xff] %v2082
        %2099 = vst [vmem:[%s385 + $0x28] sm:$0xff] %v2083
        %2100 = vst [vmem:[%s385 + $0x30] sm:$0xff] %v2084
        %2101 = vst [vmem:[%s385 + $0x38] sm:$0xff] %v2085
        %2102 = vst [vmem:[%s385 + $0x40] sm:$0xff] %v2086
        %2103 = vst [vmem:[%s385 + $0x48] sm:$0xff] %v2087
        %2104 = vst [vmem:[%s385 + $0x50] sm:$0xff] %v2088
        %2105 = vst [vmem:[%s385 + $0x58] sm:$0xff] %v2089
        %2106 = vst [vmem:[%s385 + $0x60] sm:$0xff] %v2090
        %2107 = vst [vmem:[%s385 + $0x68] sm:$0xff] %v2091
        %2108 = vst [vmem:[%s385 + $0x70] sm:$0xff] %v2092
        %2109 = vst [vmem:[%s385 + $0x78] sm:$0xff] %v2093
        %s2110 = sand.u32 %s257, 1
        %s2111 = scalar_lea.sflag [#allocation3], %s2110
        %s2112 = sand.u32 %s257, 1
        %s2113 = smul.addr %s2112, 128
        %s2114 = scalar_lea.vmem [#allocation2], %s2113
        // Predicated region
        $region61: #{tpu_custom_call.1} parent=59 // pred_check
          %p2115 = pneg %p267
        $region62: #{tpu_custom_call.1} parent=59 // pred_check_branch
          %2117 = sbr.rel (%p2115) target = $region64
        $region63: #{tpu_custom_call.1} parent=59 // pred_region
          %s2118 = smul.u32 16, %s24
          %s2120 = ssub.s32 2048, 2048
          %2121 = vsyncadd %s2111, %s2120
          %s2122 = smul.addr %s2118, 128
          %s2123 = scalar_lea.hbm %s10, %s2122
          %s2124 = sshll.u32 %s2114, 4
          %s2125 = int_to_ptr.vmem [resolvable:$true] %s2124
          %2130 = dma.vmem_to_hbm [thread:$0]  %s2125, 2048, %s2123, %s2111, 128, 128, 8
        $region64: #{tpu_custom_call.1} parent=59 // pred_fallthru
          _
      $region60: #{tpu_custom_call.1} parent=5 // pred_fallthru
        _
      %p2131 = scmp.le.s32.totalorder 2, %s19
      // Predicated region
      $region65: #{tpu_custom_call.1} parent=5 // pred_check
        %p2132 = pneg %p2131
      $region66: #{tpu_custom_call.1} parent=5 // pred_check_branch
        %2134 = sbr.rel (%p2132) target = $region68
      $region67: #{tpu_custom_call.1} parent=5 // pred_region
        %s2135 = ssub.s32 %s19, 2
        // Predicated region
        $region69: #{tpu_custom_call.1} parent=67 // pred_check
          %p2136 = pneg %p273
        $region70: #{tpu_custom_call.1} parent=67 // pred_check_branch
          %2138 = sbr.rel (%p2136) target = $region72
        $region71: #{tpu_custom_call.1} parent=67 // pred_region
          %s2139 = sand.u32 %s258, 1
          %s2140 = scalar_lea.sflag [#allocation3], %s2139
          %s2141 = sand.u32 %s258, 1
          %s2142 = smul.addr %s2141, 128
          %s2143 = scalar_lea.vmem [#allocation2], %s2142
          %2144 = dma.done %s2140, 2048
        $region72: #{tpu_custom_call.1} parent=67 // pred_fallthru
          _
      $region68: #{tpu_custom_call.1} parent=5 // pred_fallthru
        _
    $region6: #{tpu_custom_call.1} parent=1 // loop_footer
      %s23 = sadd.s32 1, %s19
    $region7: #{tpu_custom_call.1} parent=1 // loop_footer_branch
      %18 = sbr.rel target = $region3
    $region8: #{tpu_custom_call.1} parent=1 // loop_exit
      _
    %2145 = vsyncpa [#allocation3], 1
    %s2146 = scalar_lea.sflag [#allocation3], 1
    %2147 = vsyncpa %s2146, 1

</llo_original>
